<compile_context>
chip_gen: v7x
topology: tpu7x:2x2x1
jax: 0.10.0
libtpu: 0.0.40
codegen_flags: <defaults>
</compile_context>

<pallas_src>
import functools

import jax
import jax.numpy as jnp
from jax.experimental import pallas as pl
from jax.experimental.pallas import tpu as pltpu


def _layernorm(x, gamma, beta, eps=1e-5):
    # PyTorch nn.LayerNorm: biased variance over last dim, eps inside sqrt.
    # (x - mean) is computed once and reused (VPU-slot economy on v5e).
    mean = jnp.mean(x, axis=-1, keepdims=True)
    xm = x - mean
    var = jnp.mean(xm * xm, axis=-1, keepdims=True)
    return xm * jax.lax.rsqrt(var + eps) * gamma + beta


def block_kernel(
    x_ref, skip_ref,
    wsa_ref, wsb_ref, bs_ref,          # skip_linear (x-half / skip-half) + bias
    g1_ref, be1_ref,                   # norm1
    wqkv_ref,                          # qkv (no bias; scale pre-folded into Q cols)
    wproj_ref, bproj_ref,              # attn.proj
    g2_ref, be2_ref,                   # norm2
    w1_ref, bm1_ref, w2_ref, bm2_ref,  # mlp fc1 / fc2
    g3_ref, be3_ref,                   # norm3
    o_ref,
    *scratch,                          # only used on the fallback (no-einshape) path
    num_heads, batch_tile, seq_len, use_einshape,
):
    f32 = jnp.float32
    x = x_ref[...]                     # (R, C), already in compute dtype
    skp = skip_ref[...]
    R, C = x.shape
    L, H, bt = seq_len, num_heads, batch_tile
    D = C // H
    G = bt * H
    cdt = wsa_ref.dtype                # MXU operand dtype (bf16 by default)

    # ---- skip_linear(concat([x, skip], -1)) then norm1 -----------------------
    h = (jnp.dot(x, wsa_ref[...], preferred_element_type=f32)
         + jnp.dot(skp, wsb_ref[...], preferred_element_type=f32)
         + bs_ref[...])
    h = _layernorm(h, g1_ref[...], be1_ref[...])

    # ---- multi-head self attention (head-batched) ----------------------------
    # Attention scale is pre-folded into the Q columns of wqkv; single cast.
    qkv = jnp.dot(h.astype(cdt), wqkv_ref[...],
                  preferred_element_type=f32).astype(cdt)       # (R, 3C)

    if use_einshape:
        def split_heads(m):            # (R, C) -> (bt*H, L, D), head-major
            m = m.reshape(bt, L, H, D)                  # pure reshape
            m = pltpu.einshape("blhd->bhld", m)         # lane-aware relayout (XLU)
            return m.reshape(G, L, D)                   # merge leading dims
        q = split_heads(qkv[:, :C])
        k = split_heads(qkv[:, C:2 * C])
        v = split_heads(qkv[:, 2 * C:])
    else:
        q_s, k_s, v_s, _ = scratch
        for b in range(bt):
            r0 = b * L
            for hh in range(H):
                c0 = hh * D
                g = b * H + hh
                q_s[g] = qkv[r0:r0 + L, c0:c0 + D]
                k_s[g] = qkv[r0:r0 + L, C + c0:C + c0 + D]
                v_s[g] = qkv[r0:r0 + L, 2 * C + c0:2 * C + c0 + D]
        q, k, v = q_s[...], k_s[...], v_s[...]

    # Batched score / softmax / value matmuls.
    # TODO(synk): for large L, add a KV sequence-tile grid axis (flash-style
    # streaming) so the f32 (G, L, L) scores are never fully materialized --
    # the first wall hit on v7x's 64 MiB VMEM.
    s = jnp.einsum('gqd,gkd->gqk', q, k, preferred_element_type=f32)   # (G, L, L)
    s = s - jnp.max(s, axis=-1, keepdims=True)
    p = jnp.exp(s)
    p = p * pl.reciprocal(jnp.sum(p, axis=-1, keepdims=True), approx=True)
    o = jnp.einsum('gqk,gkd->gqd', p.astype(cdt), v,
                   preferred_element_type=f32)                          # (G, L, D)

    if use_einshape:
        om = o.astype(cdt).reshape(bt, H, L, D)
        om = pltpu.einshape("bhld->blhd", om)           # heads back to lanes
        om = om.reshape(R, C)                           # fed straight into proj
    else:
        ao_s = scratch[3]
        for b in range(bt):
            r0 = b * L
            for hh in range(H):
                c0 = hh * D
                ao_s[r0:r0 + L, c0:c0 + D] = o[b * H + hh].astype(ao_s.dtype)
        om = ao_s[...]

    ao = jnp.dot(om, wproj_ref[...], preferred_element_type=f32) + bproj_ref[...]

    # ---- residual + norm2 -----------------------------------------------------
    h = h + ao
    h = _layernorm(h, g2_ref[...], be2_ref[...])

    # ---- MLP (fc1 -> exact GELU -> fc2) + residual + norm3 --------------------
    # erf kept in f32 for parity with nn.GELU; switch to bf16/tanh GELU if the
    # single EUP becomes the binding VLIW slot on v6e/v7x.
    m = jnp.dot(h.astype(cdt), w1_ref[...], preferred_element_type=f32) + bm1_ref[...]
    m = 0.5 * m * (1.0 + jax.lax.erf(m * 0.7071067811865476))
    m = jnp.dot(m.astype(cdt), w2_ref[...], preferred_element_type=f32) + bm2_ref[...]
    h = h + m
    h = _layernorm(h, g3_ref[...], be3_ref[...])

    # TODO(synk): for small-C configs (C < 128, as in the shipped test) a
    # lane-dense output layout (fold L into the lane axis wrapper-side) would
    # avoid masked vst.msk partial stores; real UViT dims (C >= 512) are fine.
    o_ref[...] = h.astype(o_ref.dtype)


def block_forward(x, skip, params, num_heads, *, batch_tile=None,
                  compute_dtype=jnp.bfloat16, max_rows=512):
    B, L, C = x.shape
    H = num_heads
    assert C % H == 0
    D = C // H
    scale = D ** (-0.5)
    Hm = params["w1"].shape[1]
    f32 = jnp.float32
    out_dtype = x.dtype
    cdt = jnp.dtype(compute_dtype)
    cb = cdt.itemsize
    ob = jnp.dtype(out_dtype).itemsize

    # Pack several batch rows per grid step (fills MXU sublanes / denser stores)
    # but keep >= 2 grid steps so both v7x TensorCores get work.
    if batch_tile is None:
        batch_tile = 1
        for d in range(1, B + 1):
            if B % d:
                continue
            if d * L > max_rows:
                continue
            if B >= 2 and B // d < 2:
                continue
            batch_tile = d
    bt = batch_tile
    assert B % bt == 0
    R = bt * L          # rows per grid step
    G = bt * H          # batched attention heads per grid step

    # Fold the attention scale into the Q columns of wqkv (qkv has no bias).
    # Note: rounds scale*W in bf16 instead of scaling f32 scores (benign drift).
    wqkv_f32 = params["wqkv"].astype(f32)
    wqkv_f32 = jnp.concatenate([wqkv_f32[:, :C] * scale, wqkv_f32[:, C:]], axis=-1)

    wsa = params["wsa"].astype(cdt)
    wsb = params["wsb"].astype(cdt)
    wqkv = wqkv_f32.astype(cdt)
    wproj = params["wproj"].astype(cdt)
    w1 = params["w1"].astype(cdt)
    w2 = params["w2"].astype(cdt)
    # Biases and norm affine params stay f32 (added to f32 accumulators).
    bs, bproj = params["bs"].astype(f32), params["bproj"].astype(f32)
    bm1, bm2 = params["bm1"].astype(f32), params["bm2"].astype(f32)
    g1, be1 = params["g1"].astype(f32), params["be1"].astype(f32)
    g2, be2 = params["g2"].astype(f32), params["be2"].astype(f32)
    g3, be3 = params["g3"].astype(f32), params["be3"].astype(f32)

    # x / skip are only ever compute-dtype matmul operands inside the kernel,
    # so a host-side cast is numerically identical and halves their DMA.
    x3 = x.reshape(B // bt, R, C).astype(cdt)
    skip3 = skip.reshape(B // bt, R, C).astype(cdt)

    # ---- VMEM budget: derive from actual block/scratch sizes + headroom ------
    try:
        vmem_cap = int(pltpu.get_tpu_info().vmem_capacity_bytes)
    except Exception:
        vmem_cap = 128 * 1024 * 1024          # v5e/v6e default; v7x is 64 MiB
    weight_bytes = (6 * C * C + 2 * C * Hm) * cb + 12 * C * 4
    io_bytes = 2 * (2 * R * C * cb) + 2 * R * C * ob     # dbl-buffered x/skip + out
    temp_bytes = (R * 3 * C * (4 + cb)        # qkv f32 acc + cdt copy
                  + 3 * G * L * D * cb        # q, k, v
                  + G * L * L * (8 + cb)      # scores + probs (+ cdt cast)
                  + R * C * (4 + cb)          # attn out
                  + R * Hm * (4 + cb)         # mlp hidden
                  + 6 * R * C * 4)            # h / residual / layernorm temps

    flops = int(B * L * (12 * C * C + 4 * L * C + 4 * C * Hm))
    transcendentals = int(B * (H * L * L + L * Hm + 6 * L))
    bytes_accessed = int(B * L * C * (2 * cb + ob) + weight_bytes)

    def run(use_einshape, single_buffer_weights):
        kernel = functools.partial(block_kernel, num_heads=H, batch_tile=bt,
                                   seq_len=L, use_einshape=use_einshape)

        def wspec(shape):
            # Resident weights: constant block index, never re-DMA'd across the
            # grid -> a single VMEM buffer is enough (halves weight VMEM).
            if single_buffer_weights:
                return pl.BlockSpec(shape, lambda i: (0, 0),
                                    pipeline_mode=pl.Buffered(1))
            return pl.BlockSpec(shape, lambda i: (0, 0))

        in_specs = [
            pl.BlockSpec((None, R, C), lambda i: (i, 0, 0)),   # x
            pl.BlockSpec((None, R, C), lambda i: (i, 0, 0)),   # skip
            wspec((C, C)), wspec((C, C)), wspec((1, C)),       # skip_linear
            wspec((1, C)), wspec((1, C)),                      # norm1
            wspec((C, 3 * C)),                                 # qkv
            wspec((C, C)), wspec((1, C)),                      # proj
            wspec((1, C)), wspec((1, C)),                      # norm2
            wspec((C, Hm)), wspec((1, Hm)),                    # mlp fc1
            wspec((Hm, C)), wspec((1, C)),                     # mlp fc2
            wspec((1, C)), wspec((1, C)),                      # norm3
        ]
        out_spec = pl.BlockSpec((None, R, C), lambda i: (i, 0, 0))

        if use_einshape:
            scratch_shapes = []                                # no staging scratch
        else:
            scratch_shapes = [pltpu.VMEM((G, L, D), cdt),      # q (head-major)
                              pltpu.VMEM((G, L, D), cdt),      # k
                              pltpu.VMEM((G, L, D), cdt),      # v
                              pltpu.VMEM((R, C), cdt)]         # merged attn out

        n_wbuf = 1 if single_buffer_weights else 2
        need = n_wbuf * weight_bytes + io_bytes + int(1.5 * temp_bytes) + (4 << 20)
        vmem_limit = int(max(32 << 20, min(need, vmem_cap - (16 << 20))))

        out = pl.pallas_call(
            kernel,
            out_shape=jax.ShapeDtypeStruct((B // bt, R, C), out_dtype),
            grid=(B // bt,),
            in_specs=in_specs,
            out_specs=out_spec,
            scratch_shapes=scratch_shapes,
            compiler_params=pltpu.CompilerParams(
                dimension_semantics=("parallel",),
                vmem_limit_bytes=vmem_limit,
            ),
            cost_estimate=pl.CostEstimate(
                flops=flops,
                transcendentals=transcendentals,
                bytes_accessed=bytes_accessed,
            ),
        )(
            x3, skip3,
            wsa, wsb, bs,
            g1, be1,
            wqkv,
            wproj, bproj,
            g2, be2,
            w1, bm1, w2, bm2,
            g3, be3,
        )
        return jax.block_until_ready(out)

    try:
        out = run(True, True)
    except Exception:
        # TODO(synk): pltpu.einshape / pl.Buffered(1) unsupported in this jax
        # build -- fall back to the validated scratch-staged head path with
        # default double-buffered weights (same math, slower layout plumbing).
        out = run(False, False)
    return out.reshape(B, L, C)


def block_reference(x, skip, params, num_heads):
    """Pure-JAX f32 reference replicating the PyTorch Block._forward math."""
    B, L, C = x.shape
    D = C // num_heads
    scale = D ** (-0.5)
    h = (x @ params["wsa"] + skip @ params["wsb"] + params["bs"])
    h = _layernorm(h, params["g1"], params["be1"])
    qkv = h @ params["wqkv"]                                 # (B, L, 3C)
    qkv = qkv.reshape(B, L, 3, num_heads, D)
    q, k, v = qkv[:, :, 0], qkv[:, :, 1], qkv[:, :, 2]       # (B, L, H, D)
    s = jnp.einsum('blhd,bmhd->bhlm', q, k) * scale
    p = jax.nn.softmax(s, axis=-1)
    ao = jnp.einsum('bhlm,bmhd->blhd', p, v).reshape(B, L, C)
    ao = ao @ params["wproj"] + params["bproj"]
    h = h + ao
    h = _layernorm(h, params["g2"], params["be2"])
    m = h @ params["w1"] + params["bm1"]
    m = 0.5 * m * (1.0 + jax.lax.erf(m * 0.7071067811865476))
    m = m @ params["w2"] + params["bm2"]
    h = h + m
    h = _layernorm(h, params["g3"], params["be3"])
    return h


def make_params(key, C, Hm):
    ks = jax.random.split(key, 10)
    n = lambda k, shp: 0.02 * jax.random.normal(k, shp, jnp.float32)
    return {
        # skip_linear: PyTorch weight (C, 2C); split + transpose -> two (C, C)
        "wsa": n(ks[0], (C, C)),
        "wsb": n(ks[1], (C, C)),
        "bs": n(ks[2], (1, C)),
        # layernorm params (PyTorch default init: gamma=1, beta=0)
        "g1": jnp.ones((1, C), jnp.float32), "be1": jnp.zeros((1, C), jnp.float32),
        "g2": jnp.ones((1, C), jnp.float32), "be2": jnp.zeros((1, C), jnp.float32),
        "g3": jnp.ones((1, C), jnp.float32), "be3": jnp.zeros((1, C), jnp.float32),
        # attention: qkv (no bias), proj (+bias); pre-transposed to (in, out)
        "wqkv": n(ks[3], (C, 3 * C)),
        "wproj": n(ks[4], (C, C)),
        "bproj": n(ks[5], (1, C)),
        # mlp
        "w1": n(ks[6], (C, Hm)),
        "bm1": n(ks[7], (1, Hm)),
        "w2": n(ks[8], (Hm, C)),
        "bm2": n(ks[9], (1, C)),
    }


if __name__ == "__main__":
    B, L, C = 2, 8, 32
    num_heads = 4
    mlp_ratio = 4.0
    Hm = int(C * mlp_ratio)

    key = jax.random.PRNGKey(0)
    kx, ks, kp = jax.random.split(key, 3)
    x = jax.random.normal(kx, (B, L, C), jnp.float32)
    skip = jax.random.normal(ks, (B, L, C), jnp.float32)
    params = make_params(kp, C, Hm)

    out = block_forward(x, skip, params, num_heads=num_heads)
    out = jax.block_until_ready(out)
    assert out.shape == (B, L, C)
    assert bool(jnp.all(jnp.isfinite(out)))

    # Sanity check against the f32 reference (loose tolerance: bf16 MXU operands
    # + approximate reciprocal in the softmax denominator).
    ref = block_reference(x, skip, params, num_heads)
    max_err = float(jnp.max(jnp.abs(out - ref)))
    assert max_err < 0.15, f"max abs error vs reference: {max_err}"

    print("KERNEL_OK")
</pallas_src>

<mosaic_0001>
module attributes {stable_mosaic.version = 11 : i64} {
  func.func @block_kernel(%arg0: i32, %arg1: memref<1x8x32xbf16, #tpu.memory_space<vmem>>, %arg2: memref<1x8x32xbf16, #tpu.memory_space<vmem>>, %arg3: memref<32x32xbf16, #tpu.memory_space<vmem>>, %arg4: memref<32x32xbf16, #tpu.memory_space<vmem>>, %arg5: memref<1x32xf32, #tpu.memory_space<vmem>>, %arg6: memref<1x32xf32, #tpu.memory_space<vmem>>, %arg7: memref<1x32xf32, #tpu.memory_space<vmem>>, %arg8: memref<32x96xbf16, #tpu.memory_space<vmem>>, %arg9: memref<32x32xbf16, #tpu.memory_space<vmem>>, %arg10: memref<1x32xf32, #tpu.memory_space<vmem>>, %arg11: memref<1x32xf32, #tpu.memory_space<vmem>>, %arg12: memref<1x32xf32, #tpu.memory_space<vmem>>, %arg13: memref<32x128xbf16, #tpu.memory_space<vmem>>, %arg14: memref<1x128xf32, #tpu.memory_space<vmem>>, %arg15: memref<128x32xbf16, #tpu.memory_space<vmem>>, %arg16: memref<1x32xf32, #tpu.memory_space<vmem>>, %arg17: memref<1x32xf32, #tpu.memory_space<vmem>>, %arg18: memref<1x32xf32, #tpu.memory_space<vmem>>, %arg19: memref<1x8x32xf32, #tpu.memory_space<vmem>>) attributes {dimension_semantics = [#tpu.dimension_semantics<parallel>], iteration_bounds = array<i64: 2>, scalar_prefetch = 0 : i64, scratch_operands = 0 : i64, tpu.core_type = #tpu.core_type<tc>, window_params = [{transform_indices = @transform_0, window_bounds = array<i64: 1, 8, 32>}, {transform_indices = @transform_1, window_bounds = array<i64: 1, 8, 32>}, {pipeline_mode = #tpu.pipeline_mode<synchronous>, transform_indices = @transform_2, window_bounds = array<i64: 32, 32>}, {pipeline_mode = #tpu.pipeline_mode<synchronous>, transform_indices = @transform_3, window_bounds = array<i64: 32, 32>}, {pipeline_mode = #tpu.pipeline_mode<synchronous>, transform_indices = @transform_4, window_bounds = array<i64: 1, 32>}, {pipeline_mode = #tpu.pipeline_mode<synchronous>, transform_indices = @transform_5, window_bounds = array<i64: 1, 32>}, {pipeline_mode = #tpu.pipeline_mode<synchronous>, transform_indices = @transform_6, window_bounds = array<i64: 1, 32>}, {pipeline_mode = #tpu.pipeline_mode<synchronous>, transform_indices = @transform_7, window_bounds = array<i64: 32, 96>}, {pipeline_mode = #tpu.pipeline_mode<synchronous>, transform_indices = @transform_8, window_bounds = array<i64: 32, 32>}, {pipeline_mode = #tpu.pipeline_mode<synchronous>, transform_indices = @transform_9, window_bounds = array<i64: 1, 32>}, {pipeline_mode = #tpu.pipeline_mode<synchronous>, transform_indices = @transform_10, window_bounds = array<i64: 1, 32>}, {pipeline_mode = #tpu.pipeline_mode<synchronous>, transform_indices = @transform_11, window_bounds = array<i64: 1, 32>}, {pipeline_mode = #tpu.pipeline_mode<synchronous>, transform_indices = @transform_12, window_bounds = array<i64: 32, 128>}, {pipeline_mode = #tpu.pipeline_mode<synchronous>, transform_indices = @transform_13, window_bounds = array<i64: 1, 128>}, {pipeline_mode = #tpu.pipeline_mode<synchronous>, transform_indices = @transform_14, window_bounds = array<i64: 128, 32>}, {pipeline_mode = #tpu.pipeline_mode<synchronous>, transform_indices = @transform_15, window_bounds = array<i64: 1, 32>}, {pipeline_mode = #tpu.pipeline_mode<synchronous>, transform_indices = @transform_16, window_bounds = array<i64: 1, 32>}, {pipeline_mode = #tpu.pipeline_mode<synchronous>, transform_indices = @transform_17, window_bounds = array<i64: 1, 32>}, {transform_indices = @transform_18, window_bounds = array<i64: 1, 8, 32>}]} {
    %c0 = arith.constant 0 : index
    %c0_0 = arith.constant 0 : index
    %c0_1 = arith.constant 0 : index
    %0 = vector.load %arg1[%c0, %c0_0, %c0_1] : memref<1x8x32xbf16, #tpu.memory_space<vmem>>, vector<1x8x32xbf16>
    %1 = vector.shape_cast %0 : vector<1x8x32xbf16> to vector<8x32xbf16>
    %c0_2 = arith.constant 0 : index
    %c0_3 = arith.constant 0 : index
    %c0_4 = arith.constant 0 : index
    %2 = vector.load %arg2[%c0_2, %c0_3, %c0_4] : memref<1x8x32xbf16, #tpu.memory_space<vmem>>, vector<1x8x32xbf16>
    %3 = vector.shape_cast %2 : vector<1x8x32xbf16> to vector<8x32xbf16>
    %c0_5 = arith.constant 0 : index
    %c0_6 = arith.constant 0 : index
    %4 = vector.load %arg3[%c0_5, %c0_6] : memref<32x32xbf16, #tpu.memory_space<vmem>>, vector<32x32xbf16>
    %cst = arith.constant dense<0.000000e+00> : vector<8x32xf32>
    %5 = tpu.matmul %1, %4, %cst {dimension_numbers = #tpu.dot_dimension_numbers<[1], [0], [0], [1], [0, 0, 1, 1], [], []>} : vector<8x32xbf16>, vector<32x32xbf16>, vector<8x32xf32> -> vector<8x32xf32>
    %c0_7 = arith.constant 0 : index
    %c0_8 = arith.constant 0 : index
    %6 = vector.load %arg4[%c0_7, %c0_8] : memref<32x32xbf16, #tpu.memory_space<vmem>>, vector<32x32xbf16>
    %cst_9 = arith.constant dense<0.000000e+00> : vector<8x32xf32>
    %7 = tpu.matmul %3, %6, %cst_9 {dimension_numbers = #tpu.dot_dimension_numbers<[1], [0], [0], [1], [0, 0, 1, 1], [], []>} : vector<8x32xbf16>, vector<32x32xbf16>, vector<8x32xf32> -> vector<8x32xf32>
    %8 = arith.addf %5, %7 : vector<8x32xf32>
    %c0_10 = arith.constant 0 : index
    %c0_11 = arith.constant 0 : index
    %9 = vector.load %arg5[%c0_10, %c0_11] : memref<1x32xf32, #tpu.memory_space<vmem>>, vector<1x32xf32>
    %10 = vector.broadcast %9 : vector<1x32xf32> to vector<8x32xf32>
    %11 = arith.addf %8, %10 : vector<8x32xf32>
    %c0_12 = arith.constant 0 : index
    %c0_13 = arith.constant 0 : index
    %12 = vector.load %arg6[%c0_12, %c0_13] : memref<1x32xf32, #tpu.memory_space<vmem>>, vector<1x32xf32>
    %c0_14 = arith.constant 0 : index
    %c0_15 = arith.constant 0 : index
    %13 = vector.load %arg7[%c0_14, %c0_15] : memref<1x32xf32, #tpu.memory_space<vmem>>, vector<1x32xf32>
    %cst_16 = arith.constant dense<0.000000e+00> : vector<8xf32>
    %14 = vector.multi_reduction <add>, %11, %cst_16 [1] : vector<8x32xf32> to vector<8xf32>
    %15 = vector.shape_cast %14 : vector<8xf32> to vector<8x1xf32>
    %cst_17 = arith.constant 3.200000e+01 : f32
    %16 = vector.broadcast %cst_17 : f32 to vector<8x1xf32>
    %17 = arith.divf %15, %16 : vector<8x1xf32>
    %18 = vector.broadcast %17 : vector<8x1xf32> to vector<8x32xf32>
    %19 = arith.subf %11, %18 : vector<8x32xf32>
    %20 = arith.mulf %19, %19 : vector<8x32xf32>
    %cst_18 = arith.constant dense<0.000000e+00> : vector<8xf32>
    %21 = vector.multi_reduction <add>, %20, %cst_18 [1] : vector<8x32xf32> to vector<8xf32>
    %22 = vector.shape_cast %21 : vector<8xf32> to vector<8x1xf32>
    %cst_19 = arith.constant 3.200000e+01 : f32
    %23 = vector.broadcast %cst_19 : f32 to vector<8x1xf32>
    %24 = arith.divf %22, %23 : vector<8x1xf32>
    %cst_20 = arith.constant 9.99999974E-6 : f32
    %25 = vector.broadcast %cst_20 : f32 to vector<8x1xf32>
    %26 = arith.addf %24, %25 : vector<8x1xf32>
    %27 = math.rsqrt %26 : vector<8x1xf32>
    %28 = vector.broadcast %27 : vector<8x1xf32> to vector<8x32xf32>
    %29 = arith.mulf %19, %28 : vector<8x32xf32>
    %30 = vector.broadcast %12 : vector<1x32xf32> to vector<8x32xf32>
    %31 = arith.mulf %29, %30 : vector<8x32xf32>
    %32 = vector.broadcast %13 : vector<1x32xf32> to vector<8x32xf32>
    %33 = arith.addf %31, %32 : vector<8x32xf32>
    %34 = arith.truncf %33 : vector<8x32xf32> to vector<8x32xbf16>
    %c0_21 = arith.constant 0 : index
    %c0_22 = arith.constant 0 : index
    %35 = vector.load %arg8[%c0_21, %c0_22] : memref<32x96xbf16, #tpu.memory_space<vmem>>, vector<32x96xbf16>
    %cst_23 = arith.constant dense<0.000000e+00> : vector<8x96xf32>
    %36 = tpu.matmul %34, %35, %cst_23 {dimension_numbers = #tpu.dot_dimension_numbers<[1], [0], [0], [1], [0, 0, 1, 1], [], []>} : vector<8x32xbf16>, vector<32x96xbf16>, vector<8x96xf32> -> vector<8x96xf32>
    %37 = arith.truncf %36 : vector<8x96xf32> to vector<8x96xbf16>
    %38 = vector.extract_strided_slice %37 {offsets = [0, 0], sizes = [8, 32], strides = [1, 1]} : vector<8x96xbf16> to vector<8x32xbf16>
    %39 = vector.shape_cast %38 : vector<8x32xbf16> to vector<1x8x4x8xbf16>
    %40 = tpu.transpose %39, [0, 2, 1, 3] : vector<1x8x4x8xbf16> -> vector<1x4x8x8xbf16>
    %41 = vector.shape_cast %40 : vector<1x4x8x8xbf16> to vector<4x8x8xbf16>
    %42 = vector.extract_strided_slice %37 {offsets = [0, 32], sizes = [8, 32], strides = [1, 1]} : vector<8x96xbf16> to vector<8x32xbf16>
    %43 = vector.shape_cast %42 : vector<8x32xbf16> to vector<1x8x4x8xbf16>
    %44 = tpu.transpose %43, [0, 2, 1, 3] : vector<1x8x4x8xbf16> -> vector<1x4x8x8xbf16>
    %45 = vector.shape_cast %44 : vector<1x4x8x8xbf16> to vector<4x8x8xbf16>
    %46 = vector.extract_strided_slice %37 {offsets = [0, 64], sizes = [8, 32], strides = [1, 1]} : vector<8x96xbf16> to vector<8x32xbf16>
    %47 = vector.shape_cast %46 : vector<8x32xbf16> to vector<1x8x4x8xbf16>
    %48 = tpu.transpose %47, [0, 2, 1, 3] : vector<1x8x4x8xbf16> -> vector<1x4x8x8xbf16>
    %49 = vector.shape_cast %48 : vector<1x4x8x8xbf16> to vector<4x8x8xbf16>
    "tpu.trace_start"() <{level = 10 : i32, message = "gqd,gkd->gqk"}> : () -> ()
    %cst_24 = arith.constant dense<0.000000e+00> : vector<4x8x8xf32>
    %50 = tpu.matmul %41, %45, %cst_24 {dimension_numbers = #tpu.dot_dimension_numbers<[2], [2], [1], [1], [0, 0, 0, 1, 1, 1], [0], [0]>} : vector<4x8x8xbf16>, vector<4x8x8xbf16>, vector<4x8x8xf32> -> vector<4x8x8xf32>
    "tpu.trace_stop"() : () -> ()
    %cst_25 = arith.constant dense<0xFF800000> : vector<4x8xf32>
    %51 = vector.multi_reduction <maximumf>, %50, %cst_25 [2] : vector<4x8x8xf32> to vector<4x8xf32>
    %52 = vector.shape_cast %51 : vector<4x8xf32> to vector<4x8x1xf32>
    %53 = vector.broadcast %52 : vector<4x8x1xf32> to vector<4x8x8xf32>
    %54 = arith.subf %50, %53 : vector<4x8x8xf32>
    %55 = math.exp %54 : vector<4x8x8xf32>
    %cst_26 = arith.constant dense<0.000000e+00> : vector<4x8xf32>
    %56 = vector.multi_reduction <add>, %55, %cst_26 [2] : vector<4x8x8xf32> to vector<4x8xf32>
    %57 = vector.shape_cast %56 : vector<4x8xf32> to vector<4x8x1xf32>
    %58 = tpu.reciprocal %57 {approx = true} : vector<4x8x1xf32> -> vector<4x8x1xf32>
    %59 = vector.broadcast %58 : vector<4x8x1xf32> to vector<4x8x8xf32>
    %60 = arith.mulf %55, %59 : vector<4x8x8xf32>
    %61 = arith.truncf %60 : vector<4x8x8xf32> to vector<4x8x8xbf16>
    "tpu.trace_start"() <{level = 10 : i32, message = "gqk,gkd->gqd"}> : () -> ()
    %cst_27 = arith.constant dense<0.000000e+00> : vector<4x8x8xf32>
    %62 = tpu.matmul %61, %49, %cst_27 {dimension_numbers = #tpu.dot_dimension_numbers<[2], [1], [1], [2], [0, 0, 0, 1, 1, 2], [0], [0]>} : vector<4x8x8xbf16>, vector<4x8x8xbf16>, vector<4x8x8xf32> -> vector<4x8x8xf32>
    "tpu.trace_stop"() : () -> ()
    %63 = arith.truncf %62 : vector<4x8x8xf32> to vector<4x8x8xbf16>
    %64 = vector.shape_cast %63 : vector<4x8x8xbf16> to vector<1x4x8x8xbf16>
    %65 = tpu.transpose %64, [0, 2, 1, 3] : vector<1x4x8x8xbf16> -> vector<1x8x4x8xbf16>
    %66 = vector.shape_cast %65 : vector<1x8x4x8xbf16> to vector<8x32xbf16>
    %c0_28 = arith.constant 0 : index
    %c0_29 = arith.constant 0 : index
    %67 = vector.load %arg9[%c0_28, %c0_29] : memref<32x32xbf16, #tpu.memory_space<vmem>>, vector<32x32xbf16>
    %cst_30 = arith.constant dense<0.000000e+00> : vector<8x32xf32>
    %68 = tpu.matmul %66, %67, %cst_30 {dimension_numbers = #tpu.dot_dimension_numbers<[1], [0], [0], [1], [0, 0, 1, 1], [], []>} : vector<8x32xbf16>, vector<32x32xbf16>, vector<8x32xf32> -> vector<8x32xf32>
    %c0_31 = arith.constant 0 : index
    %c0_32 = arith.constant 0 : index
    %69 = vector.load %arg10[%c0_31, %c0_32] : memref<1x32xf32, #tpu.memory_space<vmem>>, vector<1x32xf32>
    %70 = vector.broadcast %69 : vector<1x32xf32> to vector<8x32xf32>
    %71 = arith.addf %68, %70 : vector<8x32xf32>
    %72 = arith.addf %33, %71 : vector<8x32xf32>
    %c0_33 = arith.constant 0 : index
    %c0_34 = arith.constant 0 : index
    %73 = vector.load %arg11[%c0_33, %c0_34] : memref<1x32xf32, #tpu.memory_space<vmem>>, vector<1x32xf32>
    %c0_35 = arith.constant 0 : index
    %c0_36 = arith.constant 0 : index
    %74 = vector.load %arg12[%c0_35, %c0_36] : memref<1x32xf32, #tpu.memory_space<vmem>>, vector<1x32xf32>
    %cst_37 = arith.constant dense<0.000000e+00> : vector<8xf32>
    %75 = vector.multi_reduction <add>, %72, %cst_37 [1] : vector<8x32xf32> to vector<8xf32>
    %76 = vector.shape_cast %75 : vector<8xf32> to vector<8x1xf32>
    %cst_38 = arith.constant 3.200000e+01 : f32
    %77 = vector.broadcast %cst_38 : f32 to vector<8x1xf32>
    %78 = arith.divf %76, %77 : vector<8x1xf32>
    %79 = vector.broadcast %78 : vector<8x1xf32> to vector<8x32xf32>
    %80 = arith.subf %72, %79 : vector<8x32xf32>
    %81 = arith.mulf %80, %80 : vector<8x32xf32>
    %cst_39 = arith.constant dense<0.000000e+00> : vector<8xf32>
    %82 = vector.multi_reduction <add>, %81, %cst_39 [1] : vector<8x32xf32> to vector<8xf32>
    %83 = vector.shape_cast %82 : vector<8xf32> to vector<8x1xf32>
    %cst_40 = arith.constant 3.200000e+01 : f32
    %84 = vector.broadcast %cst_40 : f32 to vector<8x1xf32>
    %85 = arith.divf %83, %84 : vector<8x1xf32>
    %cst_41 = arith.constant 9.99999974E-6 : f32
    %86 = vector.broadcast %cst_41 : f32 to vector<8x1xf32>
    %87 = arith.addf %85, %86 : vector<8x1xf32>
    %88 = math.rsqrt %87 : vector<8x1xf32>
    %89 = vector.broadcast %88 : vector<8x1xf32> to vector<8x32xf32>
    %90 = arith.mulf %80, %89 : vector<8x32xf32>
    %91 = vector.broadcast %73 : vector<1x32xf32> to vector<8x32xf32>
    %92 = arith.mulf %90, %91 : vector<8x32xf32>
    %93 = vector.broadcast %74 : vector<1x32xf32> to vector<8x32xf32>
    %94 = arith.addf %92, %93 : vector<8x32xf32>
    %95 = arith.truncf %94 : vector<8x32xf32> to vector<8x32xbf16>
    %c0_42 = arith.constant 0 : index
    %c0_43 = arith.constant 0 : index
    %96 = vector.load %arg13[%c0_42, %c0_43] : memref<32x128xbf16, #tpu.memory_space<vmem>>, vector<32x128xbf16>
    %cst_44 = arith.constant dense<0.000000e+00> : vector<8x128xf32>
    %97 = tpu.matmul %95, %96, %cst_44 {dimension_numbers = #tpu.dot_dimension_numbers<[1], [0], [0], [1], [0, 0, 1, 1], [], []>} : vector<8x32xbf16>, vector<32x128xbf16>, vector<8x128xf32> -> vector<8x128xf32>
    %c0_45 = arith.constant 0 : index
    %c0_46 = arith.constant 0 : index
    %98 = vector.load %arg14[%c0_45, %c0_46] : memref<1x128xf32, #tpu.memory_space<vmem>>, vector<1x128xf32>
    %99 = vector.broadcast %98 : vector<1x128xf32> to vector<8x128xf32>
    %100 = arith.addf %97, %99 : vector<8x128xf32>
    %cst_47 = arith.constant 5.000000e-01 : f32
    %101 = vector.broadcast %cst_47 : f32 to vector<8x128xf32>
    %102 = arith.mulf %101, %100 : vector<8x128xf32>
    %cst_48 = arith.constant 0.707106769 : f32
    %103 = vector.broadcast %cst_48 : f32 to vector<8x128xf32>
    %104 = arith.mulf %100, %103 : vector<8x128xf32>
    %105 = math.erf %104 : vector<8x128xf32>
    %cst_49 = arith.constant 1.000000e+00 : f32
    %106 = vector.broadcast %cst_49 : f32 to vector<8x128xf32>
    %107 = arith.addf %106, %105 : vector<8x128xf32>
    %108 = arith.mulf %102, %107 : vector<8x128xf32>
    %109 = arith.truncf %108 : vector<8x128xf32> to vector<8x128xbf16>
    %c0_50 = arith.constant 0 : index
    %c0_51 = arith.constant 0 : index
    %110 = vector.load %arg15[%c0_50, %c0_51] : memref<128x32xbf16, #tpu.memory_space<vmem>>, vector<128x32xbf16>
    %cst_52 = arith.constant dense<0.000000e+00> : vector<8x32xf32>
    %111 = tpu.matmul %109, %110, %cst_52 {dimension_numbers = #tpu.dot_dimension_numbers<[1], [0], [0], [1], [0, 0, 1, 1], [], []>} : vector<8x128xbf16>, vector<128x32xbf16>, vector<8x32xf32> -> vector<8x32xf32>
    %c0_53 = arith.constant 0 : index
    %c0_54 = arith.constant 0 : index
    %112 = vector.load %arg16[%c0_53, %c0_54] : memref<1x32xf32, #tpu.memory_space<vmem>>, vector<1x32xf32>
    %113 = vector.broadcast %112 : vector<1x32xf32> to vector<8x32xf32>
    %114 = arith.addf %111, %113 : vector<8x32xf32>
    %115 = arith.addf %94, %114 : vector<8x32xf32>
    %c0_55 = arith.constant 0 : index
    %c0_56 = arith.constant 0 : index
    %116 = vector.load %arg17[%c0_55, %c0_56] : memref<1x32xf32, #tpu.memory_space<vmem>>, vector<1x32xf32>
    %c0_57 = arith.constant 0 : index
    %c0_58 = arith.constant 0 : index
    %117 = vector.load %arg18[%c0_57, %c0_58] : memref<1x32xf32, #tpu.memory_space<vmem>>, vector<1x32xf32>
    %cst_59 = arith.constant dense<0.000000e+00> : vector<8xf32>
    %118 = vector.multi_reduction <add>, %115, %cst_59 [1] : vector<8x32xf32> to vector<8xf32>
    %119 = vector.shape_cast %118 : vector<8xf32> to vector<8x1xf32>
    %cst_60 = arith.constant 3.200000e+01 : f32
    %120 = vector.broadcast %cst_60 : f32 to vector<8x1xf32>
    %121 = arith.divf %119, %120 : vector<8x1xf32>
    %122 = vector.broadcast %121 : vector<8x1xf32> to vector<8x32xf32>
    %123 = arith.subf %115, %122 : vector<8x32xf32>
    %124 = arith.mulf %123, %123 : vector<8x32xf32>
    %cst_61 = arith.constant dense<0.000000e+00> : vector<8xf32>
    %125 = vector.multi_reduction <add>, %124, %cst_61 [1] : vector<8x32xf32> to vector<8xf32>
    %126 = vector.shape_cast %125 : vector<8xf32> to vector<8x1xf32>
    %cst_62 = arith.constant 3.200000e+01 : f32
    %127 = vector.broadcast %cst_62 : f32 to vector<8x1xf32>
    %128 = arith.divf %126, %127 : vector<8x1xf32>
    %cst_63 = arith.constant 9.99999974E-6 : f32
    %129 = vector.broadcast %cst_63 : f32 to vector<8x1xf32>
    %130 = arith.addf %128, %129 : vector<8x1xf32>
    %131 = math.rsqrt %130 : vector<8x1xf32>
    %132 = vector.broadcast %131 : vector<8x1xf32> to vector<8x32xf32>
    %133 = arith.mulf %123, %132 : vector<8x32xf32>
    %134 = vector.broadcast %116 : vector<1x32xf32> to vector<8x32xf32>
    %135 = arith.mulf %133, %134 : vector<8x32xf32>
    %136 = vector.broadcast %117 : vector<1x32xf32> to vector<8x32xf32>
    %137 = arith.addf %135, %136 : vector<8x32xf32>
    %c0_64 = arith.constant 0 : index
    %c0_65 = arith.constant 0 : index
    %c0_66 = arith.constant 0 : index
    %138 = vector.load %arg19[%c0_64, %c0_65, %c0_66] : memref<1x8x32xf32, #tpu.memory_space<vmem>>, vector<1x8x32xf32>
    %139 = vector.shape_cast %138 : vector<1x8x32xf32> to vector<8x32xf32>
    %140 = vector.shape_cast %137 : vector<8x32xf32> to vector<1x8x32xf32>
    tpu.vector_store %arg19[%c0_64, %c0_65, %c0_66], %140 {strides = array<i32>} : memref<1x8x32xf32, #tpu.memory_space<vmem>>, vector<1x8x32xf32>,
    return
  }
  func.func @transform_0(%arg0: i32) -> (i32, i32, i32) {
    %c0_i32 = arith.constant 0 : i32
    %c0_i32_0 = arith.constant 0 : i32
    %c0_i32_1 = arith.constant 0 : i32
    return %arg0, %c0_i32, %c0_i32_0 : i32, i32, i32
  }
  func.func @transform_1(%arg0: i32) -> (i32, i32, i32) {
    %c0_i32 = arith.constant 0 : i32
    %c0_i32_0 = arith.constant 0 : i32
    %c0_i32_1 = arith.constant 0 : i32
    return %arg0, %c0_i32, %c0_i32_0 : i32, i32, i32
  }
  func.func @transform_2(%arg0: i32) -> (i32, i32) {
    %c0_i32 = arith.constant 0 : i32
    %c0_i32_0 = arith.constant 0 : i32
    %c0_i32_1 = arith.constant 0 : i32
    return %c0_i32, %c0_i32_0 : i32, i32
  }
  func.func @transform_3(%arg0: i32) -> (i32, i32) {
    %c0_i32 = arith.constant 0 : i32
    %c0_i32_0 = arith.constant 0 : i32
    %c0_i32_1 = arith.constant 0 : i32
    return %c0_i32, %c0_i32_0 : i32, i32
  }
  func.func @transform_4(%arg0: i32) -> (i32, i32) {
    %c0_i32 = arith.constant 0 : i32
    %c0_i32_0 = arith.constant 0 : i32
    %c0_i32_1 = arith.constant 0 : i32
    return %c0_i32, %c0_i32_0 : i32, i32
  }
  func.func @transform_5(%arg0: i32) -> (i32, i32) {
    %c0_i32 = arith.constant 0 : i32
    %c0_i32_0 = arith.constant 0 : i32
    %c0_i32_1 = arith.constant 0 : i32
    return %c0_i32, %c0_i32_0 : i32, i32
  }
  func.func @transform_6(%arg0: i32) -> (i32, i32) {
    %c0_i32 = arith.constant 0 : i32
    %c0_i32_0 = arith.constant 0 : i32
    %c0_i32_1 = arith.constant 0 : i32
    return %c0_i32, %c0_i32_0 : i32, i32
  }
  func.func @transform_7(%arg0: i32) -> (i32, i32) {
    %c0_i32 = arith.constant 0 : i32
    %c0_i32_0 = arith.constant 0 : i32
    %c0_i32_1 = arith.constant 0 : i32
    return %c0_i32, %c0_i32_0 : i32, i32
  }
  func.func @transform_8(%arg0: i32) -> (i32, i32) {
    %c0_i32 = arith.constant 0 : i32
    %c0_i32_0 = arith.constant 0 : i32
    %c0_i32_1 = arith.constant 0 : i32
    return %c0_i32, %c0_i32_0 : i32, i32
  }
  func.func @transform_9(%arg0: i32) -> (i32, i32) {
    %c0_i32 = arith.constant 0 : i32
    %c0_i32_0 = arith.constant 0 : i32
    %c0_i32_1 = arith.constant 0 : i32
    return %c0_i32, %c0_i32_0 : i32, i32
  }
  func.func @transform_10(%arg0: i32) -> (i32, i32) {
    %c0_i32 = arith.constant 0 : i32
    %c0_i32_0 = arith.constant 0 : i32
    %c0_i32_1 = arith.constant 0 : i32
    return %c0_i32, %c0_i32_0 : i32, i32
  }
  func.func @transform_11(%arg0: i32) -> (i32, i32) {
    %c0_i32 = arith.constant 0 : i32
    %c0_i32_0 = arith.constant 0 : i32
    %c0_i32_1 = arith.constant 0 : i32
    return %c0_i32, %c0_i32_0 : i32, i32
  }
  func.func @transform_12(%arg0: i32) -> (i32, i32) {
    %c0_i32 = arith.constant 0 : i32
    %c0_i32_0 = arith.constant 0 : i32
    %c0_i32_1 = arith.constant 0 : i32
    return %c0_i32, %c0_i32_0 : i32, i32
  }
  func.func @transform_13(%arg0: i32) -> (i32, i32) {
    %c0_i32 = arith.constant 0 : i32
    %c0_i32_0 = arith.constant 0 : i32
    %c0_i32_1 = arith.constant 0 : i32
    return %c0_i32, %c0_i32_0 : i32, i32
  }
  func.func @transform_14(%arg0: i32) -> (i32, i32) {
    %c0_i32 = arith.constant 0 : i32
    %c0_i32_0 = arith.constant 0 : i32
    %c0_i32_1 = arith.constant 0 : i32
    return %c0_i32, %c0_i32_0 : i32, i32
  }
  func.func @transform_15(%arg0: i32) -> (i32, i32) {
    %c0_i32 = arith.constant 0 : i32
    %c0_i32_0 = arith.constant 0 : i32
    %c0_i32_1 = arith.constant 0 : i32
    return %c0_i32, %c0_i32_0 : i32, i32
  }
  func.func @transform_16(%arg0: i32) -> (i32, i32) {
    %c0_i32 = arith.constant 0 : i32
    %c0_i32_0 = arith.constant 0 : i32
    %c0_i32_1 = arith.constant 0 : i32
    return %c0_i32, %c0_i32_0 : i32, i32
  }
  func.func @transform_17(%arg0: i32) -> (i32, i32) {
    %c0_i32 = arith.constant 0 : i32
    %c0_i32_0 = arith.constant 0 : i32
    %c0_i32_1 = arith.constant 0 : i32
    return %c0_i32, %c0_i32_0 : i32, i32
  }
  func.func @transform_18(%arg0: i32) -> (i32, i32, i32) {
    %c0_i32 = arith.constant 0 : i32
    %c0_i32_0 = arith.constant 0 : i32
    %c0_i32_1 = arith.constant 0 : i32
    return %arg0, %c0_i32, %c0_i32_0 : i32, i32, i32
  }
}

module attributes {stable_mosaic.version = 11 : i64} {
  func.func @block_kernel(%arg0: i32, %arg1: memref<1x8x32xbf16, #tpu.memory_space<vmem>>, %arg2: memref<1x8x32xbf16, #tpu.memory_space<vmem>>, %arg3: memref<32x32xbf16, #tpu.memory_space<vmem>>, %arg4: memref<32x32xbf16, #tpu.memory_space<vmem>>, %arg5: memref<1x32xf32, #tpu.memory_space<vmem>>, %arg6: memref<1x32xf32, #tpu.memory_space<vmem>>, %arg7: memref<1x32xf32, #tpu.memory_space<vmem>>, %arg8: memref<32x96xbf16, #tpu.memory_space<vmem>>, %arg9: memref<32x32xbf16, #tpu.memory_space<vmem>>, %arg10: memref<1x32xf32, #tpu.memory_space<vmem>>, %arg11: memref<1x32xf32, #tpu.memory_space<vmem>>, %arg12: memref<1x32xf32, #tpu.memory_space<vmem>>, %arg13: memref<32x128xbf16, #tpu.memory_space<vmem>>, %arg14: memref<1x128xf32, #tpu.memory_space<vmem>>, %arg15: memref<128x32xbf16, #tpu.memory_space<vmem>>, %arg16: memref<1x32xf32, #tpu.memory_space<vmem>>, %arg17: memref<1x32xf32, #tpu.memory_space<vmem>>, %arg18: memref<1x32xf32, #tpu.memory_space<vmem>>, %arg19: memref<1x8x32xf32, #tpu.memory_space<vmem>>, %arg20: memref<4x8x8xbf16, #tpu.memory_space<vmem>>, %arg21: memref<4x8x8xbf16, #tpu.memory_space<vmem>>, %arg22: memref<4x8x8xbf16, #tpu.memory_space<vmem>>, %arg23: memref<8x32xbf16, #tpu.memory_space<vmem>>) attributes {dimension_semantics = [#tpu.dimension_semantics<parallel>], iteration_bounds = array<i64: 2>, scalar_prefetch = 0 : i64, scratch_operands = 4 : i64, tpu.core_type = #tpu.core_type<tc>, window_params = [{transform_indices = @transform_0, window_bounds = array<i64: 1, 8, 32>}, {transform_indices = @transform_1, window_bounds = array<i64: 1, 8, 32>}, {pipeline_mode = #tpu.pipeline_mode<synchronous>, transform_indices = @transform_2, window_bounds = array<i64: 32, 32>}, {pipeline_mode = #tpu.pipeline_mode<synchronous>, transform_indices = @transform_3, window_bounds = array<i64: 32, 32>}, {pipeline_mode = #tpu.pipeline_mode<synchronous>, transform_indices = @transform_4, window_bounds = array<i64: 1, 32>}, {pipeline_mode = #tpu.pipeline_mode<synchronous>, transform_indices = @transform_5, window_bounds = array<i64: 1, 32>}, {pipeline_mode = #tpu.pipeline_mode<synchronous>, transform_indices = @transform_6, window_bounds = array<i64: 1, 32>}, {pipeline_mode = #tpu.pipeline_mode<synchronous>, transform_indices = @transform_7, window_bounds = array<i64: 32, 96>}, {pipeline_mode = #tpu.pipeline_mode<synchronous>, transform_indices = @transform_8, window_bounds = array<i64: 32, 32>}, {pipeline_mode = #tpu.pipeline_mode<synchronous>, transform_indices = @transform_9, window_bounds = array<i64: 1, 32>}, {pipeline_mode = #tpu.pipeline_mode<synchronous>, transform_indices = @transform_10, window_bounds = array<i64: 1, 32>}, {pipeline_mode = #tpu.pipeline_mode<synchronous>, transform_indices = @transform_11, window_bounds = array<i64: 1, 32>}, {pipeline_mode = #tpu.pipeline_mode<synchronous>, transform_indices = @transform_12, window_bounds = array<i64: 32, 128>}, {pipeline_mode = #tpu.pipeline_mode<synchronous>, transform_indices = @transform_13, window_bounds = array<i64: 1, 128>}, {pipeline_mode = #tpu.pipeline_mode<synchronous>, transform_indices = @transform_14, window_bounds = array<i64: 128, 32>}, {pipeline_mode = #tpu.pipeline_mode<synchronous>, transform_indices = @transform_15, window_bounds = array<i64: 1, 32>}, {pipeline_mode = #tpu.pipeline_mode<synchronous>, transform_indices = @transform_16, window_bounds = array<i64: 1, 32>}, {pipeline_mode = #tpu.pipeline_mode<synchronous>, transform_indices = @transform_17, window_bounds = array<i64: 1, 32>}, {transform_indices = @transform_18, window_bounds = array<i64: 1, 8, 32>}]} {
    %c0 = arith.constant 0 : index
    %c0_0 = arith.constant 0 : index
    %c0_1 = arith.constant 0 : index
    %0 = vector.load %arg1[%c0, %c0_0, %c0_1] : memref<1x8x32xbf16, #tpu.memory_space<vmem>>, vector<1x8x32xbf16>
    %1 = vector.shape_cast %0 : vector<1x8x32xbf16> to vector<8x32xbf16>
    %c0_2 = arith.constant 0 : index
    %c0_3 = arith.constant 0 : index
    %c0_4 = arith.constant 0 : index
    %2 = vector.load %arg2[%c0_2, %c0_3, %c0_4] : memref<1x8x32xbf16, #tpu.memory_space<vmem>>, vector<1x8x32xbf16>
    %3 = vector.shape_cast %2 : vector<1x8x32xbf16> to vector<8x32xbf16>
    %c0_5 = arith.constant 0 : index
    %c0_6 = arith.constant 0 : index
    %4 = vector.load %arg3[%c0_5, %c0_6] : memref<32x32xbf16, #tpu.memory_space<vmem>>, vector<32x32xbf16>
    %cst = arith.constant dense<0.000000e+00> : vector<8x32xf32>
    %5 = tpu.matmul %1, %4, %cst {dimension_numbers = #tpu.dot_dimension_numbers<[1], [0], [0], [1], [0, 0, 1, 1], [], []>} : vector<8x32xbf16>, vector<32x32xbf16>, vector<8x32xf32> -> vector<8x32xf32>
    %c0_7 = arith.constant 0 : index
    %c0_8 = arith.constant 0 : index
    %6 = vector.load %arg4[%c0_7, %c0_8] : memref<32x32xbf16, #tpu.memory_space<vmem>>, vector<32x32xbf16>
    %cst_9 = arith.constant dense<0.000000e+00> : vector<8x32xf32>
    %7 = tpu.matmul %3, %6, %cst_9 {dimension_numbers = #tpu.dot_dimension_numbers<[1], [0], [0], [1], [0, 0, 1, 1], [], []>} : vector<8x32xbf16>, vector<32x32xbf16>, vector<8x32xf32> -> vector<8x32xf32>
    %8 = arith.addf %5, %7 : vector<8x32xf32>
    %c0_10 = arith.constant 0 : index
    %c0_11 = arith.constant 0 : index
    %9 = vector.load %arg5[%c0_10, %c0_11] : memref<1x32xf32, #tpu.memory_space<vmem>>, vector<1x32xf32>
    %10 = vector.broadcast %9 : vector<1x32xf32> to vector<8x32xf32>
    %11 = arith.addf %8, %10 : vector<8x32xf32>
    %c0_12 = arith.constant 0 : index
    %c0_13 = arith.constant 0 : index
    %12 = vector.load %arg6[%c0_12, %c0_13] : memref<1x32xf32, #tpu.memory_space<vmem>>, vector<1x32xf32>
    %c0_14 = arith.constant 0 : index
    %c0_15 = arith.constant 0 : index
    %13 = vector.load %arg7[%c0_14, %c0_15] : memref<1x32xf32, #tpu.memory_space<vmem>>, vector<1x32xf32>
    %cst_16 = arith.constant dense<0.000000e+00> : vector<8xf32>
    %14 = vector.multi_reduction <add>, %11, %cst_16 [1] : vector<8x32xf32> to vector<8xf32>
    %15 = vector.shape_cast %14 : vector<8xf32> to vector<8x1xf32>
    %cst_17 = arith.constant 3.200000e+01 : f32
    %16 = vector.broadcast %cst_17 : f32 to vector<8x1xf32>
    %17 = arith.divf %15, %16 : vector<8x1xf32>
    %18 = vector.broadcast %17 : vector<8x1xf32> to vector<8x32xf32>
    %19 = arith.subf %11, %18 : vector<8x32xf32>
    %20 = arith.mulf %19, %19 : vector<8x32xf32>
    %cst_18 = arith.constant dense<0.000000e+00> : vector<8xf32>
    %21 = vector.multi_reduction <add>, %20, %cst_18 [1] : vector<8x32xf32> to vector<8xf32>
    %22 = vector.shape_cast %21 : vector<8xf32> to vector<8x1xf32>
    %cst_19 = arith.constant 3.200000e+01 : f32
    %23 = vector.broadcast %cst_19 : f32 to vector<8x1xf32>
    %24 = arith.divf %22, %23 : vector<8x1xf32>
    %cst_20 = arith.constant 9.99999974E-6 : f32
    %25 = vector.broadcast %cst_20 : f32 to vector<8x1xf32>
    %26 = arith.addf %24, %25 : vector<8x1xf32>
    %27 = math.rsqrt %26 : vector<8x1xf32>
    %28 = vector.broadcast %27 : vector<8x1xf32> to vector<8x32xf32>
    %29 = arith.mulf %19, %28 : vector<8x32xf32>
    %30 = vector.broadcast %12 : vector<1x32xf32> to vector<8x32xf32>
    %31 = arith.mulf %29, %30 : vector<8x32xf32>
    %32 = vector.broadcast %13 : vector<1x32xf32> to vector<8x32xf32>
    %33 = arith.addf %31, %32 : vector<8x32xf32>
    %34 = arith.truncf %33 : vector<8x32xf32> to vector<8x32xbf16>
    %c0_21 = arith.constant 0 : index
    %c0_22 = arith.constant 0 : index
    %35 = vector.load %arg8[%c0_21, %c0_22] : memref<32x96xbf16, #tpu.memory_space<vmem>>, vector<32x96xbf16>
    %cst_23 = arith.constant dense<0.000000e+00> : vector<8x96xf32>
    %36 = tpu.matmul %34, %35, %cst_23 {dimension_numbers = #tpu.dot_dimension_numbers<[1], [0], [0], [1], [0, 0, 1, 1], [], []>} : vector<8x32xbf16>, vector<32x96xbf16>, vector<8x96xf32> -> vector<8x96xf32>
    %37 = arith.truncf %36 : vector<8x96xf32> to vector<8x96xbf16>
    %38 = vector.extract_strided_slice %37 {offsets = [0, 0], sizes = [8, 8], strides = [1, 1]} : vector<8x96xbf16> to vector<8x8xbf16>
    %c0_24 = arith.constant 0 : index
    %c0_25 = arith.constant 0 : index
    %c0_26 = arith.constant 0 : index
    %39 = vector.load %arg20[%c0_24, %c0_25, %c0_26] : memref<4x8x8xbf16, #tpu.memory_space<vmem>>, vector<1x8x8xbf16>
    %40 = vector.shape_cast %39 : vector<1x8x8xbf16> to vector<8x8xbf16>
    %41 = vector.shape_cast %38 : vector<8x8xbf16> to vector<1x8x8xbf16>
    tpu.vector_store %arg20[%c0_24, %c0_25, %c0_26], %41 {strides = array<i32>} : memref<4x8x8xbf16, #tpu.memory_space<vmem>>, vector<1x8x8xbf16>,
    %42 = vector.extract_strided_slice %37 {offsets = [0, 32], sizes = [8, 8], strides = [1, 1]} : vector<8x96xbf16> to vector<8x8xbf16>
    %c0_27 = arith.constant 0 : index
    %c0_28 = arith.constant 0 : index
    %c0_29 = arith.constant 0 : index
    %43 = vector.load %arg21[%c0_27, %c0_28, %c0_29] : memref<4x8x8xbf16, #tpu.memory_space<vmem>>, vector<1x8x8xbf16>
    %44 = vector.shape_cast %43 : vector<1x8x8xbf16> to vector<8x8xbf16>
    %45 = vector.shape_cast %42 : vector<8x8xbf16> to vector<1x8x8xbf16>
    tpu.vector_store %arg21[%c0_27, %c0_28, %c0_29], %45 {strides = array<i32>} : memref<4x8x8xbf16, #tpu.memory_space<vmem>>, vector<1x8x8xbf16>,
    %46 = vector.extract_strided_slice %37 {offsets = [0, 64], sizes = [8, 8], strides = [1, 1]} : vector<8x96xbf16> to vector<8x8xbf16>
    %c0_30 = arith.constant 0 : index
    %c0_31 = arith.constant 0 : index
    %c0_32 = arith.constant 0 : index
    %47 = vector.load %arg22[%c0_30, %c0_31, %c0_32] : memref<4x8x8xbf16, #tpu.memory_space<vmem>>, vector<1x8x8xbf16>
    %48 = vector.shape_cast %47 : vector<1x8x8xbf16> to vector<8x8xbf16>
    %49 = vector.shape_cast %46 : vector<8x8xbf16> to vector<1x8x8xbf16>
    tpu.vector_store %arg22[%c0_30, %c0_31, %c0_32], %49 {strides = array<i32>} : memref<4x8x8xbf16, #tpu.memory_space<vmem>>, vector<1x8x8xbf16>,
    %50 = vector.extract_strided_slice %37 {offsets = [0, 8], sizes = [8, 8], strides = [1, 1]} : vector<8x96xbf16> to vector<8x8xbf16>
    %c1 = arith.constant 1 : index
    %c0_33 = arith.constant 0 : index
    %c0_34 = arith.constant 0 : index
    %51 = vector.load %arg20[%c1, %c0_33, %c0_34] : memref<4x8x8xbf16, #tpu.memory_space<vmem>>, vector<1x8x8xbf16>
    %52 = vector.shape_cast %51 : vector<1x8x8xbf16> to vector<8x8xbf16>
    %53 = vector.shape_cast %50 : vector<8x8xbf16> to vector<1x8x8xbf16>
    tpu.vector_store %arg20[%c1, %c0_33, %c0_34], %53 {strides = array<i32>} : memref<4x8x8xbf16, #tpu.memory_space<vmem>>, vector<1x8x8xbf16>,
    %54 = vector.extract_strided_slice %37 {offsets = [0, 40], sizes = [8, 8], strides = [1, 1]} : vector<8x96xbf16> to vector<8x8xbf16>
    %c1_35 = arith.constant 1 : index
    %c0_36 = arith.constant 0 : index
    %c0_37 = arith.constant 0 : index
    %55 = vector.load %arg21[%c1_35, %c0_36, %c0_37] : memref<4x8x8xbf16, #tpu.memory_space<vmem>>, vector<1x8x8xbf16>
    %56 = vector.shape_cast %55 : vector<1x8x8xbf16> to vector<8x8xbf16>
    %57 = vector.shape_cast %54 : vector<8x8xbf16> to vector<1x8x8xbf16>
    tpu.vector_store %arg21[%c1_35, %c0_36, %c0_37], %57 {strides = array<i32>} : memref<4x8x8xbf16, #tpu.memory_space<vmem>>, vector<1x8x8xbf16>,
    %58 = vector.extract_strided_slice %37 {offsets = [0, 72], sizes = [8, 8], strides = [1, 1]} : vector<8x96xbf16> to vector<8x8xbf16>
    %c1_38 = arith.constant 1 : index
    %c0_39 = arith.constant 0 : index
    %c0_40 = arith.constant 0 : index
    %59 = vector.load %arg22[%c1_38, %c0_39, %c0_40] : memref<4x8x8xbf16, #tpu.memory_space<vmem>>, vector<1x8x8xbf16>
    %60 = vector.shape_cast %59 : vector<1x8x8xbf16> to vector<8x8xbf16>
    %61 = vector.shape_cast %58 : vector<8x8xbf16> to vector<1x8x8xbf16>
    tpu.vector_store %arg22[%c1_38, %c0_39, %c0_40], %61 {strides = array<i32>} : memref<4x8x8xbf16, #tpu.memory_space<vmem>>, vector<1x8x8xbf16>,
    %62 = vector.extract_strided_slice %37 {offsets = [0, 16], sizes = [8, 8], strides = [1, 1]} : vector<8x96xbf16> to vector<8x8xbf16>
    %c2 = arith.constant 2 : index
    %c0_41 = arith.constant 0 : index
    %c0_42 = arith.constant 0 : index
    %63 = vector.load %arg20[%c2, %c0_41, %c0_42] : memref<4x8x8xbf16, #tpu.memory_space<vmem>>, vector<1x8x8xbf16>
    %64 = vector.shape_cast %63 : vector<1x8x8xbf16> to vector<8x8xbf16>
    %65 = vector.shape_cast %62 : vector<8x8xbf16> to vector<1x8x8xbf16>
    tpu.vector_store %arg20[%c2, %c0_41, %c0_42], %65 {strides = array<i32>} : memref<4x8x8xbf16, #tpu.memory_space<vmem>>, vector<1x8x8xbf16>,
    %66 = vector.extract_strided_slice %37 {offsets = [0, 48], sizes = [8, 8], strides = [1, 1]} : vector<8x96xbf16> to vector<8x8xbf16>
    %c2_43 = arith.constant 2 : index
    %c0_44 = arith.constant 0 : index
    %c0_45 = arith.constant 0 : index
    %67 = vector.load %arg21[%c2_43, %c0_44, %c0_45] : memref<4x8x8xbf16, #tpu.memory_space<vmem>>, vector<1x8x8xbf16>
    %68 = vector.shape_cast %67 : vector<1x8x8xbf16> to vector<8x8xbf16>
    %69 = vector.shape_cast %66 : vector<8x8xbf16> to vector<1x8x8xbf16>
    tpu.vector_store %arg21[%c2_43, %c0_44, %c0_45], %69 {strides = array<i32>} : memref<4x8x8xbf16, #tpu.memory_space<vmem>>, vector<1x8x8xbf16>,
    %70 = vector.extract_strided_slice %37 {offsets = [0, 80], sizes = [8, 8], strides = [1, 1]} : vector<8x96xbf16> to vector<8x8xbf16>
    %c2_46 = arith.constant 2 : index
    %c0_47 = arith.constant 0 : index
    %c0_48 = arith.constant 0 : index
    %71 = vector.load %arg22[%c2_46, %c0_47, %c0_48] : memref<4x8x8xbf16, #tpu.memory_space<vmem>>, vector<1x8x8xbf16>
    %72 = vector.shape_cast %71 : vector<1x8x8xbf16> to vector<8x8xbf16>
    %73 = vector.shape_cast %70 : vector<8x8xbf16> to vector<1x8x8xbf16>
    tpu.vector_store %arg22[%c2_46, %c0_47, %c0_48], %73 {strides = array<i32>} : memref<4x8x8xbf16, #tpu.memory_space<vmem>>, vector<1x8x8xbf16>,
    %74 = vector.extract_strided_slice %37 {offsets = [0, 24], sizes = [8, 8], strides = [1, 1]} : vector<8x96xbf16> to vector<8x8xbf16>
    %c3 = arith.constant 3 : index
    %c0_49 = arith.constant 0 : index
    %c0_50 = arith.constant 0 : index
    %75 = vector.load %arg20[%c3, %c0_49, %c0_50] : memref<4x8x8xbf16, #tpu.memory_space<vmem>>, vector<1x8x8xbf16>
    %76 = vector.shape_cast %75 : vector<1x8x8xbf16> to vector<8x8xbf16>
    %77 = vector.shape_cast %74 : vector<8x8xbf16> to vector<1x8x8xbf16>
    tpu.vector_store %arg20[%c3, %c0_49, %c0_50], %77 {strides = array<i32>} : memref<4x8x8xbf16, #tpu.memory_space<vmem>>, vector<1x8x8xbf16>,
    %78 = vector.extract_strided_slice %37 {offsets = [0, 56], sizes = [8, 8], strides = [1, 1]} : vector<8x96xbf16> to vector<8x8xbf16>
    %c3_51 = arith.constant 3 : index
    %c0_52 = arith.constant 0 : index
    %c0_53 = arith.constant 0 : index
    %79 = vector.load %arg21[%c3_51, %c0_52, %c0_53] : memref<4x8x8xbf16, #tpu.memory_space<vmem>>, vector<1x8x8xbf16>
    %80 = vector.shape_cast %79 : vector<1x8x8xbf16> to vector<8x8xbf16>
    %81 = vector.shape_cast %78 : vector<8x8xbf16> to vector<1x8x8xbf16>
    tpu.vector_store %arg21[%c3_51, %c0_52, %c0_53], %81 {strides = array<i32>} : memref<4x8x8xbf16, #tpu.memory_space<vmem>>, vector<1x8x8xbf16>,
    %82 = vector.extract_strided_slice %37 {offsets = [0, 88], sizes = [8, 8], strides = [1, 1]} : vector<8x96xbf16> to vector<8x8xbf16>
    %c3_54 = arith.constant 3 : index
    %c0_55 = arith.constant 0 : index
    %c0_56 = arith.constant 0 : index
    %83 = vector.load %arg22[%c3_54, %c0_55, %c0_56] : memref<4x8x8xbf16, #tpu.memory_space<vmem>>, vector<1x8x8xbf16>
    %84 = vector.shape_cast %83 : vector<1x8x8xbf16> to vector<8x8xbf16>
    %85 = vector.shape_cast %82 : vector<8x8xbf16> to vector<1x8x8xbf16>
    tpu.vector_store %arg22[%c3_54, %c0_55, %c0_56], %85 {strides = array<i32>} : memref<4x8x8xbf16, #tpu.memory_space<vmem>>, vector<1x8x8xbf16>,
    %c0_57 = arith.constant 0 : index
    %c0_58 = arith.constant 0 : index
    %c0_59 = arith.constant 0 : index
    %86 = vector.load %arg20[%c0_57, %c0_58, %c0_59] : memref<4x8x8xbf16, #tpu.memory_space<vmem>>, vector<4x8x8xbf16>
    %c0_60 = arith.constant 0 : index
    %c0_61 = arith.constant 0 : index
    %c0_62 = arith.constant 0 : index
    %87 = vector.load %arg21[%c0_60, %c0_61, %c0_62] : memref<4x8x8xbf16, #tpu.memory_space<vmem>>, vector<4x8x8xbf16>
    %c0_63 = arith.constant 0 : index
    %c0_64 = arith.constant 0 : index
    %c0_65 = arith.constant 0 : index
    %88 = vector.load %arg22[%c0_63, %c0_64, %c0_65] : memref<4x8x8xbf16, #tpu.memory_space<vmem>>, vector<4x8x8xbf16>
    "tpu.trace_start"() <{level = 10 : i32, message = "gqd,gkd->gqk"}> : () -> ()
    %cst_66 = arith.constant dense<0.000000e+00> : vector<4x8x8xf32>
    %89 = tpu.matmul %86, %87, %cst_66 {dimension_numbers = #tpu.dot_dimension_numbers<[2], [2], [1], [1], [0, 0, 0, 1, 1, 1], [0], [0]>} : vector<4x8x8xbf16>, vector<4x8x8xbf16>, vector<4x8x8xf32> -> vector<4x8x8xf32>
    "tpu.trace_stop"() : () -> ()
    %cst_67 = arith.constant dense<0xFF800000> : vector<4x8xf32>
    %90 = vector.multi_reduction <maximumf>, %89, %cst_67 [2] : vector<4x8x8xf32> to vector<4x8xf32>
    %91 = vector.shape_cast %90 : vector<4x8xf32> to vector<4x8x1xf32>
    %92 = vector.broadcast %91 : vector<4x8x1xf32> to vector<4x8x8xf32>
    %93 = arith.subf %89, %92 : vector<4x8x8xf32>
    %94 = math.exp %93 : vector<4x8x8xf32>
    %cst_68 = arith.constant dense<0.000000e+00> : vector<4x8xf32>
    %95 = vector.multi_reduction <add>, %94, %cst_68 [2] : vector<4x8x8xf32> to vector<4x8xf32>
    %96 = vector.shape_cast %95 : vector<4x8xf32> to vector<4x8x1xf32>
    %97 = tpu.reciprocal %96 {approx = true} : vector<4x8x1xf32> -> vector<4x8x1xf32>
    %98 = vector.broadcast %97 : vector<4x8x1xf32> to vector<4x8x8xf32>
    %99 = arith.mulf %94, %98 : vector<4x8x8xf32>
    %100 = arith.truncf %99 : vector<4x8x8xf32> to vector<4x8x8xbf16>
    "tpu.trace_start"() <{level = 10 : i32, message = "gqk,gkd->gqd"}> : () -> ()
    %cst_69 = arith.constant dense<0.000000e+00> : vector<4x8x8xf32>
    %101 = tpu.matmul %100, %88, %cst_69 {dimension_numbers = #tpu.dot_dimension_numbers<[2], [1], [1], [2], [0, 0, 0, 1, 1, 2], [0], [0]>} : vector<4x8x8xbf16>, vector<4x8x8xbf16>, vector<4x8x8xf32> -> vector<4x8x8xf32>
    "tpu.trace_stop"() : () -> ()
    %102 = vector.extract_strided_slice %101 {offsets = [0, 0, 0], sizes = [1, 8, 8], strides = [1, 1, 1]} : vector<4x8x8xf32> to vector<1x8x8xf32>
    %103 = vector.shape_cast %102 : vector<1x8x8xf32> to vector<8x8xf32>
    %104 = arith.truncf %103 : vector<8x8xf32> to vector<8x8xbf16>
    %c0_70 = arith.constant 0 : index
    %c0_71 = arith.constant 0 : index
    %105 = vector.load %arg23[%c0_70, %c0_71] : memref<8x32xbf16, #tpu.memory_space<vmem>>, vector<8x8xbf16>
    tpu.vector_store %arg23[%c0_70, %c0_71], %104 {strides = array<i32>} : memref<8x32xbf16, #tpu.memory_space<vmem>>, vector<8x8xbf16>,
    %106 = vector.extract_strided_slice %101 {offsets = [1, 0, 0], sizes = [1, 8, 8], strides = [1, 1, 1]} : vector<4x8x8xf32> to vector<1x8x8xf32>
    %107 = vector.shape_cast %106 : vector<1x8x8xf32> to vector<8x8xf32>
    %108 = arith.truncf %107 : vector<8x8xf32> to vector<8x8xbf16>
    %c0_72 = arith.constant 0 : index
    %c8 = arith.constant 8 : index
    %109 = vector.load %arg23[%c0_72, %c8] : memref<8x32xbf16, #tpu.memory_space<vmem>>, vector<8x8xbf16>
    tpu.vector_store %arg23[%c0_72, %c8], %108 {strides = array<i32>} : memref<8x32xbf16, #tpu.memory_space<vmem>>, vector<8x8xbf16>,
    %110 = vector.extract_strided_slice %101 {offsets = [2, 0, 0], sizes = [1, 8, 8], strides = [1, 1, 1]} : vector<4x8x8xf32> to vector<1x8x8xf32>
    %111 = vector.shape_cast %110 : vector<1x8x8xf32> to vector<8x8xf32>
    %112 = arith.truncf %111 : vector<8x8xf32> to vector<8x8xbf16>
    %c0_73 = arith.constant 0 : index
    %c16 = arith.constant 16 : index
    %113 = vector.load %arg23[%c0_73, %c16] : memref<8x32xbf16, #tpu.memory_space<vmem>>, vector<8x8xbf16>
    tpu.vector_store %arg23[%c0_73, %c16], %112 {strides = array<i32>} : memref<8x32xbf16, #tpu.memory_space<vmem>>, vector<8x8xbf16>,
    %114 = vector.extract_strided_slice %101 {offsets = [3, 0, 0], sizes = [1, 8, 8], strides = [1, 1, 1]} : vector<4x8x8xf32> to vector<1x8x8xf32>
    %115 = vector.shape_cast %114 : vector<1x8x8xf32> to vector<8x8xf32>
    %116 = arith.truncf %115 : vector<8x8xf32> to vector<8x8xbf16>
    %c0_74 = arith.constant 0 : index
    %c24 = arith.constant 24 : index
    %117 = vector.load %arg23[%c0_74, %c24] : memref<8x32xbf16, #tpu.memory_space<vmem>>, vector<8x8xbf16>
    tpu.vector_store %arg23[%c0_74, %c24], %116 {strides = array<i32>} : memref<8x32xbf16, #tpu.memory_space<vmem>>, vector<8x8xbf16>,
    %c0_75 = arith.constant 0 : index
    %c0_76 = arith.constant 0 : index
    %118 = vector.load %arg23[%c0_75, %c0_76] : memref<8x32xbf16, #tpu.memory_space<vmem>>, vector<8x32xbf16>
    %c0_77 = arith.constant 0 : index
    %c0_78 = arith.constant 0 : index
    %119 = vector.load %arg9[%c0_77, %c0_78] : memref<32x32xbf16, #tpu.memory_space<vmem>>, vector<32x32xbf16>
    %cst_79 = arith.constant dense<0.000000e+00> : vector<8x32xf32>
    %120 = tpu.matmul %118, %119, %cst_79 {dimension_numbers = #tpu.dot_dimension_numbers<[1], [0], [0], [1], [0, 0, 1, 1], [], []>} : vector<8x32xbf16>, vector<32x32xbf16>, vector<8x32xf32> -> vector<8x32xf32>
    %c0_80 = arith.constant 0 : index
    %c0_81 = arith.constant 0 : index
    %121 = vector.load %arg10[%c0_80, %c0_81] : memref<1x32xf32, #tpu.memory_space<vmem>>, vector<1x32xf32>
    %122 = vector.broadcast %121 : vector<1x32xf32> to vector<8x32xf32>
    %123 = arith.addf %120, %122 : vector<8x32xf32>
    %124 = arith.addf %33, %123 : vector<8x32xf32>
    %c0_82 = arith.constant 0 : index
    %c0_83 = arith.constant 0 : index
    %125 = vector.load %arg11[%c0_82, %c0_83] : memref<1x32xf32, #tpu.memory_space<vmem>>, vector<1x32xf32>
    %c0_84 = arith.constant 0 : index
    %c0_85 = arith.constant 0 : index
    %126 = vector.load %arg12[%c0_84, %c0_85] : memref<1x32xf32, #tpu.memory_space<vmem>>, vector<1x32xf32>
    %cst_86 = arith.constant dense<0.000000e+00> : vector<8xf32>
    %127 = vector.multi_reduction <add>, %124, %cst_86 [1] : vector<8x32xf32> to vector<8xf32>
    %128 = vector.shape_cast %127 : vector<8xf32> to vector<8x1xf32>
    %cst_87 = arith.constant 3.200000e+01 : f32
    %129 = vector.broadcast %cst_87 : f32 to vector<8x1xf32>
    %130 = arith.divf %128, %129 : vector<8x1xf32>
    %131 = vector.broadcast %130 : vector<8x1xf32> to vector<8x32xf32>
    %132 = arith.subf %124, %131 : vector<8x32xf32>
    %133 = arith.mulf %132, %132 : vector<8x32xf32>
    %cst_88 = arith.constant dense<0.000000e+00> : vector<8xf32>
    %134 = vector.multi_reduction <add>, %133, %cst_88 [1] : vector<8x32xf32> to vector<8xf32>
    %135 = vector.shape_cast %134 : vector<8xf32> to vector<8x1xf32>
    %cst_89 = arith.constant 3.200000e+01 : f32
    %136 = vector.broadcast %cst_89 : f32 to vector<8x1xf32>
    %137 = arith.divf %135, %136 : vector<8x1xf32>
    %cst_90 = arith.constant 9.99999974E-6 : f32
    %138 = vector.broadcast %cst_90 : f32 to vector<8x1xf32>
    %139 = arith.addf %137, %138 : vector<8x1xf32>
    %140 = math.rsqrt %139 : vector<8x1xf32>
    %141 = vector.broadcast %140 : vector<8x1xf32> to vector<8x32xf32>
    %142 = arith.mulf %132, %141 : vector<8x32xf32>
    %143 = vector.broadcast %125 : vector<1x32xf32> to vector<8x32xf32>
    %144 = arith.mulf %142, %143 : vector<8x32xf32>
    %145 = vector.broadcast %126 : vector<1x32xf32> to vector<8x32xf32>
    %146 = arith.addf %144, %145 : vector<8x32xf32>
    %147 = arith.truncf %146 : vector<8x32xf32> to vector<8x32xbf16>
    %c0_91 = arith.constant 0 : index
    %c0_92 = arith.constant 0 : index
    %148 = vector.load %arg13[%c0_91, %c0_92] : memref<32x128xbf16, #tpu.memory_space<vmem>>, vector<32x128xbf16>
    %cst_93 = arith.constant dense<0.000000e+00> : vector<8x128xf32>
    %149 = tpu.matmul %147, %148, %cst_93 {dimension_numbers = #tpu.dot_dimension_numbers<[1], [0], [0], [1], [0, 0, 1, 1], [], []>} : vector<8x32xbf16>, vector<32x128xbf16>, vector<8x128xf32> -> vector<8x128xf32>
    %c0_94 = arith.constant 0 : index
    %c0_95 = arith.constant 0 : index
    %150 = vector.load %arg14[%c0_94, %c0_95] : memref<1x128xf32, #tpu.memory_space<vmem>>, vector<1x128xf32>
    %151 = vector.broadcast %150 : vector<1x128xf32> to vector<8x128xf32>
    %152 = arith.addf %149, %151 : vector<8x128xf32>
    %cst_96 = arith.constant 5.000000e-01 : f32
    %153 = vector.broadcast %cst_96 : f32 to vector<8x128xf32>
    %154 = arith.mulf %153, %152 : vector<8x128xf32>
    %cst_97 = arith.constant 0.707106769 : f32
    %155 = vector.broadcast %cst_97 : f32 to vector<8x128xf32>
    %156 = arith.mulf %152, %155 : vector<8x128xf32>
    %157 = math.erf %156 : vector<8x128xf32>
    %cst_98 = arith.constant 1.000000e+00 : f32
    %158 = vector.broadcast %cst_98 : f32 to vector<8x128xf32>
    %159 = arith.addf %158, %157 : vector<8x128xf32>
    %160 = arith.mulf %154, %159 : vector<8x128xf32>
    %161 = arith.truncf %160 : vector<8x128xf32> to vector<8x128xbf16>
    %c0_99 = arith.constant 0 : index
    %c0_100 = arith.constant 0 : index
    %162 = vector.load %arg15[%c0_99, %c0_100] : memref<128x32xbf16, #tpu.memory_space<vmem>>, vector<128x32xbf16>
    %cst_101 = arith.constant dense<0.000000e+00> : vector<8x32xf32>
    %163 = tpu.matmul %161, %162, %cst_101 {dimension_numbers = #tpu.dot_dimension_numbers<[1], [0], [0], [1], [0, 0, 1, 1], [], []>} : vector<8x128xbf16>, vector<128x32xbf16>, vector<8x32xf32> -> vector<8x32xf32>
    %c0_102 = arith.constant 0 : index
    %c0_103 = arith.constant 0 : index
    %164 = vector.load %arg16[%c0_102, %c0_103] : memref<1x32xf32, #tpu.memory_space<vmem>>, vector<1x32xf32>
    %165 = vector.broadcast %164 : vector<1x32xf32> to vector<8x32xf32>
    %166 = arith.addf %163, %165 : vector<8x32xf32>
    %167 = arith.addf %146, %166 : vector<8x32xf32>
    %c0_104 = arith.constant 0 : index
    %c0_105 = arith.constant 0 : index
    %168 = vector.load %arg17[%c0_104, %c0_105] : memref<1x32xf32, #tpu.memory_space<vmem>>, vector<1x32xf32>
    %c0_106 = arith.constant 0 : index
    %c0_107 = arith.constant 0 : index
    %169 = vector.load %arg18[%c0_106, %c0_107] : memref<1x32xf32, #tpu.memory_space<vmem>>, vector<1x32xf32>
    %cst_108 = arith.constant dense<0.000000e+00> : vector<8xf32>
    %170 = vector.multi_reduction <add>, %167, %cst_108 [1] : vector<8x32xf32> to vector<8xf32>
    %171 = vector.shape_cast %170 : vector<8xf32> to vector<8x1xf32>
    %cst_109 = arith.constant 3.200000e+01 : f32
    %172 = vector.broadcast %cst_109 : f32 to vector<8x1xf32>
    %173 = arith.divf %171, %172 : vector<8x1xf32>
    %174 = vector.broadcast %173 : vector<8x1xf32> to vector<8x32xf32>
    %175 = arith.subf %167, %174 : vector<8x32xf32>
    %176 = arith.mulf %175, %175 : vector<8x32xf32>
    %cst_110 = arith.constant dense<0.000000e+00> : vector<8xf32>
    %177 = vector.multi_reduction <add>, %176, %cst_110 [1] : vector<8x32xf32> to vector<8xf32>
    %178 = vector.shape_cast %177 : vector<8xf32> to vector<8x1xf32>
    %cst_111 = arith.constant 3.200000e+01 : f32
    %179 = vector.broadcast %cst_111 : f32 to vector<8x1xf32>
    %180 = arith.divf %178, %179 : vector<8x1xf32>
    %cst_112 = arith.constant 9.99999974E-6 : f32
    %181 = vector.broadcast %cst_112 : f32 to vector<8x1xf32>
    %182 = arith.addf %180, %181 : vector<8x1xf32>
    %183 = math.rsqrt %182 : vector<8x1xf32>
    %184 = vector.broadcast %183 : vector<8x1xf32> to vector<8x32xf32>
    %185 = arith.mulf %175, %184 : vector<8x32xf32>
    %186 = vector.broadcast %168 : vector<1x32xf32> to vector<8x32xf32>
    %187 = arith.mulf %185, %186 : vector<8x32xf32>
    %188 = vector.broadcast %169 : vector<1x32xf32> to vector<8x32xf32>
    %189 = arith.addf %187, %188 : vector<8x32xf32>
    %c0_113 = arith.constant 0 : index
    %c0_114 = arith.constant 0 : index
    %c0_115 = arith.constant 0 : index
    %190 = vector.load %arg19[%c0_113, %c0_114, %c0_115] : memref<1x8x32xf32, #tpu.memory_space<vmem>>, vector<1x8x32xf32>
    %191 = vector.shape_cast %190 : vector<1x8x32xf32> to vector<8x32xf32>
    %192 = vector.shape_cast %189 : vector<8x32xf32> to vector<1x8x32xf32>
    tpu.vector_store %arg19[%c0_113, %c0_114, %c0_115], %192 {strides = array<i32>} : memref<1x8x32xf32, #tpu.memory_space<vmem>>, vector<1x8x32xf32>,
    return
  }
  func.func @transform_0(%arg0: i32) -> (i32, i32, i32) {
    %c0_i32 = arith.constant 0 : i32
    %c0_i32_0 = arith.constant 0 : i32
    %c0_i32_1 = arith.constant 0 : i32
    return %arg0, %c0_i32, %c0_i32_0 : i32, i32, i32
  }
  func.func @transform_1(%arg0: i32) -> (i32, i32, i32) {
    %c0_i32 = arith.constant 0 : i32
    %c0_i32_0 = arith.constant 0 : i32
    %c0_i32_1 = arith.constant 0 : i32
    return %arg0, %c0_i32, %c0_i32_0 : i32, i32, i32
  }
  func.func @transform_2(%arg0: i32) -> (i32, i32) {
    %c0_i32 = arith.constant 0 : i32
    %c0_i32_0 = arith.constant 0 : i32
    %c0_i32_1 = arith.constant 0 : i32
    return %c0_i32, %c0_i32_0 : i32, i32
  }
  func.func @transform_3(%arg0: i32) -> (i32, i32) {
    %c0_i32 = arith.constant 0 : i32
    %c0_i32_0 = arith.constant 0 : i32
    %c0_i32_1 = arith.constant 0 : i32
    return %c0_i32, %c0_i32_0 : i32, i32
  }
  func.func @transform_4(%arg0: i32) -> (i32, i32) {
    %c0_i32 = arith.constant 0 : i32
    %c0_i32_0 = arith.constant 0 : i32
    %c0_i32_1 = arith.constant 0 : i32
    return %c0_i32, %c0_i32_0 : i32, i32
  }
  func.func @transform_5(%arg0: i32) -> (i32, i32) {
    %c0_i32 = arith.constant 0 : i32
    %c0_i32_0 = arith.constant 0 : i32
    %c0_i32_1 = arith.constant 0 : i32
    return %c0_i32, %c0_i32_0 : i32, i32
  }
  func.func @transform_6(%arg0: i32) -> (i32, i32) {
    %c0_i32 = arith.constant 0 : i32
    %c0_i32_0 = arith.constant 0 : i32
    %c0_i32_1 = arith.constant 0 : i32
    return %c0_i32, %c0_i32_0 : i32, i32
  }
  func.func @transform_7(%arg0: i32) -> (i32, i32) {
    %c0_i32 = arith.constant 0 : i32
    %c0_i32_0 = arith.constant 0 : i32
    %c0_i32_1 = arith.constant 0 : i32
    return %c0_i32, %c0_i32_0 : i32, i32
  }
  func.func @transform_8(%arg0: i32) -> (i32, i32) {
    %c0_i32 = arith.constant 0 : i32
    %c0_i32_0 = arith.constant 0 : i32
    %c0_i32_1 = arith.constant 0 : i32
    return %c0_i32, %c0_i32_0 : i32, i32
  }
  func.func @transform_9(%arg0: i32) -> (i32, i32) {
    %c0_i32 = arith.constant 0 : i32
    %c0_i32_0 = arith.constant 0 : i32
    %c0_i32_1 = arith.constant 0 : i32
    return %c0_i32, %c0_i32_0 : i32, i32
  }
  func.func @transform_10(%arg0: i32) -> (i32, i32) {
    %c0_i32 = arith.constant 0 : i32
    %c0_i32_0 = arith.constant 0 : i32
    %c0_i32_1 = arith.constant 0 : i32
    return %c0_i32, %c0_i32_0 : i32, i32
  }
  func.func @transform_11(%arg0: i32) -> (i32, i32) {
    %c0_i32 = arith.constant 0 : i32
    %c0_i32_0 = arith.constant 0 : i32
    %c0_i32_1 = arith.constant 0 : i32
    return %c0_i32, %c0_i32_0 : i32, i32
  }
  func.func @transform_12(%arg0: i32) -> (i32, i32) {
    %c0_i32 = arith.constant 0 : i32
    %c0_i32_0 = arith.constant 0 : i32
    %c0_i32_1 = arith.constant 0 : i32
    return %c0_i32, %c0_i32_0 : i32, i32
  }
  func.func @transform_13(%arg0: i32) -> (i32, i32) {
    %c0_i32 = arith.constant 0 : i32
    %c0_i32_0 = arith.constant 0 : i32
    %c0_i32_1 = arith.constant 0 : i32
    return %c0_i32, %c0_i32_0 : i32, i32
  }
  func.func @transform_14(%arg0: i32) -> (i32, i32) {
    %c0_i32 = arith.constant 0 : i32
    %c0_i32_0 = arith.constant 0 : i32
    %c0_i32_1 = arith.constant 0 : i32
    return %c0_i32, %c0_i32_0 : i32, i32
  }
  func.func @transform_15(%arg0: i32) -> (i32, i32) {
    %c0_i32 = arith.constant 0 : i32
    %c0_i32_0 = arith.constant 0 : i32
    %c0_i32_1 = arith.constant 0 : i32
    return %c0_i32, %c0_i32_0 : i32, i32
  }
  func.func @transform_16(%arg0: i32) -> (i32, i32) {
    %c0_i32 = arith.constant 0 : i32
    %c0_i32_0 = arith.constant 0 : i32
    %c0_i32_1 = arith.constant 0 : i32
    return %c0_i32, %c0_i32_0 : i32, i32
  }
  func.func @transform_17(%arg0: i32) -> (i32, i32) {
    %c0_i32 = arith.constant 0 : i32
    %c0_i32_0 = arith.constant 0 : i32
    %c0_i32_1 = arith.constant 0 : i32
    return %c0_i32, %c0_i32_0 : i32, i32
  }
  func.func @transform_18(%arg0: i32) -> (i32, i32, i32) {
    %c0_i32 = arith.constant 0 : i32
    %c0_i32_0 = arith.constant 0 : i32
    %c0_i32_1 = arith.constant 0 : i32
    return %arg0, %c0_i32, %c0_i32_0 : i32, i32, i32
  }
}

</mosaic_0001>

<llo_original>
// kernel: tpu_custom_call.1
$region0: #{tpu_custom_call.1}
  #allocation0 [shape = 'u32[]', space=smem, size = 0x4, offset = 0x4, fixed_abs, tag = 'smem constant byte address 0x4 - core index']
  #allocation1 [shape = 'u32[144,128]{1,0:T(1,128)}', space=vmem, size = 0x12000, scoped, tag = 'internal scratch']
  %s0 = inlined_call_operand.hbm [shape: bf16[2,8,32], index: 0, kind: input, shape index: {}]
  %s1 = inlined_call_operand.hbm [shape: bf16[2,8,32], index: 1, kind: input, shape index: {}]
  %s2 = inlined_call_operand.vmem [shape: bf16[32,32], index: 2, kind: input, shape index: {}]
  %s3 = inlined_call_operand.vmem [shape: bf16[32,32], index: 3, kind: input, shape index: {}]
  %s4 = inlined_call_operand.vmem [shape: f32[1,32], index: 4, kind: input, shape index: {}]
  %s5 = inlined_call_operand.vmem [shape: f32[1,32], index: 5, kind: input, shape index: {}]
  %s6 = inlined_call_operand.vmem [shape: f32[1,32], index: 6, kind: input, shape index: {}]
  %s7 = inlined_call_operand.vmem [shape: bf16[32,96], index: 7, kind: input, shape index: {}]
  %s8 = inlined_call_operand.vmem [shape: bf16[32,32], index: 8, kind: input, shape index: {}]
  %s9 = inlined_call_operand.vmem [shape: f32[1,32], index: 9, kind: input, shape index: {}]
  %s10 = inlined_call_operand.vmem [shape: f32[1,32], index: 10, kind: input, shape index: {}]
  %s11 = inlined_call_operand.vmem [shape: f32[1,32], index: 11, kind: input, shape index: {}]
  %s12 = inlined_call_operand.vmem [shape: bf16[32,128], index: 12, kind: input, shape index: {}]
  %s13 = inlined_call_operand.vmem [shape: f32[1,128], index: 13, kind: input, shape index: {}]
  %s14 = inlined_call_operand.vmem [shape: bf16[128,32], index: 14, kind: input, shape index: {}]
  %s15 = inlined_call_operand.vmem [shape: f32[1,32], index: 15, kind: input, shape index: {}]
  %s16 = inlined_call_operand.vmem [shape: f32[1,32], index: 16, kind: input, shape index: {}]
  %s17 = inlined_call_operand.vmem [shape: f32[1,32], index: 17, kind: input, shape index: {}]
  %s18 = inlined_call_operand.hbm [shape: f32[2,8,32], index: 18, kind: output, shape index: {}]
  %s19 = sld [smem:[#allocation0]]
  $region113: #{tpu_custom_call.1} parent=0
    _
  %s21 = ssub.s32 1, %s19
  %s22 = scalar_select 0, %s21, %s19
  $region1: #{tpu_custom_call.1} parent=0
    #allocation2 [shape = 'u8[4096]{0}', space=vmem, size = 0x1000, scoped, tag = 'input window, operand 0']
    #allocation3 [shape = 's32[2]{0}', space=sflag, size = 0x8, scoped, tag = 'scoped memory for tpu_custom_call.1']
    #allocation4 [shape = 's32[2]{0}', space=sflag, size = 0x8, scoped, tag = 'scoped memory for tpu_custom_call.1']
    #allocation5 [shape = 'u8[4096]{0}', space=vmem, size = 0x1000, scoped, tag = 'input window, operand 1']
    #allocation6 [shape = 's32[2]{0}', space=sflag, size = 0x8, scoped, tag = 'scoped memory for tpu_custom_call.1']
    #allocation7 [shape = 'u8[8192]{0}', space=vmem, size = 0x2000, scoped, tag = 'output window, operand 0']
    %23 = vsyncpa [#allocation3], 0
    %s24 = scalar_lea.sflag [#allocation3], 1
    %25 = vsyncpa %s24, 0
    %26 = vsyncpa [#allocation6], 0
    %s27 = scalar_lea.sflag [#allocation6], 1
    %28 = vsyncpa %s27, 0
    %29 = vsyncpa [#allocation4], 0
    %s30 = scalar_lea.sflag [#allocation4], 1
    %31 = vsyncpa %s30, 0
    loop: start=0, step=1, limit=4
    $region2: #{tpu_custom_call.1} parent=1 // loop_pre_header
      _
    $region3: #{tpu_custom_call.1} parent=1 // loop_header
      %s33 = sphi 0, %s37
      %p34 = scmp.ge.s32.totalorder %s33, 4
      %s43 = sphi 0, %s45
      %s46 = sphi 0, %s43
      %s47 = sphi 0, %s46
      %s63 = sphi 0, %s47
      %s69 = sphi 0, %s71
      %s72 = sphi 0, %s69
      %s73 = sphi 0, %s72
      %s89 = sphi 0, %s73
      %s93 = sphi 0, %s93
      %s95 = sphi 0, %s93
      %s96 = sphi 0, %s95
      %s110 = sphi 0, %s96
      %s114 = sphi 0, %s114
      %s116 = sphi 0, %s114
      %s117 = sphi 0, %s116
      %s131 = sphi 0, %s117
      %s135 = sphi 0, %s135
      %s137 = sphi 0, %s135
      %s138 = sphi 0, %s137
      %s152 = sphi 0, %s138
      %s156 = sphi 0, %s156
      %s158 = sphi 0, %s156
      %s159 = sphi 0, %s158
      %s173 = sphi 0, %s159
      %s177 = sphi 0, %s177
      %s179 = sphi 0, %s177
      %s180 = sphi 0, %s179
      %s194 = sphi 0, %s180
      %s198 = sphi 0, %s198
      %s200 = sphi 0, %s198
      %s201 = sphi 0, %s200
      %s215 = sphi 0, %s201
      %s219 = sphi 0, %s219
      %s221 = sphi 0, %s219
      %s222 = sphi 0, %s221
      %s236 = sphi 0, %s222
      %s240 = sphi 0, %s240
      %s242 = sphi 0, %s240
      %s243 = sphi 0, %s242
      %s257 = sphi 0, %s243
      %s261 = sphi 0, %s261
      %s263 = sphi 0, %s261
      %s264 = sphi 0, %s263
      %s278 = sphi 0, %s264
      %s282 = sphi 0, %s282
      %s284 = sphi 0, %s282
      %s285 = sphi 0, %s284
      %s299 = sphi 0, %s285
      %s303 = sphi 0, %s303
      %s305 = sphi 0, %s303
      %s306 = sphi 0, %s305
      %s320 = sphi 0, %s306
      %s324 = sphi 0, %s324
      %s326 = sphi 0, %s324
      %s327 = sphi 0, %s326
      %s341 = sphi 0, %s327
      %s345 = sphi 0, %s345
      %s347 = sphi 0, %s345
      %s348 = sphi 0, %s347
      %s362 = sphi 0, %s348
      %s366 = sphi 0, %s366
      %s368 = sphi 0, %s366
      %s369 = sphi 0, %s368
      %s383 = sphi 0, %s369
      %s387 = sphi 0, %s387
      %s389 = sphi 0, %s387
      %s390 = sphi 0, %s389
      %s404 = sphi 0, %s390
      %s408 = sphi 0, %s408
      %s410 = sphi 0, %s408
      %s411 = sphi 0, %s410
      %s425 = sphi 0, %s411
      %s431 = sphi 0, %s433
      %s434 = sphi 0, %s431
      %s435 = sphi 0, %s434
      %s451 = sphi 0, %s435
    $region4: #{tpu_custom_call.1} parent=1 // loop_header_branch
      %36 = sbr.rel (%p34) target = $region8
    $region5: #{tpu_custom_call.1} parent=1 // loop_body
      %s38 = ssub.s32 %s33, 1
      %s39 = ssub.s32 %s33, 2
      %s40 = sadd.s32 %s33, 1
      %s41 = ssub.s32 %s33, %s40
      %p42 = scmp.eq.s32.totalorder %s41, 0
      %s44 = sadd.s32 %s43, 1
      %s45 = scalar_select %p42, %s43, %s44
      %p48 = pneg %p42
      %p49 = scmp.eq.s32.totalorder %s33, 1
      %p50 = por %p48, %p49
      %p51 = scmp.ne.s32.totalorder %s43, %s46
      %p52 = scmp.eq.s32.totalorder %s33, 0
      %p53 = por %p51, %p52
      %p54 = scmp.ne.s32.totalorder %s43, %s46
      %p55 = scmp.eq.s32.totalorder %s38, 1
      %p56 = por %p54, %p55
      %p57 = scmp.ne.s32.totalorder %s46, %s47
      %p58 = scmp.eq.s32.totalorder %s38, 0
      %p59 = por %p57, %p58
      %p60 = scmp.ne.s32.totalorder %s46, %s47
      %p61 = scmp.eq.s32.totalorder %s39, 1
      %p62 = por %p60, %p61
      %p64 = scmp.ne.s32.totalorder %s47, %s63
      %p65 = scmp.eq.s32.totalorder %s39, 0
      %p66 = por %p64, %p65
      %s67 = ssub.s32 %s33, %s40
      %p68 = scmp.eq.s32.totalorder %s67, 0
      %s70 = sadd.s32 %s69, 1
      %s71 = scalar_select %p68, %s69, %s70
      %p74 = pneg %p68
      %p75 = scmp.eq.s32.totalorder %s33, 1
      %p76 = por %p74, %p75
      %p77 = scmp.ne.s32.totalorder %s69, %s72
      %p78 = scmp.eq.s32.totalorder %s33, 0
      %p79 = por %p77, %p78
      %p80 = scmp.ne.s32.totalorder %s69, %s72
      %p81 = scmp.eq.s32.totalorder %s38, 1
      %p82 = por %p80, %p81
      %p83 = scmp.ne.s32.totalorder %s72, %s73
      %p84 = scmp.eq.s32.totalorder %s38, 0
      %p85 = por %p83, %p84
      %p86 = scmp.ne.s32.totalorder %s72, %s73
      %p87 = scmp.eq.s32.totalorder %s39, 1
      %p88 = por %p86, %p87
      %p90 = scmp.ne.s32.totalorder %s73, %s89
      %p91 = scmp.eq.s32.totalorder %s39, 0
      %p92 = por %p90, %p91
      %s94 = sadd.s32 %s93, 1
      %p97 = scmp.eq.s32.totalorder %s33, 1
      %p98 = scmp.ne.s32.totalorder %s93, %s95
      %p99 = scmp.eq.s32.totalorder %s33, 0
      %p100 = por %p98, %p99
      %p101 = scmp.ne.s32.totalorder %s93, %s95
      %p102 = scmp.eq.s32.totalorder %s38, 1
      %p103 = por %p101, %p102
      %p104 = scmp.ne.s32.totalorder %s95, %s96
      %p105 = scmp.eq.s32.totalorder %s38, 0
      %p106 = por %p104, %p105
      %p107 = scmp.ne.s32.totalorder %s95, %s96
      %p108 = scmp.eq.s32.totalorder %s39, 1
      %p109 = por %p107, %p108
      %p111 = scmp.ne.s32.totalorder %s96, %s110
      %p112 = scmp.eq.s32.totalorder %s39, 0
      %p113 = por %p111, %p112
      %s115 = sadd.s32 %s114, 1
      %p118 = scmp.eq.s32.totalorder %s33, 1
      %p119 = scmp.ne.s32.totalorder %s114, %s116
      %p120 = scmp.eq.s32.totalorder %s33, 0
      %p121 = por %p119, %p120
      %p122 = scmp.ne.s32.totalorder %s114, %s116
      %p123 = scmp.eq.s32.totalorder %s38, 1
      %p124 = por %p122, %p123
      %p125 = scmp.ne.s32.totalorder %s116, %s117
      %p126 = scmp.eq.s32.totalorder %s38, 0
      %p127 = por %p125, %p126
      %p128 = scmp.ne.s32.totalorder %s116, %s117
      %p129 = scmp.eq.s32.totalorder %s39, 1
      %p130 = por %p128, %p129
      %p132 = scmp.ne.s32.totalorder %s117, %s131
      %p133 = scmp.eq.s32.totalorder %s39, 0
      %p134 = por %p132, %p133
      %s136 = sadd.s32 %s135, 1
      %p139 = scmp.eq.s32.totalorder %s33, 1
      %p140 = scmp.ne.s32.totalorder %s135, %s137
      %p141 = scmp.eq.s32.totalorder %s33, 0
      %p142 = por %p140, %p141
      %p143 = scmp.ne.s32.totalorder %s135, %s137
      %p144 = scmp.eq.s32.totalorder %s38, 1
      %p145 = por %p143, %p144
      %p146 = scmp.ne.s32.totalorder %s137, %s138
      %p147 = scmp.eq.s32.totalorder %s38, 0
      %p148 = por %p146, %p147
      %p149 = scmp.ne.s32.totalorder %s137, %s138
      %p150 = scmp.eq.s32.totalorder %s39, 1
      %p151 = por %p149, %p150
      %p153 = scmp.ne.s32.totalorder %s138, %s152
      %p154 = scmp.eq.s32.totalorder %s39, 0
      %p155 = por %p153, %p154
      %s157 = sadd.s32 %s156, 1
      %p160 = scmp.eq.s32.totalorder %s33, 1
      %p161 = scmp.ne.s32.totalorder %s156, %s158
      %p162 = scmp.eq.s32.totalorder %s33, 0
      %p163 = por %p161, %p162
      %p164 = scmp.ne.s32.totalorder %s156, %s158
      %p165 = scmp.eq.s32.totalorder %s38, 1
      %p166 = por %p164, %p165
      %p167 = scmp.ne.s32.totalorder %s158, %s159
      %p168 = scmp.eq.s32.totalorder %s38, 0
      %p169 = por %p167, %p168
      %p170 = scmp.ne.s32.totalorder %s158, %s159
      %p171 = scmp.eq.s32.totalorder %s39, 1
      %p172 = por %p170, %p171
      %p174 = scmp.ne.s32.totalorder %s159, %s173
      %p175 = scmp.eq.s32.totalorder %s39, 0
      %p176 = por %p174, %p175
      %s178 = sadd.s32 %s177, 1
      %p181 = scmp.eq.s32.totalorder %s33, 1
      %p182 = scmp.ne.s32.totalorder %s177, %s179
      %p183 = scmp.eq.s32.totalorder %s33, 0
      %p184 = por %p182, %p183
      %p185 = scmp.ne.s32.totalorder %s177, %s179
      %p186 = scmp.eq.s32.totalorder %s38, 1
      %p187 = por %p185, %p186
      %p188 = scmp.ne.s32.totalorder %s179, %s180
      %p189 = scmp.eq.s32.totalorder %s38, 0
      %p190 = por %p188, %p189
      %p191 = scmp.ne.s32.totalorder %s179, %s180
      %p192 = scmp.eq.s32.totalorder %s39, 1
      %p193 = por %p191, %p192
      %p195 = scmp.ne.s32.totalorder %s180, %s194
      %p196 = scmp.eq.s32.totalorder %s39, 0
      %p197 = por %p195, %p196
      %s199 = sadd.s32 %s198, 1
      %p202 = scmp.eq.s32.totalorder %s33, 1
      %p203 = scmp.ne.s32.totalorder %s198, %s200
      %p204 = scmp.eq.s32.totalorder %s33, 0
      %p205 = por %p203, %p204
      %p206 = scmp.ne.s32.totalorder %s198, %s200
      %p207 = scmp.eq.s32.totalorder %s38, 1
      %p208 = por %p206, %p207
      %p209 = scmp.ne.s32.totalorder %s200, %s201
      %p210 = scmp.eq.s32.totalorder %s38, 0
      %p211 = por %p209, %p210
      %p212 = scmp.ne.s32.totalorder %s200, %s201
      %p213 = scmp.eq.s32.totalorder %s39, 1
      %p214 = por %p212, %p213
      %p216 = scmp.ne.s32.totalorder %s201, %s215
      %p217 = scmp.eq.s32.totalorder %s39, 0
      %p218 = por %p216, %p217
      %s220 = sadd.s32 %s219, 1
      %p223 = scmp.eq.s32.totalorder %s33, 1
      %p224 = scmp.ne.s32.totalorder %s219, %s221
      %p225 = scmp.eq.s32.totalorder %s33, 0
      %p226 = por %p224, %p225
      %p227 = scmp.ne.s32.totalorder %s219, %s221
      %p228 = scmp.eq.s32.totalorder %s38, 1
      %p229 = por %p227, %p228
      %p230 = scmp.ne.s32.totalorder %s221, %s222
      %p231 = scmp.eq.s32.totalorder %s38, 0
      %p232 = por %p230, %p231
      %p233 = scmp.ne.s32.totalorder %s221, %s222
      %p234 = scmp.eq.s32.totalorder %s39, 1
      %p235 = por %p233, %p234
      %p237 = scmp.ne.s32.totalorder %s222, %s236
      %p238 = scmp.eq.s32.totalorder %s39, 0
      %p239 = por %p237, %p238
      %s241 = sadd.s32 %s240, 1
      %p244 = scmp.eq.s32.totalorder %s33, 1
      %p245 = scmp.ne.s32.totalorder %s240, %s242
      %p246 = scmp.eq.s32.totalorder %s33, 0
      %p247 = por %p245, %p246
      %p248 = scmp.ne.s32.totalorder %s240, %s242
      %p249 = scmp.eq.s32.totalorder %s38, 1
      %p250 = por %p248, %p249
      %p251 = scmp.ne.s32.totalorder %s242, %s243
      %p252 = scmp.eq.s32.totalorder %s38, 0
      %p253 = por %p251, %p252
      %p254 = scmp.ne.s32.totalorder %s242, %s243
      %p255 = scmp.eq.s32.totalorder %s39, 1
      %p256 = por %p254, %p255
      %p258 = scmp.ne.s32.totalorder %s243, %s257
      %p259 = scmp.eq.s32.totalorder %s39, 0
      %p260 = por %p258, %p259
      %s262 = sadd.s32 %s261, 1
      %p265 = scmp.eq.s32.totalorder %s33, 1
      %p266 = scmp.ne.s32.totalorder %s261, %s263
      %p267 = scmp.eq.s32.totalorder %s33, 0
      %p268 = por %p266, %p267
      %p269 = scmp.ne.s32.totalorder %s261, %s263
      %p270 = scmp.eq.s32.totalorder %s38, 1
      %p271 = por %p269, %p270
      %p272 = scmp.ne.s32.totalorder %s263, %s264
      %p273 = scmp.eq.s32.totalorder %s38, 0
      %p274 = por %p272, %p273
      %p275 = scmp.ne.s32.totalorder %s263, %s264
      %p276 = scmp.eq.s32.totalorder %s39, 1
      %p277 = por %p275, %p276
      %p279 = scmp.ne.s32.totalorder %s264, %s278
      %p280 = scmp.eq.s32.totalorder %s39, 0
      %p281 = por %p279, %p280
      %s283 = sadd.s32 %s282, 1
      %p286 = scmp.eq.s32.totalorder %s33, 1
      %p287 = scmp.ne.s32.totalorder %s282, %s284
      %p288 = scmp.eq.s32.totalorder %s33, 0
      %p289 = por %p287, %p288
      %p290 = scmp.ne.s32.totalorder %s282, %s284
      %p291 = scmp.eq.s32.totalorder %s38, 1
      %p292 = por %p290, %p291
      %p293 = scmp.ne.s32.totalorder %s284, %s285
      %p294 = scmp.eq.s32.totalorder %s38, 0
      %p295 = por %p293, %p294
      %p296 = scmp.ne.s32.totalorder %s284, %s285
      %p297 = scmp.eq.s32.totalorder %s39, 1
      %p298 = por %p296, %p297
      %p300 = scmp.ne.s32.totalorder %s285, %s299
      %p301 = scmp.eq.s32.totalorder %s39, 0
      %p302 = por %p300, %p301
      %s304 = sadd.s32 %s303, 1
      %p307 = scmp.eq.s32.totalorder %s33, 1
      %p308 = scmp.ne.s32.totalorder %s303, %s305
      %p309 = scmp.eq.s32.totalorder %s33, 0
      %p310 = por %p308, %p309
      %p311 = scmp.ne.s32.totalorder %s303, %s305
      %p312 = scmp.eq.s32.totalorder %s38, 1
      %p313 = por %p311, %p312
      %p314 = scmp.ne.s32.totalorder %s305, %s306
      %p315 = scmp.eq.s32.totalorder %s38, 0
      %p316 = por %p314, %p315
      %p317 = scmp.ne.s32.totalorder %s305, %s306
      %p318 = scmp.eq.s32.totalorder %s39, 1
      %p319 = por %p317, %p318
      %p321 = scmp.ne.s32.totalorder %s306, %s320
      %p322 = scmp.eq.s32.totalorder %s39, 0
      %p323 = por %p321, %p322
      %s325 = sadd.s32 %s324, 1
      %p328 = scmp.eq.s32.totalorder %s33, 1
      %p329 = scmp.ne.s32.totalorder %s324, %s326
      %p330 = scmp.eq.s32.totalorder %s33, 0
      %p331 = por %p329, %p330
      %p332 = scmp.ne.s32.totalorder %s324, %s326
      %p333 = scmp.eq.s32.totalorder %s38, 1
      %p334 = por %p332, %p333
      %p335 = scmp.ne.s32.totalorder %s326, %s327
      %p336 = scmp.eq.s32.totalorder %s38, 0
      %p337 = por %p335, %p336
      %p338 = scmp.ne.s32.totalorder %s326, %s327
      %p339 = scmp.eq.s32.totalorder %s39, 1
      %p340 = por %p338, %p339
      %p342 = scmp.ne.s32.totalorder %s327, %s341
      %p343 = scmp.eq.s32.totalorder %s39, 0
      %p344 = por %p342, %p343
      %s346 = sadd.s32 %s345, 1
      %p349 = scmp.eq.s32.totalorder %s33, 1
      %p350 = scmp.ne.s32.totalorder %s345, %s347
      %p351 = scmp.eq.s32.totalorder %s33, 0
      %p352 = por %p350, %p351
      %p353 = scmp.ne.s32.totalorder %s345, %s347
      %p354 = scmp.eq.s32.totalorder %s38, 1
      %p355 = por %p353, %p354
      %p356 = scmp.ne.s32.totalorder %s347, %s348
      %p357 = scmp.eq.s32.totalorder %s38, 0
      %p358 = por %p356, %p357
      %p359 = scmp.ne.s32.totalorder %s347, %s348
      %p360 = scmp.eq.s32.totalorder %s39, 1
      %p361 = por %p359, %p360
      %p363 = scmp.ne.s32.totalorder %s348, %s362
      %p364 = scmp.eq.s32.totalorder %s39, 0
      %p365 = por %p363, %p364
      %s367 = sadd.s32 %s366, 1
      %p370 = scmp.eq.s32.totalorder %s33, 1
      %p371 = scmp.ne.s32.totalorder %s366, %s368
      %p372 = scmp.eq.s32.totalorder %s33, 0
      %p373 = por %p371, %p372
      %p374 = scmp.ne.s32.totalorder %s366, %s368
      %p375 = scmp.eq.s32.totalorder %s38, 1
      %p376 = por %p374, %p375
      %p377 = scmp.ne.s32.totalorder %s368, %s369
      %p378 = scmp.eq.s32.totalorder %s38, 0
      %p379 = por %p377, %p378
      %p380 = scmp.ne.s32.totalorder %s368, %s369
      %p381 = scmp.eq.s32.totalorder %s39, 1
      %p382 = por %p380, %p381
      %p384 = scmp.ne.s32.totalorder %s369, %s383
      %p385 = scmp.eq.s32.totalorder %s39, 0
      %p386 = por %p384, %p385
      %s388 = sadd.s32 %s387, 1
      %p391 = scmp.eq.s32.totalorder %s33, 1
      %p392 = scmp.ne.s32.totalorder %s387, %s389
      %p393 = scmp.eq.s32.totalorder %s33, 0
      %p394 = por %p392, %p393
      %p395 = scmp.ne.s32.totalorder %s387, %s389
      %p396 = scmp.eq.s32.totalorder %s38, 1
      %p397 = por %p395, %p396
      %p398 = scmp.ne.s32.totalorder %s389, %s390
      %p399 = scmp.eq.s32.totalorder %s38, 0
      %p400 = por %p398, %p399
      %p401 = scmp.ne.s32.totalorder %s389, %s390
      %p402 = scmp.eq.s32.totalorder %s39, 1
      %p403 = por %p401, %p402
      %p405 = scmp.ne.s32.totalorder %s390, %s404
      %p406 = scmp.eq.s32.totalorder %s39, 0
      %p407 = por %p405, %p406
      %s409 = sadd.s32 %s408, 1
      %p412 = scmp.eq.s32.totalorder %s33, 1
      %p413 = scmp.ne.s32.totalorder %s408, %s410
      %p414 = scmp.eq.s32.totalorder %s33, 0
      %p415 = por %p413, %p414
      %p416 = scmp.ne.s32.totalorder %s408, %s410
      %p417 = scmp.eq.s32.totalorder %s38, 1
      %p418 = por %p416, %p417
      %p419 = scmp.ne.s32.totalorder %s410, %s411
      %p420 = scmp.eq.s32.totalorder %s38, 0
      %p421 = por %p419, %p420
      %p422 = scmp.ne.s32.totalorder %s410, %s411
      %p423 = scmp.eq.s32.totalorder %s39, 1
      %p424 = por %p422, %p423
      %p426 = scmp.ne.s32.totalorder %s411, %s425
      %p427 = scmp.eq.s32.totalorder %s39, 0
      %p428 = por %p426, %p427
      %s429 = ssub.s32 %s33, %s40
      %p430 = scmp.eq.s32.totalorder %s429, 0
      %s432 = sadd.s32 %s431, 1
      %s433 = scalar_select %p430, %s431, %s432
      %p436 = pneg %p430
      %p437 = scmp.eq.s32.totalorder %s33, 1
      %p438 = por %p436, %p437
      %p439 = scmp.ne.s32.totalorder %s431, %s434
      %p440 = scmp.eq.s32.totalorder %s33, 0
      %p441 = por %p439, %p440
      %p442 = scmp.ne.s32.totalorder %s431, %s434
      %p443 = scmp.eq.s32.totalorder %s38, 1
      %p444 = por %p442, %p443
      %p445 = scmp.ne.s32.totalorder %s434, %s435
      %p446 = scmp.eq.s32.totalorder %s38, 0
      %p447 = por %p445, %p446
      %p448 = scmp.ne.s32.totalorder %s434, %s435
      %p449 = scmp.eq.s32.totalorder %s39, 1
      %p450 = por %p448, %p449
      %p452 = scmp.ne.s32.totalorder %s435, %s451
      %p453 = scmp.eq.s32.totalorder %s39, 0
      %p454 = por %p452, %p453
      %p455 = scmp.le.s32.totalorder 1, %s33
      %p456 = scmp.lt.s32.totalorder %s33, 3
      %p457 = pnand %p455, %p456
      %p458 = pneg %p457
      // Predicated region
      $region9: #{tpu_custom_call.1} parent=5 // pred_check
        _
      $region10: #{tpu_custom_call.1} parent=5 // pred_check_branch
        %460 = sbr.rel (%p457) target = $region12
      $region11: #{tpu_custom_call.1} parent=5 // pred_region
        %s461 = ssub.s32 %s33, 1
        // Predicated region
        $region13: #{tpu_custom_call.1} parent=11 // pred_check
          %p462 = pneg %p106
        $region14: #{tpu_custom_call.1} parent=11 // pred_check_branch
          %464 = sbr.rel (%p462) target = $region16
        $region15: #{tpu_custom_call.1} parent=11 // pred_region
          _
        $region16: #{tpu_custom_call.1} parent=11 // pred_fallthru
          _
        // Predicated region
        $region17: #{tpu_custom_call.1} parent=11 // pred_check
          %p465 = pneg %p127
        $region18: #{tpu_custom_call.1} parent=11 // pred_check_branch
          %467 = sbr.rel (%p465) target = $region20
        $region19: #{tpu_custom_call.1} parent=11 // pred_region
          _
        $region20: #{tpu_custom_call.1} parent=11 // pred_fallthru
          _
        // Predicated region
        $region21: #{tpu_custom_call.1} parent=11 // pred_check
          %p468 = pneg %p148
        $region22: #{tpu_custom_call.1} parent=11 // pred_check_branch
          %470 = sbr.rel (%p468) target = $region24
        $region23: #{tpu_custom_call.1} parent=11 // pred_region
          _
        $region24: #{tpu_custom_call.1} parent=11 // pred_fallthru
          _
        // Predicated region
        $region25: #{tpu_custom_call.1} parent=11 // pred_check
          %p471 = pneg %p169
        $region26: #{tpu_custom_call.1} parent=11 // pred_check_branch
          %473 = sbr.rel (%p471) target = $region28
        $region27: #{tpu_custom_call.1} parent=11 // pred_region
          _
        $region28: #{tpu_custom_call.1} parent=11 // pred_fallthru
          _
        // Predicated region
        $region29: #{tpu_custom_call.1} parent=11 // pred_check
          %p474 = pneg %p190
        $region30: #{tpu_custom_call.1} parent=11 // pred_check_branch
          %476 = sbr.rel (%p474) target = $region32
        $region31: #{tpu_custom_call.1} parent=11 // pred_region
          _
        $region32: #{tpu_custom_call.1} parent=11 // pred_fallthru
          _
        // Predicated region
        $region33: #{tpu_custom_call.1} parent=11 // pred_check
          %p477 = pneg %p211
        $region34: #{tpu_custom_call.1} parent=11 // pred_check_branch
          %479 = sbr.rel (%p477) target = $region36
        $region35: #{tpu_custom_call.1} parent=11 // pred_region
          _
        $region36: #{tpu_custom_call.1} parent=11 // pred_fallthru
          _
        // Predicated region
        $region37: #{tpu_custom_call.1} parent=11 // pred_check
          %p480 = pneg %p232
        $region38: #{tpu_custom_call.1} parent=11 // pred_check_branch
          %482 = sbr.rel (%p480) target = $region40
        $region39: #{tpu_custom_call.1} parent=11 // pred_region
          _
        $region40: #{tpu_custom_call.1} parent=11 // pred_fallthru
          _
        // Predicated region
        $region41: #{tpu_custom_call.1} parent=11 // pred_check
          %p483 = pneg %p253
        $region42: #{tpu_custom_call.1} parent=11 // pred_check_branch
          %485 = sbr.rel (%p483) target = $region44
        $region43: #{tpu_custom_call.1} parent=11 // pred_region
          _
        $region44: #{tpu_custom_call.1} parent=11 // pred_fallthru
          _
        // Predicated region
        $region45: #{tpu_custom_call.1} parent=11 // pred_check
          %p486 = pneg %p274
        $region46: #{tpu_custom_call.1} parent=11 // pred_check_branch
          %488 = sbr.rel (%p486) target = $region48
        $region47: #{tpu_custom_call.1} parent=11 // pred_region
          _
        $region48: #{tpu_custom_call.1} parent=11 // pred_fallthru
          _
        // Predicated region
        $region49: #{tpu_custom_call.1} parent=11 // pred_check
          %p489 = pneg %p295
        $region50: #{tpu_custom_call.1} parent=11 // pred_check_branch
          %491 = sbr.rel (%p489) target = $region52
        $region51: #{tpu_custom_call.1} parent=11 // pred_region
          _
        $region52: #{tpu_custom_call.1} parent=11 // pred_fallthru
          _
        // Predicated region
        $region53: #{tpu_custom_call.1} parent=11 // pred_check
          %p492 = pneg %p316
        $region54: #{tpu_custom_call.1} parent=11 // pred_check_branch
          %494 = sbr.rel (%p492) target = $region56
        $region55: #{tpu_custom_call.1} parent=11 // pred_region
          _
        $region56: #{tpu_custom_call.1} parent=11 // pred_fallthru
          _
        // Predicated region
        $region57: #{tpu_custom_call.1} parent=11 // pred_check
          %p495 = pneg %p337
        $region58: #{tpu_custom_call.1} parent=11 // pred_check_branch
          %497 = sbr.rel (%p495) target = $region60
        $region59: #{tpu_custom_call.1} parent=11 // pred_region
          _
        $region60: #{tpu_custom_call.1} parent=11 // pred_fallthru
          _
        // Predicated region
        $region61: #{tpu_custom_call.1} parent=11 // pred_check
          %p498 = pneg %p358
        $region62: #{tpu_custom_call.1} parent=11 // pred_check_branch
          %500 = sbr.rel (%p498) target = $region64
        $region63: #{tpu_custom_call.1} parent=11 // pred_region
          _
        $region64: #{tpu_custom_call.1} parent=11 // pred_fallthru
          _
        // Predicated region
        $region65: #{tpu_custom_call.1} parent=11 // pred_check
          %p501 = pneg %p379
        $region66: #{tpu_custom_call.1} parent=11 // pred_check_branch
          %503 = sbr.rel (%p501) target = $region68
        $region67: #{tpu_custom_call.1} parent=11 // pred_region
          _
        $region68: #{tpu_custom_call.1} parent=11 // pred_fallthru
          _
        // Predicated region
        $region69: #{tpu_custom_call.1} parent=11 // pred_check
          %p504 = pneg %p400
        $region70: #{tpu_custom_call.1} parent=11 // pred_check_branch
          %506 = sbr.rel (%p504) target = $region72
        $region71: #{tpu_custom_call.1} parent=11 // pred_region
          _
        $region72: #{tpu_custom_call.1} parent=11 // pred_fallthru
          _
        // Predicated region
        $region73: #{tpu_custom_call.1} parent=11 // pred_check
          %p507 = pneg %p421
        $region74: #{tpu_custom_call.1} parent=11 // pred_check_branch
          %509 = sbr.rel (%p507) target = $region76
        $region75: #{tpu_custom_call.1} parent=11 // pred_region
          _
        $region76: #{tpu_custom_call.1} parent=11 // pred_fallthru
          _
      $region12: #{tpu_custom_call.1} parent=5 // pred_fallthru
        _
      %p510 = scmp.lt.s32.totalorder %s33, 2
      // Predicated region
      $region77: #{tpu_custom_call.1} parent=5 // pred_check
        %p511 = pneg %p510
      $region78: #{tpu_custom_call.1} parent=5 // pred_check_branch
        %513 = sbr.rel (%p511) target = $region80
      $region79: #{tpu_custom_call.1} parent=5 // pred_region
        // Predicated region
        $region81: #{tpu_custom_call.1} parent=79 // pred_check
          %p514 = pneg %p53
        $region82: #{tpu_custom_call.1} parent=79 // pred_check_branch
          %516 = sbr.rel (%p514) target = $region84
        $region83: #{tpu_custom_call.1} parent=79 // pred_region
          %s517 = sand.u32 %s43, 1
          %s518 = scalar_lea.sflag [#allocation3], %s517
          %s519 = sand.u32 %s43, 1
          %s520 = smul.addr %s519, 4
          %s521 = scalar_lea.vmem [#allocation2], %s520
          %s523 = ssub.s32 64, 64
          %524 = vsyncadd %s518, %s523
          %s525 = smul.addr %s33, 64
          %s526 = scalar_lea.hbm %s0, %s525
          %s528 = sshll.u32 %s521, 4
          %s529 = int_to_ptr.vmem [resolvable:$true] %s528
          %531 = dma.hbm_to_vmem [thread:$0]  %s526, 64, %s529, %s518
        $region84: #{tpu_custom_call.1} parent=79 // pred_fallthru
          _
        // Predicated region
        $region85: #{tpu_custom_call.1} parent=79 // pred_check
          %p532 = pneg %p79
        $region86: #{tpu_custom_call.1} parent=79 // pred_check_branch
          %534 = sbr.rel (%p532) target = $region88
        $region87: #{tpu_custom_call.1} parent=79 // pred_region
          %s535 = sand.u32 %s69, 1
          %s536 = scalar_lea.sflag [#allocation6], %s535
          %s537 = sand.u32 %s69, 1
          %s538 = smul.addr %s537, 4
          %s539 = scalar_lea.vmem [#allocation5], %s538
          %s541 = ssub.s32 64, 64
          %542 = vsyncadd %s536, %s541
          %s543 = smul.addr %s33, 64
          %s544 = scalar_lea.hbm %s1, %s543
          %s546 = sshll.u32 %s539, 4
          %s547 = int_to_ptr.vmem [resolvable:$true] %s546
          %549 = dma.hbm_to_vmem [thread:$0]  %s544, 64, %s547, %s536
        $region88: #{tpu_custom_call.1} parent=79 // pred_fallthru
          _
      $region80: #{tpu_custom_call.1} parent=5 // pred_fallthru
        _
      %p550 = scmp.le.s32.totalorder 1, %s33
      %p551 = scmp.lt.s32.totalorder %s33, 3
      %p552 = pnand %p550, %p551
      %p553 = pneg %p552
      // Predicated region
      $region89: #{tpu_custom_call.1} parent=5 // pred_check
        _
      $region90: #{tpu_custom_call.1} parent=5 // pred_check_branch
        %555 = sbr.rel (%p552) target = $region92
      $region91: #{tpu_custom_call.1} parent=5 // pred_region
        %s556 = ssub.s32 %s33, 1
        %s557 = sand.u32 %s46, 1
        %s558 = scalar_lea.sflag [#allocation3], %s557
        %s559 = sand.u32 %s46, 1
        %s560 = smul.addr %s559, 4
        %s561 = scalar_lea.vmem [#allocation2], %s560
        // Predicated region
        $region93: #{tpu_custom_call.1} parent=91 // pred_check
          %p562 = pneg %p59
        $region94: #{tpu_custom_call.1} parent=91 // pred_check_branch
          %564 = sbr.rel (%p562) target = $region96
        $region95: #{tpu_custom_call.1} parent=91 // pred_region
          %565 = dma.done %s558, 64
        $region96: #{tpu_custom_call.1} parent=91 // pred_fallthru
          _
        %s566 = sand.u32 %s72, 1
        %s567 = scalar_lea.sflag [#allocation6], %s566
        %s568 = sand.u32 %s72, 1
        %s569 = smul.addr %s568, 4
        %s570 = scalar_lea.vmem [#allocation5], %s569
        // Predicated region
        $region97: #{tpu_custom_call.1} parent=91 // pred_check
          %p571 = pneg %p85
        $region98: #{tpu_custom_call.1} parent=91 // pred_check_branch
          %573 = sbr.rel (%p571) target = $region100
        $region99: #{tpu_custom_call.1} parent=91 // pred_region
          %574 = dma.done %s567, 64
        $region100: #{tpu_custom_call.1} parent=91 // pred_fallthru
          _
        %s575 = sand.u32 %s46, 1
        %s576 = scalar_lea.sflag [#allocation3], %s575
        %s577 = sand.u32 %s46, 1
        %s578 = smul.addr %s577, 4
        %s579 = scalar_lea.vmem [#allocation2], %s578
        %p580 = pneg %p59
        %p581 = pneg %p56
        %s582 = sand.u32 %s72, 1
        %s583 = scalar_lea.sflag [#allocation6], %s582
        %s584 = sand.u32 %s72, 1
        %s585 = smul.addr %s584, 4
        %s586 = scalar_lea.vmem [#allocation5], %s585
        %p587 = pneg %p85
        %p588 = pneg %p82
        %p589 = pneg %p106
        %p590 = pneg %p103
        %p591 = pneg %p127
        %p592 = pneg %p124
        %p593 = pneg %p148
        %p594 = pneg %p145
        %p595 = pneg %p169
        %p596 = pneg %p166
        %p597 = pneg %p190
        %p598 = pneg %p187
        %p599 = pneg %p211
        %p600 = pneg %p208
        %p601 = pneg %p232
        %p602 = pneg %p229
        %p603 = pneg %p253
        %p604 = pneg %p250
        %p605 = pneg %p274
        %p606 = pneg %p271
        %p607 = pneg %p295
        %p608 = pneg %p292
        %p609 = pneg %p316
        %p610 = pneg %p313
        %p611 = pneg %p337
        %p612 = pneg %p334
        %p613 = pneg %p358
        %p614 = pneg %p355
        %p615 = pneg %p379
        %p616 = pneg %p376
        %p617 = pneg %p400
        %p618 = pneg %p397
        %p619 = pneg %p421
        %p620 = pneg %p418
        %p621 = pneg %p447
        %p622 = pneg %p444
        %s623 = sand.u32 %s434, 1
        %s624 = scalar_lea.sflag [#allocation4], %s623
        %s625 = sand.u32 %s434, 1
        %s626 = smul.addr %s625, 8
        %s627 = scalar_lea.vmem [#allocation7], %s626
        %v629 = vld [vmem:[%s561] sm:$0xf]
        %v630 = vld [vmem:[%s570] sm:$0xf]
        %v631 = vld [vmem:[%s2] sm:$0xf]
        %v632 = vld [vmem:[%s2 + $0x4] sm:$0xf]
        %v633 = vld [vmem:[%s2 + $0x8] sm:$0xf]
        %v634 = vld [vmem:[%s2 + $0xc] sm:$0xf]
        %v635 = vld [vmem:[%s3] sm:$0xf]
        %v636 = vld [vmem:[%s3 + $0x4] sm:$0xf]
        %v637 = vld [vmem:[%s3 + $0x8] sm:$0xf]
        %v638 = vld [vmem:[%s3 + $0xc] sm:$0xf]
        %v643 = vunpack.c.l.b16 %v635
        %v644 = vunpack.c.l.b16 %v636
        %v645 = vunpack.c.l.b16 %v637
        %v646 = vunpack.c.l.b16 %v638
        %v647 = vpack.c.b16 %v644, %v643
        %v648 = vpack.c.b16 %v646, %v645
        %vm651 = vcmask 261120
        %v653 = vsel %vm651, %v630, 0
        %655 = vmatprep.subr.bf16.mxu0 0
        %656 = vmatpush1.bf16.msra.mxu0 %v647
        %657 = vmatprep.subr.bf16.mxu0 0
        %658 = vmatpush1.bf16.msra.mxu0 %v648
        %659 = vmatprep.subr.bf16.mxu0 0
        %660 = vmatpush1.bf16.msra.mxu0 0
        %661 = vmatprep.subr.bf16.mxu0 0
        %662 = vmatpush1.bf16.msra.mxu0 0
        %663 = vmatprep.subr.bf16.mxu0 0
        %664 = vmatpush1.bf16.msra.mxu0 0
        %665 = vmatprep.subr.bf16.mxu0 0
        %666 = vmatpush1.bf16.msra.mxu0 0
        %667 = vmatprep.subr.bf16.mxu0 0
        %668 = vmatpush1.bf16.msra.mxu0 0
        %669 = vmatprep.subr.bf16.mxu0 0
        %670 = vmatpush1.bf16.msra.mxu0 0
        %671 = vmatprep.subr.bf16.mxu0 0
        %672 = vmatpush1.bf16.msra.mxu0 0
        %673 = vmatprep.subr.bf16.mxu0 0
        %674 = vmatpush1.bf16.msra.mxu0 0
        %675 = vmatprep.subr.bf16.mxu0 0
        %676 = vmatpush1.bf16.msra.mxu0 0
        %677 = vmatprep.subr.bf16.mxu0 0
        %678 = vmatpush1.bf16.msra.mxu0 0
        %679 = vmatprep.subr.bf16.mxu0 0
        %680 = vmatpush1.bf16.msra.mxu0 0
        %681 = vmatprep.subr.bf16.mxu0 0
        %682 = vmatpush1.bf16.msra.mxu0 0
        %683 = vmatprep.subr.bf16.mxu0 0
        %684 = vmatpush1.bf16.msra.mxu0 0
        %685 = vmatprep.subr.bf16.mxu0 0
        %686 = vmatpush1.bf16.msra.mxu0 0
        %687 = vmatprep.mubr.bf16.mxu0 0
        %688 = vmatmul.mubr.bf16.gmra.mrb[0].mxu0 %v653
        %v689 = vpop.f32.mrb[0].mxu0
        %v690 = vadd.f32 0.0, %v689
        %v691 = vpop.f32.mrb[0].mxu0
        %v692 = vpop.f32.mrb[0].mxu0
        %v693 = vpop.f32.mrb[0].mxu0
        %694 = vdwg.mxu0
        %v699 = vunpack.c.l.b16 %v631
        %v700 = vunpack.c.l.b16 %v632
        %v701 = vunpack.c.l.b16 %v633
        %v702 = vunpack.c.l.b16 %v634
        %v703 = vpack.c.b16 %v700, %v699
        %v704 = vpack.c.b16 %v702, %v701
        %v708 = vsel %vm651, %v629, 0
        %710 = vmatprep.subr.bf16.mxu0 0
        %711 = vmatpush1.bf16.msra.mxu0 %v703
        %712 = vmatprep.subr.bf16.mxu0 0
        %713 = vmatpush1.bf16.msra.mxu0 %v704
        %714 = vmatprep.subr.bf16.mxu0 0
        %715 = vmatpush1.bf16.msra.mxu0 0
        %716 = vmatprep.subr.bf16.mxu0 0
        %717 = vmatpush1.bf16.msra.mxu0 0
        %718 = vmatprep.subr.bf16.mxu0 0
        %719 = vmatpush1.bf16.msra.mxu0 0
        %720 = vmatprep.subr.bf16.mxu0 0
        %721 = vmatpush1.bf16.msra.mxu0 0
        %722 = vmatprep.subr.bf16.mxu0 0
        %723 = vmatpush1.bf16.msra.mxu0 0
        %724 = vmatprep.subr.bf16.mxu0 0
        %725 = vmatpush1.bf16.msra.mxu0 0
        %726 = vmatprep.subr.bf16.mxu0 0
        %727 = vmatpush1.bf16.msra.mxu0 0
        %728 = vmatprep.subr.bf16.mxu0 0
        %729 = vmatpush1.bf16.msra.mxu0 0
        %730 = vmatprep.subr.bf16.mxu0 0
        %731 = vmatpush1.bf16.msra.mxu0 0
        %732 = vmatprep.subr.bf16.mxu0 0
        %733 = vmatpush1.bf16.msra.mxu0 0
        %734 = vmatprep.subr.bf16.mxu0 0
        %735 = vmatpush1.bf16.msra.mxu0 0
        %736 = vmatprep.subr.bf16.mxu0 0
        %737 = vmatpush1.bf16.msra.mxu0 0
        %738 = vmatprep.subr.bf16.mxu0 0
        %739 = vmatpush1.bf16.msra.mxu0 0
        %740 = vmatprep.subr.bf16.mxu0 0
        %741 = vmatpush1.bf16.msra.mxu0 0
        %742 = vmatprep.mubr.bf16.mxu0 0
        %743 = vmatmul.mubr.bf16.gmra.mrb[0].mxu0 %v708
        %v744 = vpop.f32.mrb[0].mxu0
        %v745 = vadd.f32 %v690, %v744
        %v746 = vpop.f32.mrb[0].mxu0
        %v747 = vpop.f32.mrb[0].mxu0
        %v748 = vpop.f32.mrb[0].mxu0
        %749 = vdwg.mxu0
        %v750 = vld [vmem:[%s4] sm:$0x1]
        %v752 = vlaneseq
        %v753 = vshrl.u32 %v752, 7
        %v754 = vsub.s32 0, %v753
        %v755 = vrot.slane %v750, %v754
        %v757 = vadd.f32 %v745, %v755
        %v758 = vld [vmem:[%s5] sm:$0x1]
        %v759 = vld [vmem:[%s6] sm:$0x1]
        %v760 = vsel %vm651, %v757, 0.0
        %761 = vadd.xlane.f32.xlu0 %v760
        %v762 = vpop.xlane.xlu0 %761
        %v763 = vrcp.pop 32.0
        %v764 = vmul.f32 %v762, %v763
        %v765 = vsub.f32 %v757, %v764
        %v766 = vmul.f32 %v765, %v765
        %v767 = vsel %vm651, %v766, 0.0
        %768 = vadd.xlane.f32.xlu0 %v767
        %v769 = vpop.xlane.xlu0 %768
        %v770 = vmul.f32 %v769, %v763
        %v771 = vadd.f32 %v770, 1e-05
        %v772 = vrsqrt.pop %v771
        %v773 = vmul.f32 %v765, %v772
        %v775 = vlaneseq
        %v776 = vshrl.u32 %v775, 7
        %v777 = vsub.s32 0, %v776
        %v778 = vrot.slane %v758, %v777
        %v780 = vmul.f32 %v773, %v778
        %v782 = vlaneseq
        %v783 = vshrl.u32 %v782, 7
        %v784 = vsub.s32 0, %v783
        %v785 = vrot.slane %v759, %v784
        %v787 = vadd.f32 %v780, %v785
        %v788 = vpack.c.bf16 %v787, %v787
        %v789 = vld [vmem:[%s7] sm:$0xf]
        %v790 = vld [vmem:[%s7 + $0x4] sm:$0xf]
        %v791 = vld [vmem:[%s7 + $0x8] sm:$0xf]
        %v792 = vld [vmem:[%s7 + $0xc] sm:$0xf]
        %v797 = vunpack.c.l.b16 %v789
        %v798 = vunpack.c.l.b16 %v790
        %v799 = vunpack.c.l.b16 %v791
        %v800 = vunpack.c.l.b16 %v792
        %v801 = vpack.c.b16 %v798, %v797
        %v802 = vpack.c.b16 %v800, %v799
        %v806 = vsel %vm651, %v788, 0
        %808 = vmatprep.subr.bf16.mxu0 0
        %809 = vmatpush1.bf16.msra.mxu0 %v801
        %810 = vmatprep.subr.bf16.mxu0 0
        %811 = vmatpush1.bf16.msra.mxu0 %v802
        %812 = vmatprep.subr.bf16.mxu0 0
        %813 = vmatpush1.bf16.msra.mxu0 0
        %814 = vmatprep.subr.bf16.mxu0 0
        %815 = vmatpush1.bf16.msra.mxu0 0
        %816 = vmatprep.subr.bf16.mxu0 0
        %817 = vmatpush1.bf16.msra.mxu0 0
        %818 = vmatprep.subr.bf16.mxu0 0
        %819 = vmatpush1.bf16.msra.mxu0 0
        %820 = vmatprep.subr.bf16.mxu0 0
        %821 = vmatpush1.bf16.msra.mxu0 0
        %822 = vmatprep.subr.bf16.mxu0 0
        %823 = vmatpush1.bf16.msra.mxu0 0
        %824 = vmatprep.subr.bf16.mxu0 0
        %825 = vmatpush1.bf16.msra.mxu0 0
        %826 = vmatprep.subr.bf16.mxu0 0
        %827 = vmatpush1.bf16.msra.mxu0 0
        %828 = vmatprep.subr.bf16.mxu0 0
        %829 = vmatpush1.bf16.msra.mxu0 0
        %830 = vmatprep.subr.bf16.mxu0 0
        %831 = vmatpush1.bf16.msra.mxu0 0
        %832 = vmatprep.subr.bf16.mxu0 0
        %833 = vmatpush1.bf16.msra.mxu0 0
        %834 = vmatprep.subr.bf16.mxu0 0
        %835 = vmatpush1.bf16.msra.mxu0 0
        %836 = vmatprep.subr.bf16.mxu0 0
        %837 = vmatpush1.bf16.msra.mxu0 0
        %838 = vmatprep.subr.bf16.mxu0 0
        %839 = vmatpush1.bf16.msra.mxu0 0
        %840 = vmatprep.mubr.bf16.mxu0 0
        %841 = vmatmul.mubr.bf16.gmra.mrb[0].mxu0 %v806
        %v842 = vpop.f32.mrb[0].mxu0
        %v843 = vadd.f32 0.0, %v842
        %v844 = vpop.f32.mrb[0].mxu0
        %v845 = vpop.f32.mrb[0].mxu0
        %v846 = vpop.f32.mrb[0].mxu0
        %847 = vdwg.mxu0
        %v848 = vpack.c.bf16 %v843, %v843
        %850 = vrot.lane.b32.xlu0 %v848, 120
        %v851 = vpop.permute.xlu0 %850
        %852 = vrot.lane.b32.xlu0 %v848, 112
        %v853 = vpop.permute.xlu0 %852
        %854 = vrot.lane.b32.xlu0 %v848, 104
        %v855 = vpop.permute.xlu0 %854
        %v857 = vunpack.c.l.s4 1983009808
        %v858 = vunpack.c.0.s8 %v857
        %v859 = vlaneseq
        %v860 = vshrl.u32 %v859, 7
        %v861 = vsub.s32 %v858, %v860
        %v862 = vrot.slane %v848, %v861
        %v865 = vunpack.c.l.s4 1983009808
        %v866 = vunpack.c.0.s8 %v865
        %v867 = vlaneseq
        %v868 = vshrl.u32 %v867, 7
        %v869 = vsub.s32 %v866, %v868
        %v870 = vrot.slane %v853, %v869
        %v871 = vcombine.low %v862, %v870
        %v872 = vcombine.high %v862, %v870
        %v874 = vunpack.c.l.s4 1934713408
        %v875 = vunpack.c.0.s8 %v874
        %v876 = vlaneseq
        %v877 = vshrl.u32 %v876, 7
        %v878 = vsub.s32 %v875, %v877
        %v879 = vrot.slane %v871, %v878
        %v881 = vunpack.c.l.s4 1934713408
        %v882 = vunpack.c.0.s8 %v881
        %v883 = vlaneseq
        %v884 = vshrl.u32 %v883, 7
        %v885 = vsub.s32 %v882, %v884
        %v886 = vrot.slane %v872, %v885
        %v887 = vcombine.high %v879, 0
        %v888 = vcombine.high %v886, 0
        %v891 = vunpack.c.l.s4 1983009808
        %v892 = vunpack.c.0.s8 %v891
        %v893 = vlaneseq
        %v894 = vshrl.u32 %v893, 7
        %v895 = vsub.s32 %v892, %v894
        %v896 = vrot.slane %v851, %v895
        %v899 = vunpack.c.l.s4 1983009808
        %v900 = vunpack.c.0.s8 %v899
        %v901 = vlaneseq
        %v902 = vshrl.u32 %v901, 7
        %v903 = vsub.s32 %v900, %v902
        %v904 = vrot.slane %v855, %v903
        %v905 = vcombine.low %v896, %v904
        %v906 = vcombine.high %v896, %v904
        %v908 = vunpack.c.l.s4 1934713408
        %v909 = vunpack.c.0.s8 %v908
        %v910 = vlaneseq
        %v911 = vshrl.u32 %v910, 7
        %v912 = vsub.s32 %v909, %v911
        %v913 = vrot.slane %v905, %v912
        %v915 = vunpack.c.l.s4 1934713408
        %v916 = vunpack.c.0.s8 %v915
        %v917 = vlaneseq
        %v918 = vshrl.u32 %v917, 7
        %v919 = vsub.s32 %v916, %v918
        %v920 = vrot.slane %v906, %v919
        %v921 = vcombine.high %v913, 0
        %v922 = vcombine.high %v920, 0
        %v925 = vpack.i.b16 %v913, %v879
        %v927 = vshrl.u32 %v879, 16
        %v928 = vshrl.u32 %v913, 16
        %v929 = vpack.i.b16 %v928, %v927
        %v933 = vpack.i.b16 %v921, %v887
        %v935 = vshrl.u32 %v887, 16
        %v936 = vshrl.u32 %v921, 16
        %v937 = vpack.i.b16 %v936, %v935
        %v941 = vpack.i.b16 %v920, %v886
        %v943 = vshrl.u32 %v886, 16
        %v944 = vshrl.u32 %v920, 16
        %v945 = vpack.i.b16 %v944, %v943
        %v949 = vpack.i.b16 %v922, %v888
        %v951 = vshrl.u32 %v888, 16
        %v952 = vshrl.u32 %v922, 16
        %v953 = vpack.i.b16 %v952, %v951
        %v955 = vcombine.low %v925, %v941
        %v957 = vunpack.c.l.s4 1983009808
        %v958 = vunpack.c.0.s8 %v957
        %v959 = vlaneseq
        %v960 = vshrl.u32 %v959, 7
        %v961 = vsub.s32 %v958, %v960
        %v962 = vrot.slane %v955, %v961
        %v963 = vcombine.low %v933, %v949
        %v965 = vunpack.c.l.s4 1983009808
        %v966 = vunpack.c.0.s8 %v965
        %v967 = vlaneseq
        %v968 = vshrl.u32 %v967, 7
        %v969 = vsub.s32 %v966, %v968
        %v970 = vrot.slane %v963, %v969
        %v971 = vcombine.low %v962, %v970
        %v973 = vunpack.c.l.s4 1934713408
        %v974 = vunpack.c.0.s8 %v973
        %v975 = vlaneseq
        %v976 = vshrl.u32 %v975, 7
        %v977 = vsub.s32 %v974, %v976
        %v978 = vrot.slane %v971, %v977
        %v979 = vcombine.high %v978, 0
        %v980 = vcombine.low %v929, %v945
        %v982 = vunpack.c.l.s4 1983009808
        %v983 = vunpack.c.0.s8 %v982
        %v984 = vlaneseq
        %v985 = vshrl.u32 %v984, 7
        %v986 = vsub.s32 %v983, %v985
        %v987 = vrot.slane %v980, %v986
        %v988 = vcombine.low %v937, %v953
        %v990 = vunpack.c.l.s4 1983009808
        %v991 = vunpack.c.0.s8 %v990
        %v992 = vlaneseq
        %v993 = vshrl.u32 %v992, 7
        %v994 = vsub.s32 %v991, %v993
        %v995 = vrot.slane %v988, %v994
        %v996 = vcombine.low %v987, %v995
        %v998 = vunpack.c.l.s4 1934713408
        %v999 = vunpack.c.0.s8 %v998
        %v1000 = vlaneseq
        %v1001 = vshrl.u32 %v1000, 7
        %v1002 = vsub.s32 %v999, %v1001
        %v1003 = vrot.slane %v996, %v1002
        %v1004 = vcombine.high %v1003, 0
        %v1007 = vpack.i.b16 %v1003, %v978
        %v1008 = vshrl.u32 %v978, 16
        %v1009 = vshrl.u32 %v1003, 16
        %v1010 = vpack.i.b16 %v1009, %v1008
        %v1013 = vpack.i.b16 %v1004, %v979
        %v1014 = vshrl.u32 %v979, 16
        %v1015 = vshrl.u32 %v1004, 16
        %v1016 = vpack.i.b16 %v1015, %v1014
        %1017 = vrot.lane.b32.xlu0 %v848, 96
        %v1018 = vpop.permute.xlu0 %1017
        %1019 = vrot.lane.b32.xlu0 %v851, 96
        %v1020 = vpop.permute.xlu0 %1019
        %1021 = vrot.lane.b32.xlu0 %v853, 96
        %v1022 = vpop.permute.xlu0 %1021
        %1023 = vrot.lane.b32.xlu0 %v855, 96
        %v1024 = vpop.permute.xlu0 %1023
        %v1027 = vunpack.c.l.s4 1983009808
        %v1028 = vunpack.c.0.s8 %v1027
        %v1029 = vlaneseq
        %v1030 = vshrl.u32 %v1029, 7
        %v1031 = vsub.s32 %v1028, %v1030
        %v1032 = vrot.slane %v1018, %v1031
        %v1035 = vunpack.c.l.s4 1983009808
        %v1036 = vunpack.c.0.s8 %v1035
        %v1037 = vlaneseq
        %v1038 = vshrl.u32 %v1037, 7
        %v1039 = vsub.s32 %v1036, %v1038
        %v1040 = vrot.slane %v1022, %v1039
        %v1041 = vcombine.low %v1032, %v1040
        %v1042 = vcombine.high %v1032, %v1040
        %v1044 = vunpack.c.l.s4 1934713408
        %v1045 = vunpack.c.0.s8 %v1044
        %v1046 = vlaneseq
        %v1047 = vshrl.u32 %v1046, 7
        %v1048 = vsub.s32 %v1045, %v1047
        %v1049 = vrot.slane %v1041, %v1048
        %v1051 = vunpack.c.l.s4 1934713408
        %v1052 = vunpack.c.0.s8 %v1051
        %v1053 = vlaneseq
        %v1054 = vshrl.u32 %v1053, 7
        %v1055 = vsub.s32 %v1052, %v1054
        %v1056 = vrot.slane %v1042, %v1055
        %v1057 = vcombine.high %v1049, 0
        %v1058 = vcombine.high %v1056, 0
        %v1061 = vunpack.c.l.s4 1983009808
        %v1062 = vunpack.c.0.s8 %v1061
        %v1063 = vlaneseq
        %v1064 = vshrl.u32 %v1063, 7
        %v1065 = vsub.s32 %v1062, %v1064
        %v1066 = vrot.slane %v1020, %v1065
        %v1069 = vunpack.c.l.s4 1983009808
        %v1070 = vunpack.c.0.s8 %v1069
        %v1071 = vlaneseq
        %v1072 = vshrl.u32 %v1071, 7
        %v1073 = vsub.s32 %v1070, %v1072
        %v1074 = vrot.slane %v1024, %v1073
        %v1075 = vcombine.low %v1066, %v1074
        %v1076 = vcombine.high %v1066, %v1074
        %v1078 = vunpack.c.l.s4 1934713408
        %v1079 = vunpack.c.0.s8 %v1078
        %v1080 = vlaneseq
        %v1081 = vshrl.u32 %v1080, 7
        %v1082 = vsub.s32 %v1079, %v1081
        %v1083 = vrot.slane %v1075, %v1082
        %v1085 = vunpack.c.l.s4 1934713408
        %v1086 = vunpack.c.0.s8 %v1085
        %v1087 = vlaneseq
        %v1088 = vshrl.u32 %v1087, 7
        %v1089 = vsub.s32 %v1086, %v1088
        %v1090 = vrot.slane %v1076, %v1089
        %v1091 = vcombine.high %v1083, 0
        %v1092 = vcombine.high %v1090, 0
        %v1095 = vpack.i.b16 %v1083, %v1049
        %v1097 = vshrl.u32 %v1049, 16
        %v1098 = vshrl.u32 %v1083, 16
        %v1099 = vpack.i.b16 %v1098, %v1097
        %v1103 = vpack.i.b16 %v1091, %v1057
        %v1105 = vshrl.u32 %v1057, 16
        %v1106 = vshrl.u32 %v1091, 16
        %v1107 = vpack.i.b16 %v1106, %v1105
        %v1111 = vpack.i.b16 %v1090, %v1056
        %v1113 = vshrl.u32 %v1056, 16
        %v1114 = vshrl.u32 %v1090, 16
        %v1115 = vpack.i.b16 %v1114, %v1113
        %v1119 = vpack.i.b16 %v1092, %v1058
        %v1121 = vshrl.u32 %v1058, 16
        %v1122 = vshrl.u32 %v1092, 16
        %v1123 = vpack.i.b16 %v1122, %v1121
        %v1125 = vcombine.low %v1095, %v1111
        %v1127 = vunpack.c.l.s4 1983009808
        %v1128 = vunpack.c.0.s8 %v1127
        %v1129 = vlaneseq
        %v1130 = vshrl.u32 %v1129, 7
        %v1131 = vsub.s32 %v1128, %v1130
        %v1132 = vrot.slane %v1125, %v1131
        %v1133 = vcombine.low %v1103, %v1119
        %v1135 = vunpack.c.l.s4 1983009808
        %v1136 = vunpack.c.0.s8 %v1135
        %v1137 = vlaneseq
        %v1138 = vshrl.u32 %v1137, 7
        %v1139 = vsub.s32 %v1136, %v1138
        %v1140 = vrot.slane %v1133, %v1139
        %v1141 = vcombine.low %v1132, %v1140
        %v1143 = vunpack.c.l.s4 1934713408
        %v1144 = vunpack.c.0.s8 %v1143
        %v1145 = vlaneseq
        %v1146 = vshrl.u32 %v1145, 7
        %v1147 = vsub.s32 %v1144, %v1146
        %v1148 = vrot.slane %v1141, %v1147
        %v1149 = vcombine.high %v1148, 0
        %v1150 = vcombine.low %v1099, %v1115
        %v1152 = vunpack.c.l.s4 1983009808
        %v1153 = vunpack.c.0.s8 %v1152
        %v1154 = vlaneseq
        %v1155 = vshrl.u32 %v1154, 7
        %v1156 = vsub.s32 %v1153, %v1155
        %v1157 = vrot.slane %v1150, %v1156
        %v1158 = vcombine.low %v1107, %v1123
        %v1160 = vunpack.c.l.s4 1983009808
        %v1161 = vunpack.c.0.s8 %v1160
        %v1162 = vlaneseq
        %v1163 = vshrl.u32 %v1162, 7
        %v1164 = vsub.s32 %v1161, %v1163
        %v1165 = vrot.slane %v1158, %v1164
        %v1166 = vcombine.low %v1157, %v1165
        %v1168 = vunpack.c.l.s4 1934713408
        %v1169 = vunpack.c.0.s8 %v1168
        %v1170 = vlaneseq
        %v1171 = vshrl.u32 %v1170, 7
        %v1172 = vsub.s32 %v1169, %v1171
        %v1173 = vrot.slane %v1166, %v1172
        %v1174 = vcombine.high %v1173, 0
        %v1177 = vpack.i.b16 %v1173, %v1148
        %v1178 = vshrl.u32 %v1148, 16
        %v1179 = vshrl.u32 %v1173, 16
        %v1180 = vpack.i.b16 %v1179, %v1178
        %v1183 = vpack.i.b16 %v1174, %v1149
        %v1184 = vshrl.u32 %v1149, 16
        %v1185 = vshrl.u32 %v1174, 16
        %v1186 = vpack.i.b16 %v1185, %v1184
        %1187 = vrot.lane.b32.xlu0 %v848, 64
        %v1188 = vpop.permute.xlu0 %1187
        %1189 = vrot.lane.b32.xlu0 %v851, 64
        %v1190 = vpop.permute.xlu0 %1189
        %1191 = vrot.lane.b32.xlu0 %v853, 64
        %v1192 = vpop.permute.xlu0 %1191
        %1193 = vrot.lane.b32.xlu0 %v855, 64
        %v1194 = vpop.permute.xlu0 %1193
        %v1197 = vunpack.c.l.s4 1983009808
        %v1198 = vunpack.c.0.s8 %v1197
        %v1199 = vlaneseq
        %v1200 = vshrl.u32 %v1199, 7
        %v1201 = vsub.s32 %v1198, %v1200
        %v1202 = vrot.slane %v1188, %v1201
        %v1205 = vunpack.c.l.s4 1983009808
        %v1206 = vunpack.c.0.s8 %v1205
        %v1207 = vlaneseq
        %v1208 = vshrl.u32 %v1207, 7
        %v1209 = vsub.s32 %v1206, %v1208
        %v1210 = vrot.slane %v1192, %v1209
        %v1211 = vcombine.low %v1202, %v1210
        %v1212 = vcombine.high %v1202, %v1210
        %v1214 = vunpack.c.l.s4 1934713408
        %v1215 = vunpack.c.0.s8 %v1214
        %v1216 = vlaneseq
        %v1217 = vshrl.u32 %v1216, 7
        %v1218 = vsub.s32 %v1215, %v1217
        %v1219 = vrot.slane %v1211, %v1218
        %v1221 = vunpack.c.l.s4 1934713408
        %v1222 = vunpack.c.0.s8 %v1221
        %v1223 = vlaneseq
        %v1224 = vshrl.u32 %v1223, 7
        %v1225 = vsub.s32 %v1222, %v1224
        %v1226 = vrot.slane %v1212, %v1225
        %v1227 = vcombine.high %v1219, 0
        %v1228 = vcombine.high %v1226, 0
        %v1231 = vunpack.c.l.s4 1983009808
        %v1232 = vunpack.c.0.s8 %v1231
        %v1233 = vlaneseq
        %v1234 = vshrl.u32 %v1233, 7
        %v1235 = vsub.s32 %v1232, %v1234
        %v1236 = vrot.slane %v1190, %v1235
        %v1239 = vunpack.c.l.s4 1983009808
        %v1240 = vunpack.c.0.s8 %v1239
        %v1241 = vlaneseq
        %v1242 = vshrl.u32 %v1241, 7
        %v1243 = vsub.s32 %v1240, %v1242
        %v1244 = vrot.slane %v1194, %v1243
        %v1245 = vcombine.low %v1236, %v1244
        %v1246 = vcombine.high %v1236, %v1244
        %v1248 = vunpack.c.l.s4 1934713408
        %v1249 = vunpack.c.0.s8 %v1248
        %v1250 = vlaneseq
        %v1251 = vshrl.u32 %v1250, 7
        %v1252 = vsub.s32 %v1249, %v1251
        %v1253 = vrot.slane %v1245, %v1252
        %v1255 = vunpack.c.l.s4 1934713408
        %v1256 = vunpack.c.0.s8 %v1255
        %v1257 = vlaneseq
        %v1258 = vshrl.u32 %v1257, 7
        %v1259 = vsub.s32 %v1256, %v1258
        %v1260 = vrot.slane %v1246, %v1259
        %v1261 = vcombine.high %v1253, 0
        %v1262 = vcombine.high %v1260, 0
        %v1265 = vpack.i.b16 %v1253, %v1219
        %v1267 = vshrl.u32 %v1219, 16
        %v1268 = vshrl.u32 %v1253, 16
        %v1269 = vpack.i.b16 %v1268, %v1267
        %v1273 = vpack.i.b16 %v1261, %v1227
        %v1275 = vshrl.u32 %v1227, 16
        %v1276 = vshrl.u32 %v1261, 16
        %v1277 = vpack.i.b16 %v1276, %v1275
        %v1281 = vpack.i.b16 %v1260, %v1226
        %v1283 = vshrl.u32 %v1226, 16
        %v1284 = vshrl.u32 %v1260, 16
        %v1285 = vpack.i.b16 %v1284, %v1283
        %v1289 = vpack.i.b16 %v1262, %v1228
        %v1291 = vshrl.u32 %v1228, 16
        %v1292 = vshrl.u32 %v1262, 16
        %v1293 = vpack.i.b16 %v1292, %v1291
        %v1295 = vcombine.low %v1265, %v1281
        %v1297 = vunpack.c.l.s4 1983009808
        %v1298 = vunpack.c.0.s8 %v1297
        %v1299 = vlaneseq
        %v1300 = vshrl.u32 %v1299, 7
        %v1301 = vsub.s32 %v1298, %v1300
        %v1302 = vrot.slane %v1295, %v1301
        %v1303 = vcombine.low %v1273, %v1289
        %v1305 = vunpack.c.l.s4 1983009808
        %v1306 = vunpack.c.0.s8 %v1305
        %v1307 = vlaneseq
        %v1308 = vshrl.u32 %v1307, 7
        %v1309 = vsub.s32 %v1306, %v1308
        %v1310 = vrot.slane %v1303, %v1309
        %v1311 = vcombine.low %v1302, %v1310
        %v1313 = vunpack.c.l.s4 1934713408
        %v1314 = vunpack.c.0.s8 %v1313
        %v1315 = vlaneseq
        %v1316 = vshrl.u32 %v1315, 7
        %v1317 = vsub.s32 %v1314, %v1316
        %v1318 = vrot.slane %v1311, %v1317
        %v1319 = vcombine.high %v1318, 0
        %v1320 = vcombine.low %v1269, %v1285
        %v1322 = vunpack.c.l.s4 1983009808
        %v1323 = vunpack.c.0.s8 %v1322
        %v1324 = vlaneseq
        %v1325 = vshrl.u32 %v1324, 7
        %v1326 = vsub.s32 %v1323, %v1325
        %v1327 = vrot.slane %v1320, %v1326
        %v1328 = vcombine.low %v1277, %v1293
        %v1330 = vunpack.c.l.s4 1983009808
        %v1331 = vunpack.c.0.s8 %v1330
        %v1332 = vlaneseq
        %v1333 = vshrl.u32 %v1332, 7
        %v1334 = vsub.s32 %v1331, %v1333
        %v1335 = vrot.slane %v1328, %v1334
        %v1336 = vcombine.low %v1327, %v1335
        %v1338 = vunpack.c.l.s4 1934713408
        %v1339 = vunpack.c.0.s8 %v1338
        %v1340 = vlaneseq
        %v1341 = vshrl.u32 %v1340, 7
        %v1342 = vsub.s32 %v1339, %v1341
        %v1343 = vrot.slane %v1336, %v1342
        %v1344 = vcombine.high %v1343, 0
        %v1347 = vpack.i.b16 %v1343, %v1318
        %v1348 = vshrl.u32 %v1318, 16
        %v1349 = vshrl.u32 %v1343, 16
        %v1350 = vpack.i.b16 %v1349, %v1348
        %v1353 = vpack.i.b16 %v1344, %v1319
        %v1354 = vshrl.u32 %v1319, 16
        %v1355 = vshrl.u32 %v1344, 16
        %v1356 = vpack.i.b16 %v1355, %v1354
        %vm1357 = vcmask 64512
        %v1359 = vsel %vm1357, %v1007, 0
        %v1362 = vsel %vm1357, %v1177, 0
        %1364 = vmatprep.subr.bf16.mxu0 0
        %1365 = vmatpush1.bf16.xpose.msra.mxu0 %v1362
        %1366 = vmatprep.subr.bf16.mxu0 0
        %1367 = vmatpush1.bf16.xpose.msra.mxu0 0
        %1368 = vmatprep.subr.bf16.mxu0 0
        %1369 = vmatpush1.bf16.xpose.msra.mxu0 0
        %1370 = vmatprep.subr.bf16.mxu0 0
        %1371 = vmatpush1.bf16.xpose.msra.mxu0 0
        %1372 = vmatprep.subr.bf16.mxu0 0
        %1373 = vmatpush1.bf16.xpose.msra.mxu0 0
        %1374 = vmatprep.subr.bf16.mxu0 0
        %1375 = vmatpush1.bf16.xpose.msra.mxu0 0
        %1376 = vmatprep.subr.bf16.mxu0 0
        %1377 = vmatpush1.bf16.xpose.msra.mxu0 0
        %1378 = vmatprep.subr.bf16.mxu0 0
        %1379 = vmatpush1.bf16.xpose.msra.mxu0 0
        %1380 = vmatprep.subr.bf16.mxu0 0
        %1381 = vmatpush1.bf16.xpose.msra.mxu0 0
        %1382 = vmatprep.subr.bf16.mxu0 0
        %1383 = vmatpush1.bf16.xpose.msra.mxu0 0
        %1384 = vmatprep.subr.bf16.mxu0 0
        %1385 = vmatpush1.bf16.xpose.msra.mxu0 0
        %1386 = vmatprep.subr.bf16.mxu0 0
        %1387 = vmatpush1.bf16.xpose.msra.mxu0 0
        %1388 = vmatprep.subr.bf16.mxu0 0
        %1389 = vmatpush1.bf16.xpose.msra.mxu0 0
        %1390 = vmatprep.subr.bf16.mxu0 0
        %1391 = vmatpush1.bf16.xpose.msra.mxu0 0
        %1392 = vmatprep.subr.bf16.mxu0 0
        %1393 = vmatpush1.bf16.xpose.msra.mxu0 0
        %1394 = vmatprep.subr.bf16.mxu0 0
        %1395 = vmatpush1.bf16.xpose.msra.mxu0 0
        %1396 = vmatprep.mubr.bf16.mxu0 0
        %1397 = vmatmul.mubr.bf16.gmra.mrb[0].mxu0 %v1359
        %v1398 = vpop.f32.mrb[0].mxu0
        %v1399 = vadd.f32 0.0, %v1398
        %v1400 = vpop.f32.mrb[0].mxu0
        %v1401 = vpop.f32.mrb[0].mxu0
        %v1402 = vpop.f32.mrb[0].mxu0
        %1403 = vdwg.mxu0
        %v1405 = vsel %vm1357, %v1010, 0
        %v1408 = vsel %vm1357, %v1180, 0
        %1410 = vmatprep.subr.bf16.mxu0 0
        %1411 = vmatpush1.bf16.xpose.msra.mxu0 %v1408
        %1412 = vmatprep.subr.bf16.mxu0 0
        %1413 = vmatpush1.bf16.xpose.msra.mxu0 0
        %1414 = vmatprep.subr.bf16.mxu0 0
        %1415 = vmatpush1.bf16.xpose.msra.mxu0 0
        %1416 = vmatprep.subr.bf16.mxu0 0
        %1417 = vmatpush1.bf16.xpose.msra.mxu0 0
        %1418 = vmatprep.subr.bf16.mxu0 0
        %1419 = vmatpush1.bf16.xpose.msra.mxu0 0
        %1420 = vmatprep.subr.bf16.mxu0 0
        %1421 = vmatpush1.bf16.xpose.msra.mxu0 0
        %1422 = vmatprep.subr.bf16.mxu0 0
        %1423 = vmatpush1.bf16.xpose.msra.mxu0 0
        %1424 = vmatprep.subr.bf16.mxu0 0
        %1425 = vmatpush1.bf16.xpose.msra.mxu0 0
        %1426 = vmatprep.subr.bf16.mxu0 0
        %1427 = vmatpush1.bf16.xpose.msra.mxu0 0
        %1428 = vmatprep.subr.bf16.mxu0 0
        %1429 = vmatpush1.bf16.xpose.msra.mxu0 0
        %1430 = vmatprep.subr.bf16.mxu0 0
        %1431 = vmatpush1.bf16.xpose.msra.mxu0 0
        %1432 = vmatprep.subr.bf16.mxu0 0
        %1433 = vmatpush1.bf16.xpose.msra.mxu0 0
        %1434 = vmatprep.subr.bf16.mxu0 0
        %1435 = vmatpush1.bf16.xpose.msra.mxu0 0
        %1436 = vmatprep.subr.bf16.mxu0 0
        %1437 = vmatpush1.bf16.xpose.msra.mxu0 0
        %1438 = vmatprep.subr.bf16.mxu0 0
        %1439 = vmatpush1.bf16.xpose.msra.mxu0 0
        %1440 = vmatprep.subr.bf16.mxu0 0
        %1441 = vmatpush1.bf16.xpose.msra.mxu0 0
        %1442 = vmatprep.mubr.bf16.mxu0 0
        %1443 = vmatmul.mubr.bf16.gmra.mrb[0].mxu0 %v1405
        %v1444 = vpop.f32.mrb[0].mxu0
        %v1445 = vadd.f32 0.0, %v1444
        %v1446 = vpop.f32.mrb[0].mxu0
        %v1447 = vpop.f32.mrb[0].mxu0
        %v1448 = vpop.f32.mrb[0].mxu0
        %1449 = vdwg.mxu0
        %v1451 = vsel %vm1357, %v1013, 0
        %v1454 = vsel %vm1357, %v1183, 0
        %1456 = vmatprep.subr.bf16.mxu0 0
        %1457 = vmatpush1.bf16.xpose.msra.mxu0 %v1454
        %1458 = vmatprep.subr.bf16.mxu0 0
        %1459 = vmatpush1.bf16.xpose.msra.mxu0 0
        %1460 = vmatprep.subr.bf16.mxu0 0
        %1461 = vmatpush1.bf16.xpose.msra.mxu0 0
        %1462 = vmatprep.subr.bf16.mxu0 0
        %1463 = vmatpush1.bf16.xpose.msra.mxu0 0
        %1464 = vmatprep.subr.bf16.mxu0 0
        %1465 = vmatpush1.bf16.xpose.msra.mxu0 0
        %1466 = vmatprep.subr.bf16.mxu0 0
        %1467 = vmatpush1.bf16.xpose.msra.mxu0 0
        %1468 = vmatprep.subr.bf16.mxu0 0
        %1469 = vmatpush1.bf16.xpose.msra.mxu0 0
        %1470 = vmatprep.subr.bf16.mxu0 0
        %1471 = vmatpush1.bf16.xpose.msra.mxu0 0
        %1472 = vmatprep.subr.bf16.mxu0 0
        %1473 = vmatpush1.bf16.xpose.msra.mxu0 0
        %1474 = vmatprep.subr.bf16.mxu0 0
        %1475 = vmatpush1.bf16.xpose.msra.mxu0 0
        %1476 = vmatprep.subr.bf16.mxu0 0
        %1477 = vmatpush1.bf16.xpose.msra.mxu0 0
        %1478 = vmatprep.subr.bf16.mxu0 0
        %1479 = vmatpush1.bf16.xpose.msra.mxu0 0
        %1480 = vmatprep.subr.bf16.mxu0 0
        %1481 = vmatpush1.bf16.xpose.msra.mxu0 0
        %1482 = vmatprep.subr.bf16.mxu0 0
        %1483 = vmatpush1.bf16.xpose.msra.mxu0 0
        %1484 = vmatprep.subr.bf16.mxu0 0
        %1485 = vmatpush1.bf16.xpose.msra.mxu0 0
        %1486 = vmatprep.subr.bf16.mxu0 0
        %1487 = vmatpush1.bf16.xpose.msra.mxu0 0
        %1488 = vmatprep.mubr.bf16.mxu0 0
        %1489 = vmatmul.mubr.bf16.gmra.mrb[0].mxu0 %v1451
        %v1490 = vpop.f32.mrb[0].mxu0
        %v1491 = vadd.f32 0.0, %v1490
        %v1492 = vpop.f32.mrb[0].mxu0
        %v1493 = vpop.f32.mrb[0].mxu0
        %v1494 = vpop.f32.mrb[0].mxu0
        %1495 = vdwg.mxu0
        %v1497 = vsel %vm1357, %v1016, 0
        %v1500 = vsel %vm1357, %v1186, 0
        %1502 = vmatprep.subr.bf16.mxu0 0
        %1503 = vmatpush1.bf16.xpose.msra.mxu0 %v1500
        %1504 = vmatprep.subr.bf16.mxu0 0
        %1505 = vmatpush1.bf16.xpose.msra.mxu0 0
        %1506 = vmatprep.subr.bf16.mxu0 0
        %1507 = vmatpush1.bf16.xpose.msra.mxu0 0
        %1508 = vmatprep.subr.bf16.mxu0 0
        %1509 = vmatpush1.bf16.xpose.msra.mxu0 0
        %1510 = vmatprep.subr.bf16.mxu0 0
        %1511 = vmatpush1.bf16.xpose.msra.mxu0 0
        %1512 = vmatprep.subr.bf16.mxu0 0
        %1513 = vmatpush1.bf16.xpose.msra.mxu0 0
        %1514 = vmatprep.subr.bf16.mxu0 0
        %1515 = vmatpush1.bf16.xpose.msra.mxu0 0
        %1516 = vmatprep.subr.bf16.mxu0 0
        %1517 = vmatpush1.bf16.xpose.msra.mxu0 0
        %1518 = vmatprep.subr.bf16.mxu0 0
        %1519 = vmatpush1.bf16.xpose.msra.mxu0 0
        %1520 = vmatprep.subr.bf16.mxu0 0
        %1521 = vmatpush1.bf16.xpose.msra.mxu0 0
        %1522 = vmatprep.subr.bf16.mxu0 0
        %1523 = vmatpush1.bf16.xpose.msra.mxu0 0
        %1524 = vmatprep.subr.bf16.mxu0 0
        %1525 = vmatpush1.bf16.xpose.msra.mxu0 0
        %1526 = vmatprep.subr.bf16.mxu0 0
        %1527 = vmatpush1.bf16.xpose.msra.mxu0 0
        %1528 = vmatprep.subr.bf16.mxu0 0
        %1529 = vmatpush1.bf16.xpose.msra.mxu0 0
        %1530 = vmatprep.subr.bf16.mxu0 0
        %1531 = vmatpush1.bf16.xpose.msra.mxu0 0
        %1532 = vmatprep.subr.bf16.mxu0 0
        %1533 = vmatpush1.bf16.xpose.msra.mxu0 0
        %1534 = vmatprep.mubr.bf16.mxu0 0
        %1535 = vmatmul.mubr.bf16.gmra.mrb[0].mxu0 %v1497
        %v1536 = vpop.f32.mrb[0].mxu0
        %v1537 = vadd.f32 0.0, %v1536
        %v1538 = vpop.f32.mrb[0].mxu0
        %v1539 = vpop.f32.mrb[0].mxu0
        %v1540 = vpop.f32.mrb[0].mxu0
        %1541 = vdwg.mxu0
        %v1542 = vsel %vm1357, %v1399, -inf
        %1543 = vmax.xlane.f32.xlu0 %v1542
        %v1544 = vpop.xlane.xlu0 %1543
        %v1545 = vsel %vm1357, %v1445, -inf
        %1546 = vmax.xlane.f32.xlu0 %v1545
        %v1547 = vpop.xlane.xlu0 %1546
        %v1548 = vsel %vm1357, %v1491, -inf
        %1549 = vmax.xlane.f32.xlu0 %v1548
        %v1550 = vpop.xlane.xlu0 %1549
        %v1551 = vsel %vm1357, %v1537, -inf
        %1552 = vmax.xlane.f32.xlu0 %v1551
        %v1553 = vpop.xlane.xlu0 %1552
        %v1554 = vsub.f32 %v1399, %v1544
        %v1555 = vsub.f32 %v1445, %v1547
        %v1556 = vsub.f32 %v1491, %v1550
        %v1557 = vsub.f32 %v1537, %v1553
        %v1558 = vmul.f32 %v1554, 1.442695
        %v1559 = vpow.pop %v1558
        %v1560 = vmul.f32 %v1555, 1.442695
        %v1561 = vpow.pop %v1560
        %v1562 = vmul.f32 %v1556, 1.442695
        %v1563 = vpow.pop %v1562
        %v1564 = vmul.f32 %v1557, 1.442695
        %v1565 = vpow.pop %v1564
        %v1566 = vsel %vm1357, %v1559, 0.0
        %1567 = vadd.xlane.f32.xlu0 %v1566
        %v1568 = vpop.xlane.xlu0 %1567
        %v1569 = vsel %vm1357, %v1561, 0.0
        %1570 = vadd.xlane.f32.xlu0 %v1569
        %v1571 = vpop.xlane.xlu0 %1570
        %v1572 = vsel %vm1357, %v1563, 0.0
        %1573 = vadd.xlane.f32.xlu0 %v1572
        %v1574 = vpop.xlane.xlu0 %1573
        %v1575 = vsel %vm1357, %v1565, 0.0
        %1576 = vadd.xlane.f32.xlu0 %v1575
        %v1577 = vpop.xlane.xlu0 %1576
        %v1578 = vrcp.pop %v1568
        %v1579 = vrcp.pop %v1571
        %v1580 = vrcp.pop %v1574
        %v1581 = vrcp.pop %v1577
        %v1582 = vmul.f32 %v1559, %v1578
        %v1583 = vmul.f32 %v1561, %v1579
        %v1584 = vmul.f32 %v1563, %v1580
        %v1585 = vmul.f32 %v1565, %v1581
        %v1586 = vpack.c.bf16 %v1582, %v1582
        %v1587 = vpack.c.bf16 %v1583, %v1583
        %v1588 = vpack.c.bf16 %v1584, %v1584
        %v1589 = vpack.c.bf16 %v1585, %v1585
        %v1591 = vsel %vm1357, %v1586, 0
        %vm1593 = vcmask 1043456
        %v1595 = vsel %vm1593, %v1347, 0
        %1597 = vmatprep.subr.bf16.mxu0 0
        %1598 = vmatpush1.bf16.msra.mxu0 %v1595
        %1599 = vmatprep.subr.bf16.mxu0 0
        %1600 = vmatpush1.bf16.msra.mxu0 0
        %1601 = vmatprep.subr.bf16.mxu0 0
        %1602 = vmatpush1.bf16.msra.mxu0 0
        %1603 = vmatprep.subr.bf16.mxu0 0
        %1604 = vmatpush1.bf16.msra.mxu0 0
        %1605 = vmatprep.subr.bf16.mxu0 0
        %1606 = vmatpush1.bf16.msra.mxu0 0
        %1607 = vmatprep.subr.bf16.mxu0 0
        %1608 = vmatpush1.bf16.msra.mxu0 0
        %1609 = vmatprep.subr.bf16.mxu0 0
        %1610 = vmatpush1.bf16.msra.mxu0 0
        %1611 = vmatprep.subr.bf16.mxu0 0
        %1612 = vmatpush1.bf16.msra.mxu0 0
        %1613 = vmatprep.subr.bf16.mxu0 0
        %1614 = vmatpush1.bf16.msra.mxu0 0
        %1615 = vmatprep.subr.bf16.mxu0 0
        %1616 = vmatpush1.bf16.msra.mxu0 0
        %1617 = vmatprep.subr.bf16.mxu0 0
        %1618 = vmatpush1.bf16.msra.mxu0 0
        %1619 = vmatprep.subr.bf16.mxu0 0
        %1620 = vmatpush1.bf16.msra.mxu0 0
        %1621 = vmatprep.subr.bf16.mxu0 0
        %1622 = vmatpush1.bf16.msra.mxu0 0
        %1623 = vmatprep.subr.bf16.mxu0 0
        %1624 = vmatpush1.bf16.msra.mxu0 0
        %1625 = vmatprep.subr.bf16.mxu0 0
        %1626 = vmatpush1.bf16.msra.mxu0 0
        %1627 = vmatprep.subr.bf16.mxu0 0
        %1628 = vmatpush1.bf16.msra.mxu0 0
        %1629 = vmatprep.mubr.bf16.mxu0 0
        %1630 = vmatmul.mubr.bf16.gmra.mrb[0].mxu0 %v1591
        %v1631 = vpop.f32.mrb[0].mxu0
        %v1632 = vadd.f32 0.0, %v1631
        %v1633 = vpop.f32.mrb[0].mxu0
        %v1634 = vpop.f32.mrb[0].mxu0
        %v1635 = vpop.f32.mrb[0].mxu0
        %1636 = vdwg.mxu0
        %v1638 = vsel %vm1357, %v1587, 0
        %v1641 = vsel %vm1593, %v1350, 0
        %1643 = vmatprep.subr.bf16.mxu0 0
        %1644 = vmatpush1.bf16.msra.mxu0 %v1641
        %1645 = vmatprep.subr.bf16.mxu0 0
        %1646 = vmatpush1.bf16.msra.mxu0 0
        %1647 = vmatprep.subr.bf16.mxu0 0
        %1648 = vmatpush1.bf16.msra.mxu0 0
        %1649 = vmatprep.subr.bf16.mxu0 0
        %1650 = vmatpush1.bf16.msra.mxu0 0
        %1651 = vmatprep.subr.bf16.mxu0 0
        %1652 = vmatpush1.bf16.msra.mxu0 0
        %1653 = vmatprep.subr.bf16.mxu0 0
        %1654 = vmatpush1.bf16.msra.mxu0 0
        %1655 = vmatprep.subr.bf16.mxu0 0
        %1656 = vmatpush1.bf16.msra.mxu0 0
        %1657 = vmatprep.subr.bf16.mxu0 0
        %1658 = vmatpush1.bf16.msra.mxu0 0
        %1659 = vmatprep.subr.bf16.mxu0 0
        %1660 = vmatpush1.bf16.msra.mxu0 0
        %1661 = vmatprep.subr.bf16.mxu0 0
        %1662 = vmatpush1.bf16.msra.mxu0 0
        %1663 = vmatprep.subr.bf16.mxu0 0
        %1664 = vmatpush1.bf16.msra.mxu0 0
        %1665 = vmatprep.subr.bf16.mxu0 0
        %1666 = vmatpush1.bf16.msra.mxu0 0
        %1667 = vmatprep.subr.bf16.mxu0 0
        %1668 = vmatpush1.bf16.msra.mxu0 0
        %1669 = vmatprep.subr.bf16.mxu0 0
        %1670 = vmatpush1.bf16.msra.mxu0 0
        %1671 = vmatprep.subr.bf16.mxu0 0
        %1672 = vmatpush1.bf16.msra.mxu0 0
        %1673 = vmatprep.subr.bf16.mxu0 0
        %1674 = vmatpush1.bf16.msra.mxu0 0
        %1675 = vmatprep.mubr.bf16.mxu0 0
        %1676 = vmatmul.mubr.bf16.gmra.mrb[0].mxu0 %v1638
        %v1677 = vpop.f32.mrb[0].mxu0
        %v1678 = vadd.f32 0.0, %v1677
        %v1679 = vpop.f32.mrb[0].mxu0
        %v1680 = vpop.f32.mrb[0].mxu0
        %v1681 = vpop.f32.mrb[0].mxu0
        %1682 = vdwg.mxu0
        %v1684 = vsel %vm1357, %v1588, 0
        %v1687 = vsel %vm1593, %v1353, 0
        %1689 = vmatprep.subr.bf16.mxu0 0
        %1690 = vmatpush1.bf16.msra.mxu0 %v1687
        %1691 = vmatprep.subr.bf16.mxu0 0
        %1692 = vmatpush1.bf16.msra.mxu0 0
        %1693 = vmatprep.subr.bf16.mxu0 0
        %1694 = vmatpush1.bf16.msra.mxu0 0
        %1695 = vmatprep.subr.bf16.mxu0 0
        %1696 = vmatpush1.bf16.msra.mxu0 0
        %1697 = vmatprep.subr.bf16.mxu0 0
        %1698 = vmatpush1.bf16.msra.mxu0 0
        %1699 = vmatprep.subr.bf16.mxu0 0
        %1700 = vmatpush1.bf16.msra.mxu0 0
        %1701 = vmatprep.subr.bf16.mxu0 0
        %1702 = vmatpush1.bf16.msra.mxu0 0
        %1703 = vmatprep.subr.bf16.mxu0 0
        %1704 = vmatpush1.bf16.msra.mxu0 0
        %1705 = vmatprep.subr.bf16.mxu0 0
        %1706 = vmatpush1.bf16.msra.mxu0 0
        %1707 = vmatprep.subr.bf16.mxu0 0
        %1708 = vmatpush1.bf16.msra.mxu0 0
        %1709 = vmatprep.subr.bf16.mxu0 0
        %1710 = vmatpush1.bf16.msra.mxu0 0
        %1711 = vmatprep.subr.bf16.mxu0 0
        %1712 = vmatpush1.bf16.msra.mxu0 0
        %1713 = vmatprep.subr.bf16.mxu0 0
        %1714 = vmatpush1.bf16.msra.mxu0 0
        %1715 = vmatprep.subr.bf16.mxu0 0
        %1716 = vmatpush1.bf16.msra.mxu0 0
        %1717 = vmatprep.subr.bf16.mxu0 0
        %1718 = vmatpush1.bf16.msra.mxu0 0
        %1719 = vmatprep.subr.bf16.mxu0 0
        %1720 = vmatpush1.bf16.msra.mxu0 0
        %1721 = vmatprep.mubr.bf16.mxu0 0
        %1722 = vmatmul.mubr.bf16.gmra.mrb[0].mxu0 %v1684
        %v1723 = vpop.f32.mrb[0].mxu0
        %v1724 = vadd.f32 0.0, %v1723
        %v1725 = vpop.f32.mrb[0].mxu0
        %v1726 = vpop.f32.mrb[0].mxu0
        %v1727 = vpop.f32.mrb[0].mxu0
        %1728 = vdwg.mxu0
        %v1730 = vsel %vm1357, %v1589, 0
        %v1733 = vsel %vm1593, %v1356, 0
        %1735 = vmatprep.subr.bf16.mxu0 0
        %1736 = vmatpush1.bf16.msra.mxu0 %v1733
        %1737 = vmatprep.subr.bf16.mxu0 0
        %1738 = vmatpush1.bf16.msra.mxu0 0
        %1739 = vmatprep.subr.bf16.mxu0 0
        %1740 = vmatpush1.bf16.msra.mxu0 0
        %1741 = vmatprep.subr.bf16.mxu0 0
        %1742 = vmatpush1.bf16.msra.mxu0 0
        %1743 = vmatprep.subr.bf16.mxu0 0
        %1744 = vmatpush1.bf16.msra.mxu0 0
        %1745 = vmatprep.subr.bf16.mxu0 0
        %1746 = vmatpush1.bf16.msra.mxu0 0
        %1747 = vmatprep.subr.bf16.mxu0 0
        %1748 = vmatpush1.bf16.msra.mxu0 0
        %1749 = vmatprep.subr.bf16.mxu0 0
        %1750 = vmatpush1.bf16.msra.mxu0 0
        %1751 = vmatprep.subr.bf16.mxu0 0
        %1752 = vmatpush1.bf16.msra.mxu0 0
        %1753 = vmatprep.subr.bf16.mxu0 0
        %1754 = vmatpush1.bf16.msra.mxu0 0
        %1755 = vmatprep.subr.bf16.mxu0 0
        %1756 = vmatpush1.bf16.msra.mxu0 0
        %1757 = vmatprep.subr.bf16.mxu0 0
        %1758 = vmatpush1.bf16.msra.mxu0 0
        %1759 = vmatprep.subr.bf16.mxu0 0
        %1760 = vmatpush1.bf16.msra.mxu0 0
        %1761 = vmatprep.subr.bf16.mxu0 0
        %1762 = vmatpush1.bf16.msra.mxu0 0
        %1763 = vmatprep.subr.bf16.mxu0 0
        %1764 = vmatpush1.bf16.msra.mxu0 0
        %1765 = vmatprep.subr.bf16.mxu0 0
        %1766 = vmatpush1.bf16.msra.mxu0 0
        %1767 = vmatprep.mubr.bf16.mxu0 0
        %1768 = vmatmul.mubr.bf16.gmra.mrb[0].mxu0 %v1730
        %v1769 = vpop.f32.mrb[0].mxu0
        %v1770 = vadd.f32 0.0, %v1769
        %v1771 = vpop.f32.mrb[0].mxu0
        %v1772 = vpop.f32.mrb[0].mxu0
        %v1773 = vpop.f32.mrb[0].mxu0
        %1774 = vdwg.mxu0
        %v1775 = vpack.c.bf16 %v1632, %v1632
        %v1777 = vunpack.c.l.s4 1983009808
        %v1778 = vunpack.c.0.s8 %v1777
        %v1779 = vlaneseq
        %v1780 = vshrl.u32 %v1779, 7
        %v1781 = vsub.s32 %v1778, %v1780
        %v1782 = vrot.slane %v1775, %v1781
        %v1783 = vpack.c.bf16 %v1724, %v1724
        %v1785 = vunpack.c.l.s4 1983009808
        %v1786 = vunpack.c.0.s8 %v1785
        %v1787 = vlaneseq
        %v1788 = vshrl.u32 %v1787, 7
        %v1789 = vsub.s32 %v1786, %v1788
        %v1790 = vrot.slane %v1783, %v1789
        %v1791 = vcombine.low %v1782, %v1790
        %v1792 = vcombine.high %v1782, %v1790
        %v1794 = vunpack.c.l.s4 1934713408
        %v1795 = vunpack.c.0.s8 %v1794
        %v1796 = vlaneseq
        %v1797 = vshrl.u32 %v1796, 7
        %v1798 = vsub.s32 %v1795, %v1797
        %v1799 = vrot.slane %v1791, %v1798
        %v1801 = vunpack.c.l.s4 1934713408
        %v1802 = vunpack.c.0.s8 %v1801
        %v1803 = vlaneseq
        %v1804 = vshrl.u32 %v1803, 7
        %v1805 = vsub.s32 %v1802, %v1804
        %v1806 = vrot.slane %v1792, %v1805
        %v1807 = vcombine.high %v1799, 0
        %v1808 = vcombine.high %v1806, 0
        %v1809 = vpack.c.bf16 %v1678, %v1678
        %v1811 = vunpack.c.l.s4 1983009808
        %v1812 = vunpack.c.0.s8 %v1811
        %v1813 = vlaneseq
        %v1814 = vshrl.u32 %v1813, 7
        %v1815 = vsub.s32 %v1812, %v1814
        %v1816 = vrot.slane %v1809, %v1815
        %v1817 = vpack.c.bf16 %v1770, %v1770
        %v1819 = vunpack.c.l.s4 1983009808
        %v1820 = vunpack.c.0.s8 %v1819
        %v1821 = vlaneseq
        %v1822 = vshrl.u32 %v1821, 7
        %v1823 = vsub.s32 %v1820, %v1822
        %v1824 = vrot.slane %v1817, %v1823
        %v1825 = vcombine.low %v1816, %v1824
        %v1826 = vcombine.high %v1816, %v1824
        %v1828 = vunpack.c.l.s4 1934713408
        %v1829 = vunpack.c.0.s8 %v1828
        %v1830 = vlaneseq
        %v1831 = vshrl.u32 %v1830, 7
        %v1832 = vsub.s32 %v1829, %v1831
        %v1833 = vrot.slane %v1825, %v1832
        %v1835 = vunpack.c.l.s4 1934713408
        %v1836 = vunpack.c.0.s8 %v1835
        %v1837 = vlaneseq
        %v1838 = vshrl.u32 %v1837, 7
        %v1839 = vsub.s32 %v1836, %v1838
        %v1840 = vrot.slane %v1826, %v1839
        %v1841 = vcombine.high %v1833, 0
        %v1842 = vcombine.high %v1840, 0
        %v1845 = vpack.i.b16 %v1833, %v1799
        %v1847 = vshrl.u32 %v1799, 16
        %v1848 = vshrl.u32 %v1833, 16
        %v1849 = vpack.i.b16 %v1848, %v1847
        %v1853 = vpack.i.b16 %v1841, %v1807
        %v1855 = vshrl.u32 %v1807, 16
        %v1856 = vshrl.u32 %v1841, 16
        %v1857 = vpack.i.b16 %v1856, %v1855
        %v1861 = vpack.i.b16 %v1840, %v1806
        %v1863 = vshrl.u32 %v1806, 16
        %v1864 = vshrl.u32 %v1840, 16
        %v1865 = vpack.i.b16 %v1864, %v1863
        %v1869 = vpack.i.b16 %v1842, %v1808
        %v1871 = vshrl.u32 %v1808, 16
        %v1872 = vshrl.u32 %v1842, 16
        %v1873 = vpack.i.b16 %v1872, %v1871
        %v1875 = vcombine.low %v1845, %v1861
        %v1877 = vunpack.c.l.s4 1983009808
        %v1878 = vunpack.c.0.s8 %v1877
        %v1879 = vlaneseq
        %v1880 = vshrl.u32 %v1879, 7
        %v1881 = vsub.s32 %v1878, %v1880
        %v1882 = vrot.slane %v1875, %v1881
        %v1883 = vcombine.low %v1853, %v1869
        %v1885 = vunpack.c.l.s4 1983009808
        %v1886 = vunpack.c.0.s8 %v1885
        %v1887 = vlaneseq
        %v1888 = vshrl.u32 %v1887, 7
        %v1889 = vsub.s32 %v1886, %v1888
        %v1890 = vrot.slane %v1883, %v1889
        %v1891 = vcombine.low %v1882, %v1890
        %v1893 = vunpack.c.l.s4 1934713408
        %v1894 = vunpack.c.0.s8 %v1893
        %v1895 = vlaneseq
        %v1896 = vshrl.u32 %v1895, 7
        %v1897 = vsub.s32 %v1894, %v1896
        %v1898 = vrot.slane %v1891, %v1897
        %v1899 = vcombine.high %v1898, 0
        %v1900 = vcombine.low %v1849, %v1865
        %v1902 = vunpack.c.l.s4 1983009808
        %v1903 = vunpack.c.0.s8 %v1902
        %v1904 = vlaneseq
        %v1905 = vshrl.u32 %v1904, 7
        %v1906 = vsub.s32 %v1903, %v1905
        %v1907 = vrot.slane %v1900, %v1906
        %v1908 = vcombine.low %v1857, %v1873
        %v1910 = vunpack.c.l.s4 1983009808
        %v1911 = vunpack.c.0.s8 %v1910
        %v1912 = vlaneseq
        %v1913 = vshrl.u32 %v1912, 7
        %v1914 = vsub.s32 %v1911, %v1913
        %v1915 = vrot.slane %v1908, %v1914
        %v1916 = vcombine.low %v1907, %v1915
        %v1918 = vunpack.c.l.s4 1934713408
        %v1919 = vunpack.c.0.s8 %v1918
        %v1920 = vlaneseq
        %v1921 = vshrl.u32 %v1920, 7
        %v1922 = vsub.s32 %v1919, %v1921
        %v1923 = vrot.slane %v1916, %v1922
        %v1924 = vcombine.high %v1923, 0
        %v1927 = vpack.i.b16 %v1923, %v1898
        %v1928 = vshrl.u32 %v1898, 16
        %v1929 = vshrl.u32 %v1923, 16
        %v1930 = vpack.i.b16 %v1929, %v1928
        %v1933 = vpack.i.b16 %v1924, %v1899
        %v1934 = vshrl.u32 %v1899, 16
        %v1935 = vshrl.u32 %v1924, 16
        %v1936 = vpack.i.b16 %v1935, %v1934
        %1937 = vrot.lane.b32.xlu0 %v1930, 8
        %v1938 = vpop.permute.xlu0 %1937
        %1939 = vrot.lane.b32.xlu0 %v1933, 16
        %v1940 = vpop.permute.xlu0 %1939
        %1941 = vrot.lane.b32.xlu0 %v1936, 24
        %v1942 = vpop.permute.xlu0 %1941
        %v1945 = vsel %vm1357, %v1927, %v1938
        %vm1946 = vcmask 130048
        %v1948 = vsel %vm1946, %v1945, %v1940
        %vm1949 = vcmask 195584
        %v1951 = vsel %vm1949, %v1948, %v1942
        %v1952 = vld [vmem:[%s8] sm:$0xf]
        %v1953 = vld [vmem:[%s8 + $0x4] sm:$0xf]
        %v1954 = vld [vmem:[%s8 + $0x8] sm:$0xf]
        %v1955 = vld [vmem:[%s8 + $0xc] sm:$0xf]
        %v1956 = vld [vmem:[%s9] sm:$0x1]
        %v1958 = vlaneseq
        %v1959 = vshrl.u32 %v1958, 7
        %v1960 = vsub.s32 0, %v1959
        %v1961 = vrot.slane %v1956, %v1960
        %v1967 = vunpack.c.l.b16 %v1952
        %v1968 = vunpack.c.l.b16 %v1953
        %v1969 = vunpack.c.l.b16 %v1954
        %v1970 = vunpack.c.l.b16 %v1955
        %v1971 = vpack.c.b16 %v1968, %v1967
        %v1972 = vpack.c.b16 %v1970, %v1969
        %v1975 = vsel %vm651, %v1951, 0
        %1977 = vmatprep.subr.bf16.mxu0 0
        %1978 = vmatpush1.bf16.msra.mxu0 %v1971
        %1979 = vmatprep.subr.bf16.mxu0 0
        %1980 = vmatpush1.bf16.msra.mxu0 %v1972
        %1981 = vmatprep.subr.bf16.mxu0 0
        %1982 = vmatpush1.bf16.msra.mxu0 0
        %1983 = vmatprep.subr.bf16.mxu0 0
        %1984 = vmatpush1.bf16.msra.mxu0 0
        %1985 = vmatprep.subr.bf16.mxu0 0
        %1986 = vmatpush1.bf16.msra.mxu0 0
        %1987 = vmatprep.subr.bf16.mxu0 0
        %1988 = vmatpush1.bf16.msra.mxu0 0
        %1989 = vmatprep.subr.bf16.mxu0 0
        %1990 = vmatpush1.bf16.msra.mxu0 0
        %1991 = vmatprep.subr.bf16.mxu0 0
        %1992 = vmatpush1.bf16.msra.mxu0 0
        %1993 = vmatprep.subr.bf16.mxu0 0
        %1994 = vmatpush1.bf16.msra.mxu0 0
        %1995 = vmatprep.subr.bf16.mxu0 0
        %1996 = vmatpush1.bf16.msra.mxu0 0
        %1997 = vmatprep.subr.bf16.mxu0 0
        %1998 = vmatpush1.bf16.msra.mxu0 0
        %1999 = vmatprep.subr.bf16.mxu0 0
        %2000 = vmatpush1.bf16.msra.mxu0 0
        %2001 = vmatprep.subr.bf16.mxu0 0
        %2002 = vmatpush1.bf16.msra.mxu0 0
        %2003 = vmatprep.subr.bf16.mxu0 0
        %2004 = vmatpush1.bf16.msra.mxu0 0
        %2005 = vmatprep.subr.bf16.mxu0 0
        %2006 = vmatpush1.bf16.msra.mxu0 0
        %2007 = vmatprep.subr.bf16.mxu0 0
        %2008 = vmatpush1.bf16.msra.mxu0 0
        %2009 = vmatprep.mubr.bf16.mxu0 0
        %2010 = vmatmul.mubr.bf16.gmra.mrb[0].mxu0 %v1975
        %v2011 = vpop.f32.mrb[0].mxu0
        %v2012 = vadd.f32 %v1961, %v2011
        %v2013 = vpop.f32.mrb[0].mxu0
        %v2014 = vpop.f32.mrb[0].mxu0
        %v2015 = vpop.f32.mrb[0].mxu0
        %2016 = vdwg.mxu0
        %v2017 = vadd.f32 %v787, %v2012
        %v2018 = vld [vmem:[%s10] sm:$0x1]
        %v2019 = vld [vmem:[%s11] sm:$0x1]
        %v2020 = vsel %vm651, %v2017, 0.0
        %2021 = vadd.xlane.f32.xlu0 %v2020
        %v2022 = vpop.xlane.xlu0 %2021
        %v2023 = vmul.f32 %v2022, %v763
        %v2024 = vsub.f32 %v2017, %v2023
        %v2025 = vmul.f32 %v2024, %v2024
        %v2026 = vsel %vm651, %v2025, 0.0
        %2027 = vadd.xlane.f32.xlu0 %v2026
        %v2028 = vpop.xlane.xlu0 %2027
        %v2029 = vmul.f32 %v2028, %v763
        %v2030 = vadd.f32 %v2029, 1e-05
        %v2031 = vrsqrt.pop %v2030
        %v2032 = vmul.f32 %v2024, %v2031
        %v2034 = vlaneseq
        %v2035 = vshrl.u32 %v2034, 7
        %v2036 = vsub.s32 0, %v2035
        %v2037 = vrot.slane %v2018, %v2036
        %v2039 = vmul.f32 %v2032, %v2037
        %v2041 = vlaneseq
        %v2042 = vshrl.u32 %v2041, 7
        %v2043 = vsub.s32 0, %v2042
        %v2044 = vrot.slane %v2019, %v2043
        %v2046 = vadd.f32 %v2039, %v2044
        %v2047 = vpack.c.bf16 %v2046, %v2046
        %v2048 = vld [vmem:[%s12] sm:$0xf]
        %v2049 = vld [vmem:[%s12 + $0x4] sm:$0xf]
        %v2050 = vld [vmem:[%s12 + $0x8] sm:$0xf]
        %v2051 = vld [vmem:[%s12 + $0xc] sm:$0xf]
        %v2052 = vld [vmem:[%s13] sm:$0x1]
        %v2054 = vlaneseq
        %v2055 = vshrl.u32 %v2054, 7
        %v2056 = vsub.s32 0, %v2055
        %v2057 = vrot.slane %v2052, %v2056
        %v2063 = vunpack.c.l.b16 %v2048
        %v2064 = vunpack.c.l.b16 %v2049
        %v2065 = vunpack.c.l.b16 %v2050
        %v2066 = vunpack.c.l.b16 %v2051
        %v2067 = vpack.c.b16 %v2064, %v2063
        %v2068 = vpack.c.b16 %v2066, %v2065
        %v2072 = vsel %vm651, %v2047, 0
        %2074 = vmatprep.subr.bf16.mxu0 0
        %2075 = vmatpush1.bf16.msra.mxu0 %v2067
        %2076 = vmatprep.subr.bf16.mxu0 0
        %2077 = vmatpush1.bf16.msra.mxu0 %v2068
        %2078 = vmatprep.subr.bf16.mxu0 0
        %2079 = vmatpush1.bf16.msra.mxu0 0
        %2080 = vmatprep.subr.bf16.mxu0 0
        %2081 = vmatpush1.bf16.msra.mxu0 0
        %2082 = vmatprep.subr.bf16.mxu0 0
        %2083 = vmatpush1.bf16.msra.mxu0 0
        %2084 = vmatprep.subr.bf16.mxu0 0
        %2085 = vmatpush1.bf16.msra.mxu0 0
        %2086 = vmatprep.subr.bf16.mxu0 0
        %2087 = vmatpush1.bf16.msra.mxu0 0
        %2088 = vmatprep.subr.bf16.mxu0 0
        %2089 = vmatpush1.bf16.msra.mxu0 0
        %2090 = vmatprep.subr.bf16.mxu0 0
        %2091 = vmatpush1.bf16.msra.mxu0 0
        %2092 = vmatprep.subr.bf16.mxu0 0
        %2093 = vmatpush1.bf16.msra.mxu0 0
        %2094 = vmatprep.subr.bf16.mxu0 0
        %2095 = vmatpush1.bf16.msra.mxu0 0
        %2096 = vmatprep.subr.bf16.mxu0 0
        %2097 = vmatpush1.bf16.msra.mxu0 0
        %2098 = vmatprep.subr.bf16.mxu0 0
        %2099 = vmatpush1.bf16.msra.mxu0 0
        %2100 = vmatprep.subr.bf16.mxu0 0
        %2101 = vmatpush1.bf16.msra.mxu0 0
        %2102 = vmatprep.subr.bf16.mxu0 0
        %2103 = vmatpush1.bf16.msra.mxu0 0
        %2104 = vmatprep.subr.bf16.mxu0 0
        %2105 = vmatpush1.bf16.msra.mxu0 0
        %2106 = vmatprep.mubr.bf16.mxu0 0
        %2107 = vmatmul.mubr.bf16.gmra.mrb[0].mxu0 %v2072
        %v2108 = vpop.f32.mrb[0].mxu0
        %v2109 = vadd.f32 %v2057, %v2108
        %v2110 = vpop.f32.mrb[0].mxu0
        %v2111 = vpop.f32.mrb[0].mxu0
        %v2112 = vpop.f32.mrb[0].mxu0
        %2113 = vdwg.mxu0
        %v2114 = vmul.f32 %v2109, 0.5
        %v2115 = vmul.f32 %v2109, 0.70710677
        %v2116 = verf.f32.pop %v2115
        %v2117 = vadd.f32 %v2116, 1.0
        %v2118 = vmul.f32 %v2114, %v2117
        %v2119 = vpack.c.bf16 %v2118, %v2118
        %v2120 = vld [vmem:[%s14] sm:$0xf]
        %v2121 = vld [vmem:[%s14 + $0x4] sm:$0xf]
        %v2122 = vld [vmem:[%s14 + $0x8] sm:$0xf]
        %v2123 = vld [vmem:[%s14 + $0xc] sm:$0xf]
        %v2124 = vld [vmem:[%s14 + $0x10] sm:$0xf]
        %v2125 = vld [vmem:[%s14 + $0x14] sm:$0xf]
        %v2126 = vld [vmem:[%s14 + $0x18] sm:$0xf]
        %v2127 = vld [vmem:[%s14 + $0x1c] sm:$0xf]
        %v2128 = vld [vmem:[%s14 + $0x20] sm:$0xf]
        %v2129 = vld [vmem:[%s14 + $0x24] sm:$0xf]
        %v2130 = vld [vmem:[%s14 + $0x28] sm:$0xf]
        %v2131 = vld [vmem:[%s14 + $0x2c] sm:$0xf]
        %v2132 = vld [vmem:[%s14 + $0x30] sm:$0xf]
        %v2133 = vld [vmem:[%s14 + $0x34] sm:$0xf]
        %v2134 = vld [vmem:[%s14 + $0x38] sm:$0xf]
        %v2135 = vld [vmem:[%s14 + $0x3c] sm:$0xf]
        %v2136 = vld [vmem:[%s15] sm:$0x1]
        %v2138 = vlaneseq
        %v2139 = vshrl.u32 %v2138, 7
        %v2140 = vsub.s32 0, %v2139
        %v2141 = vrot.slane %v2136, %v2140
        %v2159 = vunpack.c.l.b16 %v2120
        %v2160 = vunpack.c.l.b16 %v2121
        %v2161 = vunpack.c.l.b16 %v2122
        %v2162 = vunpack.c.l.b16 %v2123
        %v2163 = vunpack.c.l.b16 %v2124
        %v2164 = vunpack.c.l.b16 %v2125
        %v2165 = vunpack.c.l.b16 %v2126
        %v2166 = vunpack.c.l.b16 %v2127
        %v2167 = vunpack.c.l.b16 %v2128
        %v2168 = vunpack.c.l.b16 %v2129
        %v2169 = vunpack.c.l.b16 %v2130
        %v2170 = vunpack.c.l.b16 %v2131
        %v2171 = vunpack.c.l.b16 %v2132
        %v2172 = vunpack.c.l.b16 %v2133
        %v2173 = vunpack.c.l.b16 %v2134
        %v2174 = vunpack.c.l.b16 %v2135
        %v2175 = vpack.c.b16 %v2160, %v2159
        %v2176 = vpack.c.b16 %v2162, %v2161
        %v2177 = vpack.c.b16 %v2164, %v2163
        %v2178 = vpack.c.b16 %v2166, %v2165
        %v2179 = vpack.c.b16 %v2168, %v2167
        %v2180 = vpack.c.b16 %v2170, %v2169
        %v2181 = vpack.c.b16 %v2172, %v2171
        %v2182 = vpack.c.b16 %v2174, %v2173
        %2191 = vmatprep.subr.bf16.mxu0 0
        %2192 = vmatpush1.bf16.msra.mxu0 %v2175
        %2193 = vmatprep.subr.bf16.mxu0 0
        %2194 = vmatpush1.bf16.msra.mxu0 %v2176
        %2195 = vmatprep.subr.bf16.mxu0 0
        %2196 = vmatpush1.bf16.msra.mxu0 %v2177
        %2197 = vmatprep.subr.bf16.mxu0 0
        %2198 = vmatpush1.bf16.msra.mxu0 %v2178
        %2199 = vmatprep.subr.bf16.mxu0 0
        %2200 = vmatpush1.bf16.msra.mxu0 %v2179
        %2201 = vmatprep.subr.bf16.mxu0 0
        %2202 = vmatpush1.bf16.msra.mxu0 %v2180
        %2203 = vmatprep.subr.bf16.mxu0 0
        %2204 = vmatpush1.bf16.msra.mxu0 %v2181
        %2205 = vmatprep.subr.bf16.mxu0 0
        %2206 = vmatpush1.bf16.msra.mxu0 %v2182
        %2207 = vmatprep.subr.bf16.mxu0 0
        %2208 = vmatpush1.bf16.msra.mxu0 0
        %2209 = vmatprep.subr.bf16.mxu0 0
        %2210 = vmatpush1.bf16.msra.mxu0 0
        %2211 = vmatprep.subr.bf16.mxu0 0
        %2212 = vmatpush1.bf16.msra.mxu0 0
        %2213 = vmatprep.subr.bf16.mxu0 0
        %2214 = vmatpush1.bf16.msra.mxu0 0
        %2215 = vmatprep.subr.bf16.mxu0 0
        %2216 = vmatpush1.bf16.msra.mxu0 0
        %2217 = vmatprep.subr.bf16.mxu0 0
        %2218 = vmatpush1.bf16.msra.mxu0 0
        %2219 = vmatprep.subr.bf16.mxu0 0
        %2220 = vmatpush1.bf16.msra.mxu0 0
        %2221 = vmatprep.subr.bf16.mxu0 0
        %2222 = vmatpush1.bf16.msra.mxu0 0
        %2223 = vmatprep.mubr.bf16.mxu0 0
        %2224 = vmatmul.mubr.bf16.gmra.mrb[0].mxu0 %v2119
        %v2225 = vpop.f32.mrb[0].mxu0
        %v2226 = vadd.f32 %v2141, %v2225
        %v2227 = vpop.f32.mrb[0].mxu0
        %v2228 = vpop.f32.mrb[0].mxu0
        %v2229 = vpop.f32.mrb[0].mxu0
        %2230 = vdwg.mxu0
        %v2231 = vadd.f32 %v2046, %v2226
        %v2232 = vld [vmem:[%s16] sm:$0x1]
        %v2233 = vld [vmem:[%s17] sm:$0x1]
        %v2234 = vsel %vm651, %v2231, 0.0
        %2235 = vadd.xlane.f32.xlu0 %v2234
        %v2236 = vpop.xlane.xlu0 %2235
        %v2237 = vmul.f32 %v2236, %v763
        %v2238 = vsub.f32 %v2231, %v2237
        %v2239 = vmul.f32 %v2238, %v2238
        %v2240 = vsel %vm651, %v2239, 0.0
        %2241 = vadd.xlane.f32.xlu0 %v2240
        %v2242 = vpop.xlane.xlu0 %2241
        %v2243 = vmul.f32 %v2242, %v763
        %v2244 = vadd.f32 %v2243, 1e-05
        %v2245 = vrsqrt.pop %v2244
        %v2246 = vmul.f32 %v2238, %v2245
        %v2248 = vlaneseq
        %v2249 = vshrl.u32 %v2248, 7
        %v2250 = vsub.s32 0, %v2249
        %v2251 = vrot.slane %v2232, %v2250
        %v2253 = vmul.f32 %v2246, %v2251
        %v2255 = vlaneseq
        %v2256 = vshrl.u32 %v2255, 7
        %v2257 = vsub.s32 0, %v2256
        %v2258 = vrot.slane %v2233, %v2257
        %v2260 = vadd.f32 %v2253, %v2258
        %2261 = vst.msk [vmem:[%s627] sm:$0xff] %vm651, %v2260
        %s2262 = sand.u32 %s434, 1
        %s2263 = scalar_lea.sflag [#allocation4], %s2262
        %s2264 = sand.u32 %s434, 1
        %s2265 = smul.addr %s2264, 8
        %s2266 = scalar_lea.vmem [#allocation7], %s2265
        // Predicated region
        $region101: #{tpu_custom_call.1} parent=91 // pred_check
          %p2267 = pneg %p444
        $region102: #{tpu_custom_call.1} parent=91 // pred_check_branch
          %2269 = sbr.rel (%p2267) target = $region104
        $region103: #{tpu_custom_call.1} parent=91 // pred_region
          %s2271 = ssub.s32 128, 128
          %2272 = vsyncadd %s2263, %s2271
          %s2273 = smul.addr %s38, 128
          %s2274 = scalar_lea.hbm %s18, %s2273
          %s2276 = sshll.u32 %s2266, 4
          %s2277 = int_to_ptr.vmem [resolvable:$true] %s2276
          %2279 = dma.vmem_to_hbm [thread:$0]  %s2277, 128, %s2274, %s2263
        $region104: #{tpu_custom_call.1} parent=91 // pred_fallthru
          _
      $region92: #{tpu_custom_call.1} parent=5 // pred_fallthru
        _
      %p2280 = scmp.le.s32.totalorder 2, %s33
      // Predicated region
      $region105: #{tpu_custom_call.1} parent=5 // pred_check
        %p2281 = pneg %p2280
      $region106: #{tpu_custom_call.1} parent=5 // pred_check_branch
        %2283 = sbr.rel (%p2281) target = $region108
      $region107: #{tpu_custom_call.1} parent=5 // pred_region
        %s2284 = ssub.s32 %s33, 2
        // Predicated region
        $region109: #{tpu_custom_call.1} parent=107 // pred_check
          %p2285 = pneg %p450
        $region110: #{tpu_custom_call.1} parent=107 // pred_check_branch
          %2287 = sbr.rel (%p2285) target = $region112
        $region111: #{tpu_custom_call.1} parent=107 // pred_region
          %s2288 = sand.u32 %s435, 1
          %s2289 = scalar_lea.sflag [#allocation4], %s2288
          %s2290 = sand.u32 %s435, 1
          %s2291 = smul.addr %s2290, 8
          %s2292 = scalar_lea.vmem [#allocation7], %s2291
          %2293 = dma.done %s2289, 128
        $region112: #{tpu_custom_call.1} parent=107 // pred_fallthru
          _
      $region108: #{tpu_custom_call.1} parent=5 // pred_fallthru
        _
    $region6: #{tpu_custom_call.1} parent=1 // loop_footer
      %s37 = sadd.s32 1, %s33
    $region7: #{tpu_custom_call.1} parent=1 // loop_footer_branch
      %32 = sbr.rel target = $region3
    $region8: #{tpu_custom_call.1} parent=1 // loop_exit
      _
    %2294 = vsyncpa [#allocation3], 1
    %s2295 = scalar_lea.sflag [#allocation3], 1
    %2296 = vsyncpa %s2295, 1
    %2297 = vsyncpa [#allocation6], 1
    %s2298 = scalar_lea.sflag [#allocation6], 1
    %2299 = vsyncpa %s2298, 1
    %2300 = vsyncpa [#allocation4], 1
    %s2301 = scalar_lea.sflag [#allocation4], 1
    %2302 = vsyncpa %s2301, 1

// kernel: tpu_custom_call.1
$region0: #{tpu_custom_call.1}
  #allocation0 [shape = 'u32[]', space=smem, size = 0x4, offset = 0x4, fixed_abs, tag = 'smem constant byte address 0x4 - core index']
  #allocation1 [shape = 'u32[144,128]{1,0:T(1,128)}', space=vmem, size = 0x12000, scoped, tag = 'internal scratch']
  #allocation2 [shape = 'bf16[4,8,8]{2,1,0:T(8,128)(2,1)}', space=vmem, size = 0x2000, scoped, tag = 'scratch operand']
  #allocation3 [shape = 'bf16[4,8,8]{2,1,0:T(8,128)(2,1)}', space=vmem, size = 0x2000, scoped, tag = 'scratch operand']
  #allocation4 [shape = 'bf16[4,8,8]{2,1,0:T(8,128)(2,1)}', space=vmem, size = 0x2000, scoped, tag = 'scratch operand']
  #allocation5 [shape = 'bf16[8,32]{1,0:T(8,128)(2,1)}', space=vmem, size = 0x800, scoped, tag = 'scratch operand']
  %s0 = inlined_call_operand.hbm [shape: bf16[2,8,32], index: 0, kind: input, shape index: {}]
  %s1 = inlined_call_operand.hbm [shape: bf16[2,8,32], index: 1, kind: input, shape index: {}]
  %s2 = inlined_call_operand.vmem [shape: bf16[32,32], index: 2, kind: input, shape index: {}]
  %s3 = inlined_call_operand.vmem [shape: bf16[32,32], index: 3, kind: input, shape index: {}]
  %s4 = inlined_call_operand.vmem [shape: f32[1,32], index: 4, kind: input, shape index: {}]
  %s5 = inlined_call_operand.vmem [shape: f32[1,32], index: 5, kind: input, shape index: {}]
  %s6 = inlined_call_operand.vmem [shape: f32[1,32], index: 6, kind: input, shape index: {}]
  %s7 = inlined_call_operand.vmem [shape: bf16[32,96], index: 7, kind: input, shape index: {}]
  %s8 = inlined_call_operand.vmem [shape: bf16[32,32], index: 8, kind: input, shape index: {}]
  %s9 = inlined_call_operand.vmem [shape: f32[1,32], index: 9, kind: input, shape index: {}]
  %s10 = inlined_call_operand.vmem [shape: f32[1,32], index: 10, kind: input, shape index: {}]
  %s11 = inlined_call_operand.vmem [shape: f32[1,32], index: 11, kind: input, shape index: {}]
  %s12 = inlined_call_operand.vmem [shape: bf16[32,128], index: 12, kind: input, shape index: {}]
  %s13 = inlined_call_operand.vmem [shape: f32[1,128], index: 13, kind: input, shape index: {}]
  %s14 = inlined_call_operand.vmem [shape: bf16[128,32], index: 14, kind: input, shape index: {}]
  %s15 = inlined_call_operand.vmem [shape: f32[1,32], index: 15, kind: input, shape index: {}]
  %s16 = inlined_call_operand.vmem [shape: f32[1,32], index: 16, kind: input, shape index: {}]
  %s17 = inlined_call_operand.vmem [shape: f32[1,32], index: 17, kind: input, shape index: {}]
  %s18 = inlined_call_operand.hbm [shape: f32[2,8,32], index: 18, kind: output, shape index: {}]
  %s19 = sld [smem:[#allocation0]]
  $region113: #{tpu_custom_call.1} parent=0
    _
  %s21 = ssub.s32 1, %s19
  %s22 = scalar_select 0, %s21, %s19
  $region1: #{tpu_custom_call.1} parent=0
    #allocation6 [shape = 'u8[4096]{0}', space=vmem, size = 0x1000, scoped, tag = 'input window, operand 0']
    #allocation7 [shape = 's32[2]{0}', space=sflag, size = 0x8, scoped, tag = 'scoped memory for tpu_custom_call.1']
    #allocation8 [shape = 's32[2]{0}', space=sflag, size = 0x8, scoped, tag = 'scoped memory for tpu_custom_call.1']
    #allocation9 [shape = 'u8[4096]{0}', space=vmem, size = 0x1000, scoped, tag = 'input window, operand 1']
    #allocation10 [shape = 's32[2]{0}', space=sflag, size = 0x8, scoped, tag = 'scoped memory for tpu_custom_call.1']
    #allocation11 [shape = 'u8[8192]{0}', space=vmem, size = 0x2000, scoped, tag = 'output window, operand 0']
    %23 = vsyncpa [#allocation7], 0
    %s24 = scalar_lea.sflag [#allocation7], 1
    %25 = vsyncpa %s24, 0
    %26 = vsyncpa [#allocation10], 0
    %s27 = scalar_lea.sflag [#allocation10], 1
    %28 = vsyncpa %s27, 0
    %29 = vsyncpa [#allocation8], 0
    %s30 = scalar_lea.sflag [#allocation8], 1
    %31 = vsyncpa %s30, 0
    loop: start=0, step=1, limit=4
    $region2: #{tpu_custom_call.1} parent=1 // loop_pre_header
      _
    $region3: #{tpu_custom_call.1} parent=1 // loop_header
      %s33 = sphi 0, %s37
      %p34 = scmp.ge.s32.totalorder %s33, 4
      %s43 = sphi 0, %s45
      %s46 = sphi 0, %s43
      %s47 = sphi 0, %s46
      %s63 = sphi 0, %s47
      %s69 = sphi 0, %s71
      %s72 = sphi 0, %s69
      %s73 = sphi 0, %s72
      %s89 = sphi 0, %s73
      %s93 = sphi 0, %s93
      %s95 = sphi 0, %s93
      %s96 = sphi 0, %s95
      %s110 = sphi 0, %s96
      %s114 = sphi 0, %s114
      %s116 = sphi 0, %s114
      %s117 = sphi 0, %s116
      %s131 = sphi 0, %s117
      %s135 = sphi 0, %s135
      %s137 = sphi 0, %s135
      %s138 = sphi 0, %s137
      %s152 = sphi 0, %s138
      %s156 = sphi 0, %s156
      %s158 = sphi 0, %s156
      %s159 = sphi 0, %s158
      %s173 = sphi 0, %s159
      %s177 = sphi 0, %s177
      %s179 = sphi 0, %s177
      %s180 = sphi 0, %s179
      %s194 = sphi 0, %s180
      %s198 = sphi 0, %s198
      %s200 = sphi 0, %s198
      %s201 = sphi 0, %s200
      %s215 = sphi 0, %s201
      %s219 = sphi 0, %s219
      %s221 = sphi 0, %s219
      %s222 = sphi 0, %s221
      %s236 = sphi 0, %s222
      %s240 = sphi 0, %s240
      %s242 = sphi 0, %s240
      %s243 = sphi 0, %s242
      %s257 = sphi 0, %s243
      %s261 = sphi 0, %s261
      %s263 = sphi 0, %s261
      %s264 = sphi 0, %s263
      %s278 = sphi 0, %s264
      %s282 = sphi 0, %s282
      %s284 = sphi 0, %s282
      %s285 = sphi 0, %s284
      %s299 = sphi 0, %s285
      %s303 = sphi 0, %s303
      %s305 = sphi 0, %s303
      %s306 = sphi 0, %s305
      %s320 = sphi 0, %s306
      %s324 = sphi 0, %s324
      %s326 = sphi 0, %s324
      %s327 = sphi 0, %s326
      %s341 = sphi 0, %s327
      %s345 = sphi 0, %s345
      %s347 = sphi 0, %s345
      %s348 = sphi 0, %s347
      %s362 = sphi 0, %s348
      %s366 = sphi 0, %s366
      %s368 = sphi 0, %s366
      %s369 = sphi 0, %s368
      %s383 = sphi 0, %s369
      %s387 = sphi 0, %s387
      %s389 = sphi 0, %s387
      %s390 = sphi 0, %s389
      %s404 = sphi 0, %s390
      %s408 = sphi 0, %s408
      %s410 = sphi 0, %s408
      %s411 = sphi 0, %s410
      %s425 = sphi 0, %s411
      %s431 = sphi 0, %s433
      %s434 = sphi 0, %s431
      %s435 = sphi 0, %s434
      %s451 = sphi 0, %s435
    $region4: #{tpu_custom_call.1} parent=1 // loop_header_branch
      %36 = sbr.rel (%p34) target = $region8
    $region5: #{tpu_custom_call.1} parent=1 // loop_body
      %s38 = ssub.s32 %s33, 1
      %s39 = ssub.s32 %s33, 2
      %s40 = sadd.s32 %s33, 1
      %s41 = ssub.s32 %s33, %s40
      %p42 = scmp.eq.s32.totalorder %s41, 0
      %s44 = sadd.s32 %s43, 1
      %s45 = scalar_select %p42, %s43, %s44
      %p48 = pneg %p42
      %p49 = scmp.eq.s32.totalorder %s33, 1
      %p50 = por %p48, %p49
      %p51 = scmp.ne.s32.totalorder %s43, %s46
      %p52 = scmp.eq.s32.totalorder %s33, 0
      %p53 = por %p51, %p52
      %p54 = scmp.ne.s32.totalorder %s43, %s46
      %p55 = scmp.eq.s32.totalorder %s38, 1
      %p56 = por %p54, %p55
      %p57 = scmp.ne.s32.totalorder %s46, %s47
      %p58 = scmp.eq.s32.totalorder %s38, 0
      %p59 = por %p57, %p58
      %p60 = scmp.ne.s32.totalorder %s46, %s47
      %p61 = scmp.eq.s32.totalorder %s39, 1
      %p62 = por %p60, %p61
      %p64 = scmp.ne.s32.totalorder %s47, %s63
      %p65 = scmp.eq.s32.totalorder %s39, 0
      %p66 = por %p64, %p65
      %s67 = ssub.s32 %s33, %s40
      %p68 = scmp.eq.s32.totalorder %s67, 0
      %s70 = sadd.s32 %s69, 1
      %s71 = scalar_select %p68, %s69, %s70
      %p74 = pneg %p68
      %p75 = scmp.eq.s32.totalorder %s33, 1
      %p76 = por %p74, %p75
      %p77 = scmp.ne.s32.totalorder %s69, %s72
      %p78 = scmp.eq.s32.totalorder %s33, 0
      %p79 = por %p77, %p78
      %p80 = scmp.ne.s32.totalorder %s69, %s72
      %p81 = scmp.eq.s32.totalorder %s38, 1
      %p82 = por %p80, %p81
      %p83 = scmp.ne.s32.totalorder %s72, %s73
      %p84 = scmp.eq.s32.totalorder %s38, 0
      %p85 = por %p83, %p84
      %p86 = scmp.ne.s32.totalorder %s72, %s73
      %p87 = scmp.eq.s32.totalorder %s39, 1
      %p88 = por %p86, %p87
      %p90 = scmp.ne.s32.totalorder %s73, %s89
      %p91 = scmp.eq.s32.totalorder %s39, 0
      %p92 = por %p90, %p91
      %s94 = sadd.s32 %s93, 1
      %p97 = scmp.eq.s32.totalorder %s33, 1
      %p98 = scmp.ne.s32.totalorder %s93, %s95
      %p99 = scmp.eq.s32.totalorder %s33, 0
      %p100 = por %p98, %p99
      %p101 = scmp.ne.s32.totalorder %s93, %s95
      %p102 = scmp.eq.s32.totalorder %s38, 1
      %p103 = por %p101, %p102
      %p104 = scmp.ne.s32.totalorder %s95, %s96
      %p105 = scmp.eq.s32.totalorder %s38, 0
      %p106 = por %p104, %p105
      %p107 = scmp.ne.s32.totalorder %s95, %s96
      %p108 = scmp.eq.s32.totalorder %s39, 1
      %p109 = por %p107, %p108
      %p111 = scmp.ne.s32.totalorder %s96, %s110
      %p112 = scmp.eq.s32.totalorder %s39, 0
      %p113 = por %p111, %p112
      %s115 = sadd.s32 %s114, 1
      %p118 = scmp.eq.s32.totalorder %s33, 1
      %p119 = scmp.ne.s32.totalorder %s114, %s116
      %p120 = scmp.eq.s32.totalorder %s33, 0
      %p121 = por %p119, %p120
      %p122 = scmp.ne.s32.totalorder %s114, %s116
      %p123 = scmp.eq.s32.totalorder %s38, 1
      %p124 = por %p122, %p123
      %p125 = scmp.ne.s32.totalorder %s116, %s117
      %p126 = scmp.eq.s32.totalorder %s38, 0
      %p127 = por %p125, %p126
      %p128 = scmp.ne.s32.totalorder %s116, %s117
      %p129 = scmp.eq.s32.totalorder %s39, 1
      %p130 = por %p128, %p129
      %p132 = scmp.ne.s32.totalorder %s117, %s131
      %p133 = scmp.eq.s32.totalorder %s39, 0
      %p134 = por %p132, %p133
      %s136 = sadd.s32 %s135, 1
      %p139 = scmp.eq.s32.totalorder %s33, 1
      %p140 = scmp.ne.s32.totalorder %s135, %s137
      %p141 = scmp.eq.s32.totalorder %s33, 0
      %p142 = por %p140, %p141
      %p143 = scmp.ne.s32.totalorder %s135, %s137
      %p144 = scmp.eq.s32.totalorder %s38, 1
      %p145 = por %p143, %p144
      %p146 = scmp.ne.s32.totalorder %s137, %s138
      %p147 = scmp.eq.s32.totalorder %s38, 0
      %p148 = por %p146, %p147
      %p149 = scmp.ne.s32.totalorder %s137, %s138
      %p150 = scmp.eq.s32.totalorder %s39, 1
      %p151 = por %p149, %p150
      %p153 = scmp.ne.s32.totalorder %s138, %s152
      %p154 = scmp.eq.s32.totalorder %s39, 0
      %p155 = por %p153, %p154
      %s157 = sadd.s32 %s156, 1
      %p160 = scmp.eq.s32.totalorder %s33, 1
      %p161 = scmp.ne.s32.totalorder %s156, %s158
      %p162 = scmp.eq.s32.totalorder %s33, 0
      %p163 = por %p161, %p162
      %p164 = scmp.ne.s32.totalorder %s156, %s158
      %p165 = scmp.eq.s32.totalorder %s38, 1
      %p166 = por %p164, %p165
      %p167 = scmp.ne.s32.totalorder %s158, %s159
      %p168 = scmp.eq.s32.totalorder %s38, 0
      %p169 = por %p167, %p168
      %p170 = scmp.ne.s32.totalorder %s158, %s159
      %p171 = scmp.eq.s32.totalorder %s39, 1
      %p172 = por %p170, %p171
      %p174 = scmp.ne.s32.totalorder %s159, %s173
      %p175 = scmp.eq.s32.totalorder %s39, 0
      %p176 = por %p174, %p175
      %s178 = sadd.s32 %s177, 1
      %p181 = scmp.eq.s32.totalorder %s33, 1
      %p182 = scmp.ne.s32.totalorder %s177, %s179
      %p183 = scmp.eq.s32.totalorder %s33, 0
      %p184 = por %p182, %p183
      %p185 = scmp.ne.s32.totalorder %s177, %s179
      %p186 = scmp.eq.s32.totalorder %s38, 1
      %p187 = por %p185, %p186
      %p188 = scmp.ne.s32.totalorder %s179, %s180
      %p189 = scmp.eq.s32.totalorder %s38, 0
      %p190 = por %p188, %p189
      %p191 = scmp.ne.s32.totalorder %s179, %s180
      %p192 = scmp.eq.s32.totalorder %s39, 1
      %p193 = por %p191, %p192
      %p195 = scmp.ne.s32.totalorder %s180, %s194
      %p196 = scmp.eq.s32.totalorder %s39, 0
      %p197 = por %p195, %p196
      %s199 = sadd.s32 %s198, 1
      %p202 = scmp.eq.s32.totalorder %s33, 1
      %p203 = scmp.ne.s32.totalorder %s198, %s200
      %p204 = scmp.eq.s32.totalorder %s33, 0
      %p205 = por %p203, %p204
      %p206 = scmp.ne.s32.totalorder %s198, %s200
      %p207 = scmp.eq.s32.totalorder %s38, 1
      %p208 = por %p206, %p207
      %p209 = scmp.ne.s32.totalorder %s200, %s201
      %p210 = scmp.eq.s32.totalorder %s38, 0
      %p211 = por %p209, %p210
      %p212 = scmp.ne.s32.totalorder %s200, %s201
      %p213 = scmp.eq.s32.totalorder %s39, 1
      %p214 = por %p212, %p213
      %p216 = scmp.ne.s32.totalorder %s201, %s215
      %p217 = scmp.eq.s32.totalorder %s39, 0
      %p218 = por %p216, %p217
      %s220 = sadd.s32 %s219, 1
      %p223 = scmp.eq.s32.totalorder %s33, 1
      %p224 = scmp.ne.s32.totalorder %s219, %s221
      %p225 = scmp.eq.s32.totalorder %s33, 0
      %p226 = por %p224, %p225
      %p227 = scmp.ne.s32.totalorder %s219, %s221
      %p228 = scmp.eq.s32.totalorder %s38, 1
      %p229 = por %p227, %p228
      %p230 = scmp.ne.s32.totalorder %s221, %s222
      %p231 = scmp.eq.s32.totalorder %s38, 0
      %p232 = por %p230, %p231
      %p233 = scmp.ne.s32.totalorder %s221, %s222
      %p234 = scmp.eq.s32.totalorder %s39, 1
      %p235 = por %p233, %p234
      %p237 = scmp.ne.s32.totalorder %s222, %s236
      %p238 = scmp.eq.s32.totalorder %s39, 0
      %p239 = por %p237, %p238
      %s241 = sadd.s32 %s240, 1
      %p244 = scmp.eq.s32.totalorder %s33, 1
      %p245 = scmp.ne.s32.totalorder %s240, %s242
      %p246 = scmp.eq.s32.totalorder %s33, 0
      %p247 = por %p245, %p246
      %p248 = scmp.ne.s32.totalorder %s240, %s242
      %p249 = scmp.eq.s32.totalorder %s38, 1
      %p250 = por %p248, %p249
      %p251 = scmp.ne.s32.totalorder %s242, %s243
      %p252 = scmp.eq.s32.totalorder %s38, 0
      %p253 = por %p251, %p252
      %p254 = scmp.ne.s32.totalorder %s242, %s243
      %p255 = scmp.eq.s32.totalorder %s39, 1
      %p256 = por %p254, %p255
      %p258 = scmp.ne.s32.totalorder %s243, %s257
      %p259 = scmp.eq.s32.totalorder %s39, 0
      %p260 = por %p258, %p259
      %s262 = sadd.s32 %s261, 1
      %p265 = scmp.eq.s32.totalorder %s33, 1
      %p266 = scmp.ne.s32.totalorder %s261, %s263
      %p267 = scmp.eq.s32.totalorder %s33, 0
      %p268 = por %p266, %p267
      %p269 = scmp.ne.s32.totalorder %s261, %s263
      %p270 = scmp.eq.s32.totalorder %s38, 1
      %p271 = por %p269, %p270
      %p272 = scmp.ne.s32.totalorder %s263, %s264
      %p273 = scmp.eq.s32.totalorder %s38, 0
      %p274 = por %p272, %p273
      %p275 = scmp.ne.s32.totalorder %s263, %s264
      %p276 = scmp.eq.s32.totalorder %s39, 1
      %p277 = por %p275, %p276
      %p279 = scmp.ne.s32.totalorder %s264, %s278
      %p280 = scmp.eq.s32.totalorder %s39, 0
      %p281 = por %p279, %p280
      %s283 = sadd.s32 %s282, 1
      %p286 = scmp.eq.s32.totalorder %s33, 1
      %p287 = scmp.ne.s32.totalorder %s282, %s284
      %p288 = scmp.eq.s32.totalorder %s33, 0
      %p289 = por %p287, %p288
      %p290 = scmp.ne.s32.totalorder %s282, %s284
      %p291 = scmp.eq.s32.totalorder %s38, 1
      %p292 = por %p290, %p291
      %p293 = scmp.ne.s32.totalorder %s284, %s285
      %p294 = scmp.eq.s32.totalorder %s38, 0
      %p295 = por %p293, %p294
      %p296 = scmp.ne.s32.totalorder %s284, %s285
      %p297 = scmp.eq.s32.totalorder %s39, 1
      %p298 = por %p296, %p297
      %p300 = scmp.ne.s32.totalorder %s285, %s299
      %p301 = scmp.eq.s32.totalorder %s39, 0
      %p302 = por %p300, %p301
      %s304 = sadd.s32 %s303, 1
      %p307 = scmp.eq.s32.totalorder %s33, 1
      %p308 = scmp.ne.s32.totalorder %s303, %s305
      %p309 = scmp.eq.s32.totalorder %s33, 0
      %p310 = por %p308, %p309
      %p311 = scmp.ne.s32.totalorder %s303, %s305
      %p312 = scmp.eq.s32.totalorder %s38, 1
      %p313 = por %p311, %p312
      %p314 = scmp.ne.s32.totalorder %s305, %s306
      %p315 = scmp.eq.s32.totalorder %s38, 0
      %p316 = por %p314, %p315
      %p317 = scmp.ne.s32.totalorder %s305, %s306
      %p318 = scmp.eq.s32.totalorder %s39, 1
      %p319 = por %p317, %p318
      %p321 = scmp.ne.s32.totalorder %s306, %s320
      %p322 = scmp.eq.s32.totalorder %s39, 0
      %p323 = por %p321, %p322
      %s325 = sadd.s32 %s324, 1
      %p328 = scmp.eq.s32.totalorder %s33, 1
      %p329 = scmp.ne.s32.totalorder %s324, %s326
      %p330 = scmp.eq.s32.totalorder %s33, 0
      %p331 = por %p329, %p330
      %p332 = scmp.ne.s32.totalorder %s324, %s326
      %p333 = scmp.eq.s32.totalorder %s38, 1
      %p334 = por %p332, %p333
      %p335 = scmp.ne.s32.totalorder %s326, %s327
      %p336 = scmp.eq.s32.totalorder %s38, 0
      %p337 = por %p335, %p336
      %p338 = scmp.ne.s32.totalorder %s326, %s327
      %p339 = scmp.eq.s32.totalorder %s39, 1
      %p340 = por %p338, %p339
      %p342 = scmp.ne.s32.totalorder %s327, %s341
      %p343 = scmp.eq.s32.totalorder %s39, 0
      %p344 = por %p342, %p343
      %s346 = sadd.s32 %s345, 1
      %p349 = scmp.eq.s32.totalorder %s33, 1
      %p350 = scmp.ne.s32.totalorder %s345, %s347
      %p351 = scmp.eq.s32.totalorder %s33, 0
      %p352 = por %p350, %p351
      %p353 = scmp.ne.s32.totalorder %s345, %s347
      %p354 = scmp.eq.s32.totalorder %s38, 1
      %p355 = por %p353, %p354
      %p356 = scmp.ne.s32.totalorder %s347, %s348
      %p357 = scmp.eq.s32.totalorder %s38, 0
      %p358 = por %p356, %p357
      %p359 = scmp.ne.s32.totalorder %s347, %s348
      %p360 = scmp.eq.s32.totalorder %s39, 1
      %p361 = por %p359, %p360
      %p363 = scmp.ne.s32.totalorder %s348, %s362
      %p364 = scmp.eq.s32.totalorder %s39, 0
      %p365 = por %p363, %p364
      %s367 = sadd.s32 %s366, 1
      %p370 = scmp.eq.s32.totalorder %s33, 1
      %p371 = scmp.ne.s32.totalorder %s366, %s368
      %p372 = scmp.eq.s32.totalorder %s33, 0
      %p373 = por %p371, %p372
      %p374 = scmp.ne.s32.totalorder %s366, %s368
      %p375 = scmp.eq.s32.totalorder %s38, 1
      %p376 = por %p374, %p375
      %p377 = scmp.ne.s32.totalorder %s368, %s369
      %p378 = scmp.eq.s32.totalorder %s38, 0
      %p379 = por %p377, %p378
      %p380 = scmp.ne.s32.totalorder %s368, %s369
      %p381 = scmp.eq.s32.totalorder %s39, 1
      %p382 = por %p380, %p381
      %p384 = scmp.ne.s32.totalorder %s369, %s383
      %p385 = scmp.eq.s32.totalorder %s39, 0
      %p386 = por %p384, %p385
      %s388 = sadd.s32 %s387, 1
      %p391 = scmp.eq.s32.totalorder %s33, 1
      %p392 = scmp.ne.s32.totalorder %s387, %s389
      %p393 = scmp.eq.s32.totalorder %s33, 0
      %p394 = por %p392, %p393
      %p395 = scmp.ne.s32.totalorder %s387, %s389
      %p396 = scmp.eq.s32.totalorder %s38, 1
      %p397 = por %p395, %p396
      %p398 = scmp.ne.s32.totalorder %s389, %s390
      %p399 = scmp.eq.s32.totalorder %s38, 0
      %p400 = por %p398, %p399
      %p401 = scmp.ne.s32.totalorder %s389, %s390
      %p402 = scmp.eq.s32.totalorder %s39, 1
      %p403 = por %p401, %p402
      %p405 = scmp.ne.s32.totalorder %s390, %s404
      %p406 = scmp.eq.s32.totalorder %s39, 0
      %p407 = por %p405, %p406
      %s409 = sadd.s32 %s408, 1
      %p412 = scmp.eq.s32.totalorder %s33, 1
      %p413 = scmp.ne.s32.totalorder %s408, %s410
      %p414 = scmp.eq.s32.totalorder %s33, 0
      %p415 = por %p413, %p414
      %p416 = scmp.ne.s32.totalorder %s408, %s410
      %p417 = scmp.eq.s32.totalorder %s38, 1
      %p418 = por %p416, %p417
      %p419 = scmp.ne.s32.totalorder %s410, %s411
      %p420 = scmp.eq.s32.totalorder %s38, 0
      %p421 = por %p419, %p420
      %p422 = scmp.ne.s32.totalorder %s410, %s411
      %p423 = scmp.eq.s32.totalorder %s39, 1
      %p424 = por %p422, %p423
      %p426 = scmp.ne.s32.totalorder %s411, %s425
      %p427 = scmp.eq.s32.totalorder %s39, 0
      %p428 = por %p426, %p427
      %s429 = ssub.s32 %s33, %s40
      %p430 = scmp.eq.s32.totalorder %s429, 0
      %s432 = sadd.s32 %s431, 1
      %s433 = scalar_select %p430, %s431, %s432
      %p436 = pneg %p430
      %p437 = scmp.eq.s32.totalorder %s33, 1
      %p438 = por %p436, %p437
      %p439 = scmp.ne.s32.totalorder %s431, %s434
      %p440 = scmp.eq.s32.totalorder %s33, 0
      %p441 = por %p439, %p440
      %p442 = scmp.ne.s32.totalorder %s431, %s434
      %p443 = scmp.eq.s32.totalorder %s38, 1
      %p444 = por %p442, %p443
      %p445 = scmp.ne.s32.totalorder %s434, %s435
      %p446 = scmp.eq.s32.totalorder %s38, 0
      %p447 = por %p445, %p446
      %p448 = scmp.ne.s32.totalorder %s434, %s435
      %p449 = scmp.eq.s32.totalorder %s39, 1
      %p450 = por %p448, %p449
      %p452 = scmp.ne.s32.totalorder %s435, %s451
      %p453 = scmp.eq.s32.totalorder %s39, 0
      %p454 = por %p452, %p453
      %p455 = scmp.le.s32.totalorder 1, %s33
      %p456 = scmp.lt.s32.totalorder %s33, 3
      %p457 = pnand %p455, %p456
      %p458 = pneg %p457
      // Predicated region
      $region9: #{tpu_custom_call.1} parent=5 // pred_check
        _
      $region10: #{tpu_custom_call.1} parent=5 // pred_check_branch
        %460 = sbr.rel (%p457) target = $region12
      $region11: #{tpu_custom_call.1} parent=5 // pred_region
        %s461 = ssub.s32 %s33, 1
        // Predicated region
        $region13: #{tpu_custom_call.1} parent=11 // pred_check
          %p462 = pneg %p106
        $region14: #{tpu_custom_call.1} parent=11 // pred_check_branch
          %464 = sbr.rel (%p462) target = $region16
        $region15: #{tpu_custom_call.1} parent=11 // pred_region
          _
        $region16: #{tpu_custom_call.1} parent=11 // pred_fallthru
          _
        // Predicated region
        $region17: #{tpu_custom_call.1} parent=11 // pred_check
          %p465 = pneg %p127
        $region18: #{tpu_custom_call.1} parent=11 // pred_check_branch
          %467 = sbr.rel (%p465) target = $region20
        $region19: #{tpu_custom_call.1} parent=11 // pred_region
          _
        $region20: #{tpu_custom_call.1} parent=11 // pred_fallthru
          _
        // Predicated region
        $region21: #{tpu_custom_call.1} parent=11 // pred_check
          %p468 = pneg %p148
        $region22: #{tpu_custom_call.1} parent=11 // pred_check_branch
          %470 = sbr.rel (%p468) target = $region24
        $region23: #{tpu_custom_call.1} parent=11 // pred_region
          _
        $region24: #{tpu_custom_call.1} parent=11 // pred_fallthru
          _
        // Predicated region
        $region25: #{tpu_custom_call.1} parent=11 // pred_check
          %p471 = pneg %p169
        $region26: #{tpu_custom_call.1} parent=11 // pred_check_branch
          %473 = sbr.rel (%p471) target = $region28
        $region27: #{tpu_custom_call.1} parent=11 // pred_region
          _
        $region28: #{tpu_custom_call.1} parent=11 // pred_fallthru
          _
        // Predicated region
        $region29: #{tpu_custom_call.1} parent=11 // pred_check
          %p474 = pneg %p190
        $region30: #{tpu_custom_call.1} parent=11 // pred_check_branch
          %476 = sbr.rel (%p474) target = $region32
        $region31: #{tpu_custom_call.1} parent=11 // pred_region
          _
        $region32: #{tpu_custom_call.1} parent=11 // pred_fallthru
          _
        // Predicated region
        $region33: #{tpu_custom_call.1} parent=11 // pred_check
          %p477 = pneg %p211
        $region34: #{tpu_custom_call.1} parent=11 // pred_check_branch
          %479 = sbr.rel (%p477) target = $region36
        $region35: #{tpu_custom_call.1} parent=11 // pred_region
          _
        $region36: #{tpu_custom_call.1} parent=11 // pred_fallthru
          _
        // Predicated region
        $region37: #{tpu_custom_call.1} parent=11 // pred_check
          %p480 = pneg %p232
        $region38: #{tpu_custom_call.1} parent=11 // pred_check_branch
          %482 = sbr.rel (%p480) target = $region40
        $region39: #{tpu_custom_call.1} parent=11 // pred_region
          _
        $region40: #{tpu_custom_call.1} parent=11 // pred_fallthru
          _
        // Predicated region
        $region41: #{tpu_custom_call.1} parent=11 // pred_check
          %p483 = pneg %p253
        $region42: #{tpu_custom_call.1} parent=11 // pred_check_branch
          %485 = sbr.rel (%p483) target = $region44
        $region43: #{tpu_custom_call.1} parent=11 // pred_region
          _
        $region44: #{tpu_custom_call.1} parent=11 // pred_fallthru
          _
        // Predicated region
        $region45: #{tpu_custom_call.1} parent=11 // pred_check
          %p486 = pneg %p274
        $region46: #{tpu_custom_call.1} parent=11 // pred_check_branch
          %488 = sbr.rel (%p486) target = $region48
        $region47: #{tpu_custom_call.1} parent=11 // pred_region
          _
        $region48: #{tpu_custom_call.1} parent=11 // pred_fallthru
          _
        // Predicated region
        $region49: #{tpu_custom_call.1} parent=11 // pred_check
          %p489 = pneg %p295
        $region50: #{tpu_custom_call.1} parent=11 // pred_check_branch
          %491 = sbr.rel (%p489) target = $region52
        $region51: #{tpu_custom_call.1} parent=11 // pred_region
          _
        $region52: #{tpu_custom_call.1} parent=11 // pred_fallthru
          _
        // Predicated region
        $region53: #{tpu_custom_call.1} parent=11 // pred_check
          %p492 = pneg %p316
        $region54: #{tpu_custom_call.1} parent=11 // pred_check_branch
          %494 = sbr.rel (%p492) target = $region56
        $region55: #{tpu_custom_call.1} parent=11 // pred_region
          _
        $region56: #{tpu_custom_call.1} parent=11 // pred_fallthru
          _
        // Predicated region
        $region57: #{tpu_custom_call.1} parent=11 // pred_check
          %p495 = pneg %p337
        $region58: #{tpu_custom_call.1} parent=11 // pred_check_branch
          %497 = sbr.rel (%p495) target = $region60
        $region59: #{tpu_custom_call.1} parent=11 // pred_region
          _
        $region60: #{tpu_custom_call.1} parent=11 // pred_fallthru
          _
        // Predicated region
        $region61: #{tpu_custom_call.1} parent=11 // pred_check
          %p498 = pneg %p358
        $region62: #{tpu_custom_call.1} parent=11 // pred_check_branch
          %500 = sbr.rel (%p498) target = $region64
        $region63: #{tpu_custom_call.1} parent=11 // pred_region
          _
        $region64: #{tpu_custom_call.1} parent=11 // pred_fallthru
          _
        // Predicated region
        $region65: #{tpu_custom_call.1} parent=11 // pred_check
          %p501 = pneg %p379
        $region66: #{tpu_custom_call.1} parent=11 // pred_check_branch
          %503 = sbr.rel (%p501) target = $region68
        $region67: #{tpu_custom_call.1} parent=11 // pred_region
          _
        $region68: #{tpu_custom_call.1} parent=11 // pred_fallthru
          _
        // Predicated region
        $region69: #{tpu_custom_call.1} parent=11 // pred_check
          %p504 = pneg %p400
        $region70: #{tpu_custom_call.1} parent=11 // pred_check_branch
          %506 = sbr.rel (%p504) target = $region72
        $region71: #{tpu_custom_call.1} parent=11 // pred_region
          _
        $region72: #{tpu_custom_call.1} parent=11 // pred_fallthru
          _
        // Predicated region
        $region73: #{tpu_custom_call.1} parent=11 // pred_check
          %p507 = pneg %p421
        $region74: #{tpu_custom_call.1} parent=11 // pred_check_branch
          %509 = sbr.rel (%p507) target = $region76
        $region75: #{tpu_custom_call.1} parent=11 // pred_region
          _
        $region76: #{tpu_custom_call.1} parent=11 // pred_fallthru
          _
      $region12: #{tpu_custom_call.1} parent=5 // pred_fallthru
        _
      %p510 = scmp.lt.s32.totalorder %s33, 2
      // Predicated region
      $region77: #{tpu_custom_call.1} parent=5 // pred_check
        %p511 = pneg %p510
      $region78: #{tpu_custom_call.1} parent=5 // pred_check_branch
        %513 = sbr.rel (%p511) target = $region80
      $region79: #{tpu_custom_call.1} parent=5 // pred_region
        // Predicated region
        $region81: #{tpu_custom_call.1} parent=79 // pred_check
          %p514 = pneg %p53
        $region82: #{tpu_custom_call.1} parent=79 // pred_check_branch
          %516 = sbr.rel (%p514) target = $region84
        $region83: #{tpu_custom_call.1} parent=79 // pred_region
          %s517 = sand.u32 %s43, 1
          %s518 = scalar_lea.sflag [#allocation7], %s517
          %s519 = sand.u32 %s43, 1
          %s520 = smul.addr %s519, 4
          %s521 = scalar_lea.vmem [#allocation6], %s520
          %s523 = ssub.s32 64, 64
          %524 = vsyncadd %s518, %s523
          %s525 = smul.addr %s33, 64
          %s526 = scalar_lea.hbm %s0, %s525
          %s528 = sshll.u32 %s521, 4
          %s529 = int_to_ptr.vmem [resolvable:$true] %s528
          %531 = dma.hbm_to_vmem [thread:$0]  %s526, 64, %s529, %s518
        $region84: #{tpu_custom_call.1} parent=79 // pred_fallthru
          _
        // Predicated region
        $region85: #{tpu_custom_call.1} parent=79 // pred_check
          %p532 = pneg %p79
        $region86: #{tpu_custom_call.1} parent=79 // pred_check_branch
          %534 = sbr.rel (%p532) target = $region88
        $region87: #{tpu_custom_call.1} parent=79 // pred_region
          %s535 = sand.u32 %s69, 1
          %s536 = scalar_lea.sflag [#allocation10], %s535
          %s537 = sand.u32 %s69, 1
          %s538 = smul.addr %s537, 4
          %s539 = scalar_lea.vmem [#allocation9], %s538
          %s541 = ssub.s32 64, 64
          %542 = vsyncadd %s536, %s541
          %s543 = smul.addr %s33, 64
          %s544 = scalar_lea.hbm %s1, %s543
          %s546 = sshll.u32 %s539, 4
          %s547 = int_to_ptr.vmem [resolvable:$true] %s546
          %549 = dma.hbm_to_vmem [thread:$0]  %s544, 64, %s547, %s536
        $region88: #{tpu_custom_call.1} parent=79 // pred_fallthru
          _
      $region80: #{tpu_custom_call.1} parent=5 // pred_fallthru
        _
      %p550 = scmp.le.s32.totalorder 1, %s33
      %p551 = scmp.lt.s32.totalorder %s33, 3
      %p552 = pnand %p550, %p551
      %p553 = pneg %p552
      // Predicated region
      $region89: #{tpu_custom_call.1} parent=5 // pred_check
        _
      $region90: #{tpu_custom_call.1} parent=5 // pred_check_branch
        %555 = sbr.rel (%p552) target = $region92
      $region91: #{tpu_custom_call.1} parent=5 // pred_region
        %s556 = ssub.s32 %s33, 1
        %s557 = sand.u32 %s46, 1
        %s558 = scalar_lea.sflag [#allocation7], %s557
        %s559 = sand.u32 %s46, 1
        %s560 = smul.addr %s559, 4
        %s561 = scalar_lea.vmem [#allocation6], %s560
        // Predicated region
        $region93: #{tpu_custom_call.1} parent=91 // pred_check
          %p562 = pneg %p59
        $region94: #{tpu_custom_call.1} parent=91 // pred_check_branch
          %564 = sbr.rel (%p562) target = $region96
        $region95: #{tpu_custom_call.1} parent=91 // pred_region
          %565 = dma.done %s558, 64
        $region96: #{tpu_custom_call.1} parent=91 // pred_fallthru
          _
        %s566 = sand.u32 %s72, 1
        %s567 = scalar_lea.sflag [#allocation10], %s566
        %s568 = sand.u32 %s72, 1
        %s569 = smul.addr %s568, 4
        %s570 = scalar_lea.vmem [#allocation9], %s569
        // Predicated region
        $region97: #{tpu_custom_call.1} parent=91 // pred_check
          %p571 = pneg %p85
        $region98: #{tpu_custom_call.1} parent=91 // pred_check_branch
          %573 = sbr.rel (%p571) target = $region100
        $region99: #{tpu_custom_call.1} parent=91 // pred_region
          %574 = dma.done %s567, 64
        $region100: #{tpu_custom_call.1} parent=91 // pred_fallthru
          _
        %s575 = sand.u32 %s46, 1
        %s576 = scalar_lea.sflag [#allocation7], %s575
        %s577 = sand.u32 %s46, 1
        %s578 = smul.addr %s577, 4
        %s579 = scalar_lea.vmem [#allocation6], %s578
        %p580 = pneg %p59
        %p581 = pneg %p56
        %s582 = sand.u32 %s72, 1
        %s583 = scalar_lea.sflag [#allocation10], %s582
        %s584 = sand.u32 %s72, 1
        %s585 = smul.addr %s584, 4
        %s586 = scalar_lea.vmem [#allocation9], %s585
        %p587 = pneg %p85
        %p588 = pneg %p82
        %p589 = pneg %p106
        %p590 = pneg %p103
        %p591 = pneg %p127
        %p592 = pneg %p124
        %p593 = pneg %p148
        %p594 = pneg %p145
        %p595 = pneg %p169
        %p596 = pneg %p166
        %p597 = pneg %p190
        %p598 = pneg %p187
        %p599 = pneg %p211
        %p600 = pneg %p208
        %p601 = pneg %p232
        %p602 = pneg %p229
        %p603 = pneg %p253
        %p604 = pneg %p250
        %p605 = pneg %p274
        %p606 = pneg %p271
        %p607 = pneg %p295
        %p608 = pneg %p292
        %p609 = pneg %p316
        %p610 = pneg %p313
        %p611 = pneg %p337
        %p612 = pneg %p334
        %p613 = pneg %p358
        %p614 = pneg %p355
        %p615 = pneg %p379
        %p616 = pneg %p376
        %p617 = pneg %p400
        %p618 = pneg %p397
        %p619 = pneg %p421
        %p620 = pneg %p418
        %p621 = pneg %p447
        %p622 = pneg %p444
        %s623 = sand.u32 %s434, 1
        %s624 = scalar_lea.sflag [#allocation8], %s623
        %s625 = sand.u32 %s434, 1
        %s626 = smul.addr %s625, 8
        %s627 = scalar_lea.vmem [#allocation11], %s626
        %v629 = vld [vmem:[%s561] sm:$0xf]
        %v630 = vld [vmem:[%s570] sm:$0xf]
        %v631 = vld [vmem:[%s2] sm:$0xf]
        %v632 = vld [vmem:[%s2 + $0x4] sm:$0xf]
        %v633 = vld [vmem:[%s2 + $0x8] sm:$0xf]
        %v634 = vld [vmem:[%s2 + $0xc] sm:$0xf]
        %v635 = vld [vmem:[%s3] sm:$0xf]
        %v636 = vld [vmem:[%s3 + $0x4] sm:$0xf]
        %v637 = vld [vmem:[%s3 + $0x8] sm:$0xf]
        %v638 = vld [vmem:[%s3 + $0xc] sm:$0xf]
        %v643 = vunpack.c.l.b16 %v635
        %v644 = vunpack.c.l.b16 %v636
        %v645 = vunpack.c.l.b16 %v637
        %v646 = vunpack.c.l.b16 %v638
        %v647 = vpack.c.b16 %v644, %v643
        %v648 = vpack.c.b16 %v646, %v645
        %vm651 = vcmask 261120
        %v653 = vsel %vm651, %v630, 0
        %655 = vmatprep.subr.bf16.mxu0 0
        %656 = vmatpush1.bf16.msra.mxu0 %v647
        %657 = vmatprep.subr.bf16.mxu0 0
        %658 = vmatpush1.bf16.msra.mxu0 %v648
        %659 = vmatprep.subr.bf16.mxu0 0
        %660 = vmatpush1.bf16.msra.mxu0 0
        %661 = vmatprep.subr.bf16.mxu0 0
        %662 = vmatpush1.bf16.msra.mxu0 0
        %663 = vmatprep.subr.bf16.mxu0 0
        %664 = vmatpush1.bf16.msra.mxu0 0
        %665 = vmatprep.subr.bf16.mxu0 0
        %666 = vmatpush1.bf16.msra.mxu0 0
        %667 = vmatprep.subr.bf16.mxu0 0
        %668 = vmatpush1.bf16.msra.mxu0 0
        %669 = vmatprep.subr.bf16.mxu0 0
        %670 = vmatpush1.bf16.msra.mxu0 0
        %671 = vmatprep.subr.bf16.mxu0 0
        %672 = vmatpush1.bf16.msra.mxu0 0
        %673 = vmatprep.subr.bf16.mxu0 0
        %674 = vmatpush1.bf16.msra.mxu0 0
        %675 = vmatprep.subr.bf16.mxu0 0
        %676 = vmatpush1.bf16.msra.mxu0 0
        %677 = vmatprep.subr.bf16.mxu0 0
        %678 = vmatpush1.bf16.msra.mxu0 0
        %679 = vmatprep.subr.bf16.mxu0 0
        %680 = vmatpush1.bf16.msra.mxu0 0
        %681 = vmatprep.subr.bf16.mxu0 0
        %682 = vmatpush1.bf16.msra.mxu0 0
        %683 = vmatprep.subr.bf16.mxu0 0
        %684 = vmatpush1.bf16.msra.mxu0 0
        %685 = vmatprep.subr.bf16.mxu0 0
        %686 = vmatpush1.bf16.msra.mxu0 0
        %687 = vmatprep.mubr.bf16.mxu0 0
        %688 = vmatmul.mubr.bf16.gmra.mrb[0].mxu0 %v653
        %v689 = vpop.f32.mrb[0].mxu0
        %v690 = vadd.f32 0.0, %v689
        %v691 = vpop.f32.mrb[0].mxu0
        %v692 = vpop.f32.mrb[0].mxu0
        %v693 = vpop.f32.mrb[0].mxu0
        %694 = vdwg.mxu0
        %v699 = vunpack.c.l.b16 %v631
        %v700 = vunpack.c.l.b16 %v632
        %v701 = vunpack.c.l.b16 %v633
        %v702 = vunpack.c.l.b16 %v634
        %v703 = vpack.c.b16 %v700, %v699
        %v704 = vpack.c.b16 %v702, %v701
        %v708 = vsel %vm651, %v629, 0
        %710 = vmatprep.subr.bf16.mxu0 0
        %711 = vmatpush1.bf16.msra.mxu0 %v703
        %712 = vmatprep.subr.bf16.mxu0 0
        %713 = vmatpush1.bf16.msra.mxu0 %v704
        %714 = vmatprep.subr.bf16.mxu0 0
        %715 = vmatpush1.bf16.msra.mxu0 0
        %716 = vmatprep.subr.bf16.mxu0 0
        %717 = vmatpush1.bf16.msra.mxu0 0
        %718 = vmatprep.subr.bf16.mxu0 0
        %719 = vmatpush1.bf16.msra.mxu0 0
        %720 = vmatprep.subr.bf16.mxu0 0
        %721 = vmatpush1.bf16.msra.mxu0 0
        %722 = vmatprep.subr.bf16.mxu0 0
        %723 = vmatpush1.bf16.msra.mxu0 0
        %724 = vmatprep.subr.bf16.mxu0 0
        %725 = vmatpush1.bf16.msra.mxu0 0
        %726 = vmatprep.subr.bf16.mxu0 0
        %727 = vmatpush1.bf16.msra.mxu0 0
        %728 = vmatprep.subr.bf16.mxu0 0
        %729 = vmatpush1.bf16.msra.mxu0 0
        %730 = vmatprep.subr.bf16.mxu0 0
        %731 = vmatpush1.bf16.msra.mxu0 0
        %732 = vmatprep.subr.bf16.mxu0 0
        %733 = vmatpush1.bf16.msra.mxu0 0
        %734 = vmatprep.subr.bf16.mxu0 0
        %735 = vmatpush1.bf16.msra.mxu0 0
        %736 = vmatprep.subr.bf16.mxu0 0
        %737 = vmatpush1.bf16.msra.mxu0 0
        %738 = vmatprep.subr.bf16.mxu0 0
        %739 = vmatpush1.bf16.msra.mxu0 0
        %740 = vmatprep.subr.bf16.mxu0 0
        %741 = vmatpush1.bf16.msra.mxu0 0
        %742 = vmatprep.mubr.bf16.mxu0 0
        %743 = vmatmul.mubr.bf16.gmra.mrb[0].mxu0 %v708
        %v744 = vpop.f32.mrb[0].mxu0
        %v745 = vadd.f32 %v690, %v744
        %v746 = vpop.f32.mrb[0].mxu0
        %v747 = vpop.f32.mrb[0].mxu0
        %v748 = vpop.f32.mrb[0].mxu0
        %749 = vdwg.mxu0
        %v750 = vld [vmem:[%s4] sm:$0x1]
        %v752 = vlaneseq
        %v753 = vshrl.u32 %v752, 7
        %v754 = vsub.s32 0, %v753
        %v755 = vrot.slane %v750, %v754
        %v757 = vadd.f32 %v745, %v755
        %v758 = vld [vmem:[%s5] sm:$0x1]
        %v759 = vld [vmem:[%s6] sm:$0x1]
        %v760 = vsel %vm651, %v757, 0.0
        %761 = vadd.xlane.f32.xlu0 %v760
        %v762 = vpop.xlane.xlu0 %761
        %v763 = vrcp.pop 32.0
        %v764 = vmul.f32 %v762, %v763
        %v765 = vsub.f32 %v757, %v764
        %v766 = vmul.f32 %v765, %v765
        %v767 = vsel %vm651, %v766, 0.0
        %768 = vadd.xlane.f32.xlu0 %v767
        %v769 = vpop.xlane.xlu0 %768
        %v770 = vmul.f32 %v769, %v763
        %v771 = vadd.f32 %v770, 1e-05
        %v772 = vrsqrt.pop %v771
        %v773 = vmul.f32 %v765, %v772
        %v775 = vlaneseq
        %v776 = vshrl.u32 %v775, 7
        %v777 = vsub.s32 0, %v776
        %v778 = vrot.slane %v758, %v777
        %v780 = vmul.f32 %v773, %v778
        %v782 = vlaneseq
        %v783 = vshrl.u32 %v782, 7
        %v784 = vsub.s32 0, %v783
        %v785 = vrot.slane %v759, %v784
        %v787 = vadd.f32 %v780, %v785
        %v788 = vpack.c.bf16 %v787, %v787
        %v789 = vld [vmem:[%s7] sm:$0xf]
        %v790 = vld [vmem:[%s7 + $0x4] sm:$0xf]
        %v791 = vld [vmem:[%s7 + $0x8] sm:$0xf]
        %v792 = vld [vmem:[%s7 + $0xc] sm:$0xf]
        %v797 = vunpack.c.l.b16 %v789
        %v798 = vunpack.c.l.b16 %v790
        %v799 = vunpack.c.l.b16 %v791
        %v800 = vunpack.c.l.b16 %v792
        %v801 = vpack.c.b16 %v798, %v797
        %v802 = vpack.c.b16 %v800, %v799
        %v806 = vsel %vm651, %v788, 0
        %808 = vmatprep.subr.bf16.mxu0 0
        %809 = vmatpush1.bf16.msra.mxu0 %v801
        %810 = vmatprep.subr.bf16.mxu0 0
        %811 = vmatpush1.bf16.msra.mxu0 %v802
        %812 = vmatprep.subr.bf16.mxu0 0
        %813 = vmatpush1.bf16.msra.mxu0 0
        %814 = vmatprep.subr.bf16.mxu0 0
        %815 = vmatpush1.bf16.msra.mxu0 0
        %816 = vmatprep.subr.bf16.mxu0 0
        %817 = vmatpush1.bf16.msra.mxu0 0
        %818 = vmatprep.subr.bf16.mxu0 0
        %819 = vmatpush1.bf16.msra.mxu0 0
        %820 = vmatprep.subr.bf16.mxu0 0
        %821 = vmatpush1.bf16.msra.mxu0 0
        %822 = vmatprep.subr.bf16.mxu0 0
        %823 = vmatpush1.bf16.msra.mxu0 0
        %824 = vmatprep.subr.bf16.mxu0 0
        %825 = vmatpush1.bf16.msra.mxu0 0
        %826 = vmatprep.subr.bf16.mxu0 0
        %827 = vmatpush1.bf16.msra.mxu0 0
        %828 = vmatprep.subr.bf16.mxu0 0
        %829 = vmatpush1.bf16.msra.mxu0 0
        %830 = vmatprep.subr.bf16.mxu0 0
        %831 = vmatpush1.bf16.msra.mxu0 0
        %832 = vmatprep.subr.bf16.mxu0 0
        %833 = vmatpush1.bf16.msra.mxu0 0
        %834 = vmatprep.subr.bf16.mxu0 0
        %835 = vmatpush1.bf16.msra.mxu0 0
        %836 = vmatprep.subr.bf16.mxu0 0
        %837 = vmatpush1.bf16.msra.mxu0 0
        %838 = vmatprep.subr.bf16.mxu0 0
        %839 = vmatpush1.bf16.msra.mxu0 0
        %840 = vmatprep.mubr.bf16.mxu0 0
        %841 = vmatmul.mubr.bf16.gmra.mrb[0].mxu0 %v806
        %v842 = vpop.f32.mrb[0].mxu0
        %v843 = vadd.f32 0.0, %v842
        %v844 = vpop.f32.mrb[0].mxu0
        %v845 = vpop.f32.mrb[0].mxu0
        %v846 = vpop.f32.mrb[0].mxu0
        %847 = vdwg.mxu0
        %v848 = vpack.c.bf16 %v843, %v843
        %vm849 = vcmask 60416
        %850 = vst.msk [vmem:[#allocation2] sm:$0xf] %vm849, %v848
        %v852 = vunpack.c.l.b16 %v848
        %v853 = vpack.c.b16 %v852, %v852
        %854 = vrot.lane.b32.xlu0 %v853, 96
        %v855 = vpop.permute.xlu0 %854
        %857 = vst.msk [vmem:[#allocation3] sm:$0xf] %vm849, %v855
        %858 = vrot.lane.b32.xlu0 %v853, 64
        %v859 = vpop.permute.xlu0 %858
        %861 = vst.msk [vmem:[#allocation4] sm:$0xf] %vm849, %v859
        %862 = vrot.lane.b32.xlu0 %v853, 120
        %v863 = vpop.permute.xlu0 %862
        %s865 = scalar_lea.vmem [#allocation2], 4
        %866 = vst.msk [vmem:[%s865] sm:$0xf] %vm849, %v863
        %867 = vrot.lane.b32.xlu0 %v853, 88
        %v868 = vpop.permute.xlu0 %867
        %s870 = scalar_lea.vmem [#allocation3], 4
        %871 = vst.msk [vmem:[%s870] sm:$0xf] %vm849, %v868
        %872 = vrot.lane.b32.xlu0 %v853, 56
        %v873 = vpop.permute.xlu0 %872
        %s875 = scalar_lea.vmem [#allocation4], 4
        %876 = vst.msk [vmem:[%s875] sm:$0xf] %vm849, %v873
        %877 = vrot.lane.b32.xlu0 %v853, 112
        %v878 = vpop.permute.xlu0 %877
        %s880 = scalar_lea.vmem [#allocation2], 8
        %881 = vst.msk [vmem:[%s880] sm:$0xf] %vm849, %v878
        %882 = vrot.lane.b32.xlu0 %v853, 80
        %v883 = vpop.permute.xlu0 %882
        %s885 = scalar_lea.vmem [#allocation3], 8
        %886 = vst.msk [vmem:[%s885] sm:$0xf] %vm849, %v883
        %887 = vrot.lane.b32.xlu0 %v853, 48
        %v888 = vpop.permute.xlu0 %887
        %s890 = scalar_lea.vmem [#allocation4], 8
        %891 = vst.msk [vmem:[%s890] sm:$0xf] %vm849, %v888
        %892 = vrot.lane.b32.xlu0 %v853, 104
        %v893 = vpop.permute.xlu0 %892
        %s895 = scalar_lea.vmem [#allocation2], 12
        %896 = vst.msk [vmem:[%s895] sm:$0xf] %vm849, %v893
        %897 = vrot.lane.b32.xlu0 %v853, 72
        %v898 = vpop.permute.xlu0 %897
        %s900 = scalar_lea.vmem [#allocation3], 12
        %901 = vst.msk [vmem:[%s900] sm:$0xf] %vm849, %v898
        %902 = vrot.lane.b32.xlu0 %v853, 40
        %v903 = vpop.permute.xlu0 %902
        %s905 = scalar_lea.vmem [#allocation4], 12
        %906 = vst.msk [vmem:[%s905] sm:$0xf] %vm849, %v903
        %v907 = vld [vmem:[#allocation2] sm:$0xf]
        %v908 = vld [vmem:[#allocation2 + $0x4] sm:$0xf]
        %v909 = vld [vmem:[#allocation2 + $0x8] sm:$0xf]
        %v910 = vld [vmem:[#allocation2 + $0xc] sm:$0xf]
        %v911 = vld [vmem:[#allocation3] sm:$0xf]
        %v912 = vld [vmem:[#allocation3 + $0x4] sm:$0xf]
        %v913 = vld [vmem:[#allocation3 + $0x8] sm:$0xf]
        %v914 = vld [vmem:[#allocation3 + $0xc] sm:$0xf]
        %v915 = vld [vmem:[#allocation4] sm:$0xf]
        %v916 = vld [vmem:[#allocation4 + $0x4] sm:$0xf]
        %v917 = vld [vmem:[#allocation4 + $0x8] sm:$0xf]
        %v918 = vld [vmem:[#allocation4 + $0xc] sm:$0xf]
        %vm919 = vcmask 64512
        %v921 = vsel %vm919, %v907, 0
        %v924 = vsel %vm919, %v911, 0
        %926 = vmatprep.subr.bf16.mxu0 0
        %927 = vmatpush1.bf16.xpose.msra.mxu0 %v924
        %928 = vmatprep.subr.bf16.mxu0 0
        %929 = vmatpush1.bf16.xpose.msra.mxu0 0
        %930 = vmatprep.subr.bf16.mxu0 0
        %931 = vmatpush1.bf16.xpose.msra.mxu0 0
        %932 = vmatprep.subr.bf16.mxu0 0
        %933 = vmatpush1.bf16.xpose.msra.mxu0 0
        %934 = vmatprep.subr.bf16.mxu0 0
        %935 = vmatpush1.bf16.xpose.msra.mxu0 0
        %936 = vmatprep.subr.bf16.mxu0 0
        %937 = vmatpush1.bf16.xpose.msra.mxu0 0
        %938 = vmatprep.subr.bf16.mxu0 0
        %939 = vmatpush1.bf16.xpose.msra.mxu0 0
        %940 = vmatprep.subr.bf16.mxu0 0
        %941 = vmatpush1.bf16.xpose.msra.mxu0 0
        %942 = vmatprep.subr.bf16.mxu0 0
        %943 = vmatpush1.bf16.xpose.msra.mxu0 0
        %944 = vmatprep.subr.bf16.mxu0 0
        %945 = vmatpush1.bf16.xpose.msra.mxu0 0
        %946 = vmatprep.subr.bf16.mxu0 0
        %947 = vmatpush1.bf16.xpose.msra.mxu0 0
        %948 = vmatprep.subr.bf16.mxu0 0
        %949 = vmatpush1.bf16.xpose.msra.mxu0 0
        %950 = vmatprep.subr.bf16.mxu0 0
        %951 = vmatpush1.bf16.xpose.msra.mxu0 0
        %952 = vmatprep.subr.bf16.mxu0 0
        %953 = vmatpush1.bf16.xpose.msra.mxu0 0
        %954 = vmatprep.subr.bf16.mxu0 0
        %955 = vmatpush1.bf16.xpose.msra.mxu0 0
        %956 = vmatprep.subr.bf16.mxu0 0
        %957 = vmatpush1.bf16.xpose.msra.mxu0 0
        %958 = vmatprep.mubr.bf16.mxu0 0
        %959 = vmatmul.mubr.bf16.gmra.mrb[0].mxu0 %v921
        %v960 = vpop.f32.mrb[0].mxu0
        %v961 = vadd.f32 0.0, %v960
        %v962 = vpop.f32.mrb[0].mxu0
        %v963 = vpop.f32.mrb[0].mxu0
        %v964 = vpop.f32.mrb[0].mxu0
        %965 = vdwg.mxu0
        %v967 = vsel %vm919, %v908, 0
        %v970 = vsel %vm919, %v912, 0
        %972 = vmatprep.subr.bf16.mxu0 0
        %973 = vmatpush1.bf16.xpose.msra.mxu0 %v970
        %974 = vmatprep.subr.bf16.mxu0 0
        %975 = vmatpush1.bf16.xpose.msra.mxu0 0
        %976 = vmatprep.subr.bf16.mxu0 0
        %977 = vmatpush1.bf16.xpose.msra.mxu0 0
        %978 = vmatprep.subr.bf16.mxu0 0
        %979 = vmatpush1.bf16.xpose.msra.mxu0 0
        %980 = vmatprep.subr.bf16.mxu0 0
        %981 = vmatpush1.bf16.xpose.msra.mxu0 0
        %982 = vmatprep.subr.bf16.mxu0 0
        %983 = vmatpush1.bf16.xpose.msra.mxu0 0
        %984 = vmatprep.subr.bf16.mxu0 0
        %985 = vmatpush1.bf16.xpose.msra.mxu0 0
        %986 = vmatprep.subr.bf16.mxu0 0
        %987 = vmatpush1.bf16.xpose.msra.mxu0 0
        %988 = vmatprep.subr.bf16.mxu0 0
        %989 = vmatpush1.bf16.xpose.msra.mxu0 0
        %990 = vmatprep.subr.bf16.mxu0 0
        %991 = vmatpush1.bf16.xpose.msra.mxu0 0
        %992 = vmatprep.subr.bf16.mxu0 0
        %993 = vmatpush1.bf16.xpose.msra.mxu0 0
        %994 = vmatprep.subr.bf16.mxu0 0
        %995 = vmatpush1.bf16.xpose.msra.mxu0 0
        %996 = vmatprep.subr.bf16.mxu0 0
        %997 = vmatpush1.bf16.xpose.msra.mxu0 0
        %998 = vmatprep.subr.bf16.mxu0 0
        %999 = vmatpush1.bf16.xpose.msra.mxu0 0
        %1000 = vmatprep.subr.bf16.mxu0 0
        %1001 = vmatpush1.bf16.xpose.msra.mxu0 0
        %1002 = vmatprep.subr.bf16.mxu0 0
        %1003 = vmatpush1.bf16.xpose.msra.mxu0 0
        %1004 = vmatprep.mubr.bf16.mxu0 0
        %1005 = vmatmul.mubr.bf16.gmra.mrb[0].mxu0 %v967
        %v1006 = vpop.f32.mrb[0].mxu0
        %v1007 = vadd.f32 0.0, %v1006
        %v1008 = vpop.f32.mrb[0].mxu0
        %v1009 = vpop.f32.mrb[0].mxu0
        %v1010 = vpop.f32.mrb[0].mxu0
        %1011 = vdwg.mxu0
        %v1013 = vsel %vm919, %v909, 0
        %v1016 = vsel %vm919, %v913, 0
        %1018 = vmatprep.subr.bf16.mxu0 0
        %1019 = vmatpush1.bf16.xpose.msra.mxu0 %v1016
        %1020 = vmatprep.subr.bf16.mxu0 0
        %1021 = vmatpush1.bf16.xpose.msra.mxu0 0
        %1022 = vmatprep.subr.bf16.mxu0 0
        %1023 = vmatpush1.bf16.xpose.msra.mxu0 0
        %1024 = vmatprep.subr.bf16.mxu0 0
        %1025 = vmatpush1.bf16.xpose.msra.mxu0 0
        %1026 = vmatprep.subr.bf16.mxu0 0
        %1027 = vmatpush1.bf16.xpose.msra.mxu0 0
        %1028 = vmatprep.subr.bf16.mxu0 0
        %1029 = vmatpush1.bf16.xpose.msra.mxu0 0
        %1030 = vmatprep.subr.bf16.mxu0 0
        %1031 = vmatpush1.bf16.xpose.msra.mxu0 0
        %1032 = vmatprep.subr.bf16.mxu0 0
        %1033 = vmatpush1.bf16.xpose.msra.mxu0 0
        %1034 = vmatprep.subr.bf16.mxu0 0
        %1035 = vmatpush1.bf16.xpose.msra.mxu0 0
        %1036 = vmatprep.subr.bf16.mxu0 0
        %1037 = vmatpush1.bf16.xpose.msra.mxu0 0
        %1038 = vmatprep.subr.bf16.mxu0 0
        %1039 = vmatpush1.bf16.xpose.msra.mxu0 0
        %1040 = vmatprep.subr.bf16.mxu0 0
        %1041 = vmatpush1.bf16.xpose.msra.mxu0 0
        %1042 = vmatprep.subr.bf16.mxu0 0
        %1043 = vmatpush1.bf16.xpose.msra.mxu0 0
        %1044 = vmatprep.subr.bf16.mxu0 0
        %1045 = vmatpush1.bf16.xpose.msra.mxu0 0
        %1046 = vmatprep.subr.bf16.mxu0 0
        %1047 = vmatpush1.bf16.xpose.msra.mxu0 0
        %1048 = vmatprep.subr.bf16.mxu0 0
        %1049 = vmatpush1.bf16.xpose.msra.mxu0 0
        %1050 = vmatprep.mubr.bf16.mxu0 0
        %1051 = vmatmul.mubr.bf16.gmra.mrb[0].mxu0 %v1013
        %v1052 = vpop.f32.mrb[0].mxu0
        %v1053 = vadd.f32 0.0, %v1052
        %v1054 = vpop.f32.mrb[0].mxu0
        %v1055 = vpop.f32.mrb[0].mxu0
        %v1056 = vpop.f32.mrb[0].mxu0
        %1057 = vdwg.mxu0
        %v1059 = vsel %vm919, %v910, 0
        %v1062 = vsel %vm919, %v914, 0
        %1064 = vmatprep.subr.bf16.mxu0 0
        %1065 = vmatpush1.bf16.xpose.msra.mxu0 %v1062
        %1066 = vmatprep.subr.bf16.mxu0 0
        %1067 = vmatpush1.bf16.xpose.msra.mxu0 0
        %1068 = vmatprep.subr.bf16.mxu0 0
        %1069 = vmatpush1.bf16.xpose.msra.mxu0 0
        %1070 = vmatprep.subr.bf16.mxu0 0
        %1071 = vmatpush1.bf16.xpose.msra.mxu0 0
        %1072 = vmatprep.subr.bf16.mxu0 0
        %1073 = vmatpush1.bf16.xpose.msra.mxu0 0
        %1074 = vmatprep.subr.bf16.mxu0 0
        %1075 = vmatpush1.bf16.xpose.msra.mxu0 0
        %1076 = vmatprep.subr.bf16.mxu0 0
        %1077 = vmatpush1.bf16.xpose.msra.mxu0 0
        %1078 = vmatprep.subr.bf16.mxu0 0
        %1079 = vmatpush1.bf16.xpose.msra.mxu0 0
        %1080 = vmatprep.subr.bf16.mxu0 0
        %1081 = vmatpush1.bf16.xpose.msra.mxu0 0
        %1082 = vmatprep.subr.bf16.mxu0 0
        %1083 = vmatpush1.bf16.xpose.msra.mxu0 0
        %1084 = vmatprep.subr.bf16.mxu0 0
        %1085 = vmatpush1.bf16.xpose.msra.mxu0 0
        %1086 = vmatprep.subr.bf16.mxu0 0
        %1087 = vmatpush1.bf16.xpose.msra.mxu0 0
        %1088 = vmatprep.subr.bf16.mxu0 0
        %1089 = vmatpush1.bf16.xpose.msra.mxu0 0
        %1090 = vmatprep.subr.bf16.mxu0 0
        %1091 = vmatpush1.bf16.xpose.msra.mxu0 0
        %1092 = vmatprep.subr.bf16.mxu0 0
        %1093 = vmatpush1.bf16.xpose.msra.mxu0 0
        %1094 = vmatprep.subr.bf16.mxu0 0
        %1095 = vmatpush1.bf16.xpose.msra.mxu0 0
        %1096 = vmatprep.mubr.bf16.mxu0 0
        %1097 = vmatmul.mubr.bf16.gmra.mrb[0].mxu0 %v1059
        %v1098 = vpop.f32.mrb[0].mxu0
        %v1099 = vadd.f32 0.0, %v1098
        %v1100 = vpop.f32.mrb[0].mxu0
        %v1101 = vpop.f32.mrb[0].mxu0
        %v1102 = vpop.f32.mrb[0].mxu0
        %1103 = vdwg.mxu0
        %v1104 = vsel %vm919, %v961, -inf
        %1105 = vmax.xlane.f32.xlu0 %v1104
        %v1106 = vpop.xlane.xlu0 %1105
        %v1107 = vsel %vm919, %v1007, -inf
        %1108 = vmax.xlane.f32.xlu0 %v1107
        %v1109 = vpop.xlane.xlu0 %1108
        %v1110 = vsel %vm919, %v1053, -inf
        %1111 = vmax.xlane.f32.xlu0 %v1110
        %v1112 = vpop.xlane.xlu0 %1111
        %v1113 = vsel %vm919, %v1099, -inf
        %1114 = vmax.xlane.f32.xlu0 %v1113
        %v1115 = vpop.xlane.xlu0 %1114
        %v1116 = vsub.f32 %v961, %v1106
        %v1117 = vsub.f32 %v1007, %v1109
        %v1118 = vsub.f32 %v1053, %v1112
        %v1119 = vsub.f32 %v1099, %v1115
        %v1120 = vmul.f32 %v1116, 1.442695
        %v1121 = vpow.pop %v1120
        %v1122 = vmul.f32 %v1117, 1.442695
        %v1123 = vpow.pop %v1122
        %v1124 = vmul.f32 %v1118, 1.442695
        %v1125 = vpow.pop %v1124
        %v1126 = vmul.f32 %v1119, 1.442695
        %v1127 = vpow.pop %v1126
        %v1128 = vsel %vm919, %v1121, 0.0
        %1129 = vadd.xlane.f32.xlu0 %v1128
        %v1130 = vpop.xlane.xlu0 %1129
        %v1131 = vsel %vm919, %v1123, 0.0
        %1132 = vadd.xlane.f32.xlu0 %v1131
        %v1133 = vpop.xlane.xlu0 %1132
        %v1134 = vsel %vm919, %v1125, 0.0
        %1135 = vadd.xlane.f32.xlu0 %v1134
        %v1136 = vpop.xlane.xlu0 %1135
        %v1137 = vsel %vm919, %v1127, 0.0
        %1138 = vadd.xlane.f32.xlu0 %v1137
        %v1139 = vpop.xlane.xlu0 %1138
        %v1140 = vrcp.pop %v1130
        %v1141 = vrcp.pop %v1133
        %v1142 = vrcp.pop %v1136
        %v1143 = vrcp.pop %v1139
        %v1144 = vmul.f32 %v1121, %v1140
        %v1145 = vmul.f32 %v1123, %v1141
        %v1146 = vmul.f32 %v1125, %v1142
        %v1147 = vmul.f32 %v1127, %v1143
        %v1148 = vpack.c.bf16 %v1144, %v1144
        %v1149 = vpack.c.bf16 %v1145, %v1145
        %v1150 = vpack.c.bf16 %v1146, %v1146
        %v1151 = vpack.c.bf16 %v1147, %v1147
        %v1153 = vsel %vm919, %v1148, 0
        %vm1155 = vcmask 1043456
        %v1157 = vsel %vm1155, %v915, 0
        %1159 = vmatprep.subr.bf16.mxu0 0
        %1160 = vmatpush1.bf16.msra.mxu0 %v1157
        %1161 = vmatprep.subr.bf16.mxu0 0
        %1162 = vmatpush1.bf16.msra.mxu0 0
        %1163 = vmatprep.subr.bf16.mxu0 0
        %1164 = vmatpush1.bf16.msra.mxu0 0
        %1165 = vmatprep.subr.bf16.mxu0 0
        %1166 = vmatpush1.bf16.msra.mxu0 0
        %1167 = vmatprep.subr.bf16.mxu0 0
        %1168 = vmatpush1.bf16.msra.mxu0 0
        %1169 = vmatprep.subr.bf16.mxu0 0
        %1170 = vmatpush1.bf16.msra.mxu0 0
        %1171 = vmatprep.subr.bf16.mxu0 0
        %1172 = vmatpush1.bf16.msra.mxu0 0
        %1173 = vmatprep.subr.bf16.mxu0 0
        %1174 = vmatpush1.bf16.msra.mxu0 0
        %1175 = vmatprep.subr.bf16.mxu0 0
        %1176 = vmatpush1.bf16.msra.mxu0 0
        %1177 = vmatprep.subr.bf16.mxu0 0
        %1178 = vmatpush1.bf16.msra.mxu0 0
        %1179 = vmatprep.subr.bf16.mxu0 0
        %1180 = vmatpush1.bf16.msra.mxu0 0
        %1181 = vmatprep.subr.bf16.mxu0 0
        %1182 = vmatpush1.bf16.msra.mxu0 0
        %1183 = vmatprep.subr.bf16.mxu0 0
        %1184 = vmatpush1.bf16.msra.mxu0 0
        %1185 = vmatprep.subr.bf16.mxu0 0
        %1186 = vmatpush1.bf16.msra.mxu0 0
        %1187 = vmatprep.subr.bf16.mxu0 0
        %1188 = vmatpush1.bf16.msra.mxu0 0
        %1189 = vmatprep.subr.bf16.mxu0 0
        %1190 = vmatpush1.bf16.msra.mxu0 0
        %1191 = vmatprep.mubr.bf16.mxu0 0
        %1192 = vmatmul.mubr.bf16.gmra.mrb[0].mxu0 %v1153
        %v1193 = vpop.f32.mrb[0].mxu0
        %v1194 = vadd.f32 0.0, %v1193
        %v1195 = vpop.f32.mrb[0].mxu0
        %v1196 = vpop.f32.mrb[0].mxu0
        %v1197 = vpop.f32.mrb[0].mxu0
        %1198 = vdwg.mxu0
        %v1200 = vsel %vm919, %v1149, 0
        %v1203 = vsel %vm1155, %v916, 0
        %1205 = vmatprep.subr.bf16.mxu0 0
        %1206 = vmatpush1.bf16.msra.mxu0 %v1203
        %1207 = vmatprep.subr.bf16.mxu0 0
        %1208 = vmatpush1.bf16.msra.mxu0 0
        %1209 = vmatprep.subr.bf16.mxu0 0
        %1210 = vmatpush1.bf16.msra.mxu0 0
        %1211 = vmatprep.subr.bf16.mxu0 0
        %1212 = vmatpush1.bf16.msra.mxu0 0
        %1213 = vmatprep.subr.bf16.mxu0 0
        %1214 = vmatpush1.bf16.msra.mxu0 0
        %1215 = vmatprep.subr.bf16.mxu0 0
        %1216 = vmatpush1.bf16.msra.mxu0 0
        %1217 = vmatprep.subr.bf16.mxu0 0
        %1218 = vmatpush1.bf16.msra.mxu0 0
        %1219 = vmatprep.subr.bf16.mxu0 0
        %1220 = vmatpush1.bf16.msra.mxu0 0
        %1221 = vmatprep.subr.bf16.mxu0 0
        %1222 = vmatpush1.bf16.msra.mxu0 0
        %1223 = vmatprep.subr.bf16.mxu0 0
        %1224 = vmatpush1.bf16.msra.mxu0 0
        %1225 = vmatprep.subr.bf16.mxu0 0
        %1226 = vmatpush1.bf16.msra.mxu0 0
        %1227 = vmatprep.subr.bf16.mxu0 0
        %1228 = vmatpush1.bf16.msra.mxu0 0
        %1229 = vmatprep.subr.bf16.mxu0 0
        %1230 = vmatpush1.bf16.msra.mxu0 0
        %1231 = vmatprep.subr.bf16.mxu0 0
        %1232 = vmatpush1.bf16.msra.mxu0 0
        %1233 = vmatprep.subr.bf16.mxu0 0
        %1234 = vmatpush1.bf16.msra.mxu0 0
        %1235 = vmatprep.subr.bf16.mxu0 0
        %1236 = vmatpush1.bf16.msra.mxu0 0
        %1237 = vmatprep.mubr.bf16.mxu0 0
        %1238 = vmatmul.mubr.bf16.gmra.mrb[0].mxu0 %v1200
        %v1239 = vpop.f32.mrb[0].mxu0
        %v1240 = vadd.f32 0.0, %v1239
        %v1241 = vpop.f32.mrb[0].mxu0
        %v1242 = vpop.f32.mrb[0].mxu0
        %v1243 = vpop.f32.mrb[0].mxu0
        %1244 = vdwg.mxu0
        %v1246 = vsel %vm919, %v1150, 0
        %v1249 = vsel %vm1155, %v917, 0
        %1251 = vmatprep.subr.bf16.mxu0 0
        %1252 = vmatpush1.bf16.msra.mxu0 %v1249
        %1253 = vmatprep.subr.bf16.mxu0 0
        %1254 = vmatpush1.bf16.msra.mxu0 0
        %1255 = vmatprep.subr.bf16.mxu0 0
        %1256 = vmatpush1.bf16.msra.mxu0 0
        %1257 = vmatprep.subr.bf16.mxu0 0
        %1258 = vmatpush1.bf16.msra.mxu0 0
        %1259 = vmatprep.subr.bf16.mxu0 0
        %1260 = vmatpush1.bf16.msra.mxu0 0
        %1261 = vmatprep.subr.bf16.mxu0 0
        %1262 = vmatpush1.bf16.msra.mxu0 0
        %1263 = vmatprep.subr.bf16.mxu0 0
        %1264 = vmatpush1.bf16.msra.mxu0 0
        %1265 = vmatprep.subr.bf16.mxu0 0
        %1266 = vmatpush1.bf16.msra.mxu0 0
        %1267 = vmatprep.subr.bf16.mxu0 0
        %1268 = vmatpush1.bf16.msra.mxu0 0
        %1269 = vmatprep.subr.bf16.mxu0 0
        %1270 = vmatpush1.bf16.msra.mxu0 0
        %1271 = vmatprep.subr.bf16.mxu0 0
        %1272 = vmatpush1.bf16.msra.mxu0 0
        %1273 = vmatprep.subr.bf16.mxu0 0
        %1274 = vmatpush1.bf16.msra.mxu0 0
        %1275 = vmatprep.subr.bf16.mxu0 0
        %1276 = vmatpush1.bf16.msra.mxu0 0
        %1277 = vmatprep.subr.bf16.mxu0 0
        %1278 = vmatpush1.bf16.msra.mxu0 0
        %1279 = vmatprep.subr.bf16.mxu0 0
        %1280 = vmatpush1.bf16.msra.mxu0 0
        %1281 = vmatprep.subr.bf16.mxu0 0
        %1282 = vmatpush1.bf16.msra.mxu0 0
        %1283 = vmatprep.mubr.bf16.mxu0 0
        %1284 = vmatmul.mubr.bf16.gmra.mrb[0].mxu0 %v1246
        %v1285 = vpop.f32.mrb[0].mxu0
        %v1286 = vadd.f32 0.0, %v1285
        %v1287 = vpop.f32.mrb[0].mxu0
        %v1288 = vpop.f32.mrb[0].mxu0
        %v1289 = vpop.f32.mrb[0].mxu0
        %1290 = vdwg.mxu0
        %v1292 = vsel %vm919, %v1151, 0
        %v1295 = vsel %vm1155, %v918, 0
        %1297 = vmatprep.subr.bf16.mxu0 0
        %1298 = vmatpush1.bf16.msra.mxu0 %v1295
        %1299 = vmatprep.subr.bf16.mxu0 0
        %1300 = vmatpush1.bf16.msra.mxu0 0
        %1301 = vmatprep.subr.bf16.mxu0 0
        %1302 = vmatpush1.bf16.msra.mxu0 0
        %1303 = vmatprep.subr.bf16.mxu0 0
        %1304 = vmatpush1.bf16.msra.mxu0 0
        %1305 = vmatprep.subr.bf16.mxu0 0
        %1306 = vmatpush1.bf16.msra.mxu0 0
        %1307 = vmatprep.subr.bf16.mxu0 0
        %1308 = vmatpush1.bf16.msra.mxu0 0
        %1309 = vmatprep.subr.bf16.mxu0 0
        %1310 = vmatpush1.bf16.msra.mxu0 0
        %1311 = vmatprep.subr.bf16.mxu0 0
        %1312 = vmatpush1.bf16.msra.mxu0 0
        %1313 = vmatprep.subr.bf16.mxu0 0
        %1314 = vmatpush1.bf16.msra.mxu0 0
        %1315 = vmatprep.subr.bf16.mxu0 0
        %1316 = vmatpush1.bf16.msra.mxu0 0
        %1317 = vmatprep.subr.bf16.mxu0 0
        %1318 = vmatpush1.bf16.msra.mxu0 0
        %1319 = vmatprep.subr.bf16.mxu0 0
        %1320 = vmatpush1.bf16.msra.mxu0 0
        %1321 = vmatprep.subr.bf16.mxu0 0
        %1322 = vmatpush1.bf16.msra.mxu0 0
        %1323 = vmatprep.subr.bf16.mxu0 0
        %1324 = vmatpush1.bf16.msra.mxu0 0
        %1325 = vmatprep.subr.bf16.mxu0 0
        %1326 = vmatpush1.bf16.msra.mxu0 0
        %1327 = vmatprep.subr.bf16.mxu0 0
        %1328 = vmatpush1.bf16.msra.mxu0 0
        %1329 = vmatprep.mubr.bf16.mxu0 0
        %1330 = vmatmul.mubr.bf16.gmra.mrb[0].mxu0 %v1292
        %v1331 = vpop.f32.mrb[0].mxu0
        %v1332 = vadd.f32 0.0, %v1331
        %v1333 = vpop.f32.mrb[0].mxu0
        %v1334 = vpop.f32.mrb[0].mxu0
        %v1335 = vpop.f32.mrb[0].mxu0
        %1336 = vdwg.mxu0
        %v1337 = vpack.c.bf16 %v1194, %v1194
        %1338 = vst.msk [vmem:[#allocation5] sm:$0xf] %vm849, %v1337
        %v1339 = vpack.c.bf16 %v1240, %v1240
        %v1341 = vunpack.c.l.b16 %v1339
        %v1342 = vpack.c.b16 %v1341, %v1341
        %1343 = vrot.lane.b32.xlu0 %v1342, 8
        %v1344 = vpop.permute.xlu0 %1343
        %vm1346 = vcmask 126016
        %1347 = vst.msk [vmem:[#allocation5] sm:$0xf] %vm1346, %v1344
        %v1348 = vpack.c.bf16 %v1286, %v1286
        %v1350 = vunpack.c.l.b16 %v1348
        %v1351 = vpack.c.b16 %v1350, %v1350
        %1352 = vrot.lane.b32.xlu0 %v1351, 16
        %v1353 = vpop.permute.xlu0 %1352
        %vm1355 = vcmask 191616
        %1356 = vst.msk [vmem:[#allocation5] sm:$0xf] %vm1355, %v1353
        %v1357 = vpack.c.bf16 %v1332, %v1332
        %v1359 = vunpack.c.l.b16 %v1357
        %v1360 = vpack.c.b16 %v1359, %v1359
        %1361 = vrot.lane.b32.xlu0 %v1360, 24
        %v1362 = vpop.permute.xlu0 %1361
        %vm1364 = vcmask 257216
        %1365 = vst.msk [vmem:[#allocation5] sm:$0xf] %vm1364, %v1362
        %v1366 = vld [vmem:[#allocation5] sm:$0xf]
        %v1367 = vld [vmem:[%s8] sm:$0xf]
        %v1368 = vld [vmem:[%s8 + $0x4] sm:$0xf]
        %v1369 = vld [vmem:[%s8 + $0x8] sm:$0xf]
        %v1370 = vld [vmem:[%s8 + $0xc] sm:$0xf]
        %v1371 = vld [vmem:[%s9] sm:$0x1]
        %v1373 = vlaneseq
        %v1374 = vshrl.u32 %v1373, 7
        %v1375 = vsub.s32 0, %v1374
        %v1376 = vrot.slane %v1371, %v1375
        %v1382 = vunpack.c.l.b16 %v1367
        %v1383 = vunpack.c.l.b16 %v1368
        %v1384 = vunpack.c.l.b16 %v1369
        %v1385 = vunpack.c.l.b16 %v1370
        %v1386 = vpack.c.b16 %v1383, %v1382
        %v1387 = vpack.c.b16 %v1385, %v1384
        %v1391 = vsel %vm651, %v1366, 0
        %1393 = vmatprep.subr.bf16.mxu0 0
        %1394 = vmatpush1.bf16.msra.mxu0 %v1386
        %1395 = vmatprep.subr.bf16.mxu0 0
        %1396 = vmatpush1.bf16.msra.mxu0 %v1387
        %1397 = vmatprep.subr.bf16.mxu0 0
        %1398 = vmatpush1.bf16.msra.mxu0 0
        %1399 = vmatprep.subr.bf16.mxu0 0
        %1400 = vmatpush1.bf16.msra.mxu0 0
        %1401 = vmatprep.subr.bf16.mxu0 0
        %1402 = vmatpush1.bf16.msra.mxu0 0
        %1403 = vmatprep.subr.bf16.mxu0 0
        %1404 = vmatpush1.bf16.msra.mxu0 0
        %1405 = vmatprep.subr.bf16.mxu0 0
        %1406 = vmatpush1.bf16.msra.mxu0 0
        %1407 = vmatprep.subr.bf16.mxu0 0
        %1408 = vmatpush1.bf16.msra.mxu0 0
        %1409 = vmatprep.subr.bf16.mxu0 0
        %1410 = vmatpush1.bf16.msra.mxu0 0
        %1411 = vmatprep.subr.bf16.mxu0 0
        %1412 = vmatpush1.bf16.msra.mxu0 0
        %1413 = vmatprep.subr.bf16.mxu0 0
        %1414 = vmatpush1.bf16.msra.mxu0 0
        %1415 = vmatprep.subr.bf16.mxu0 0
        %1416 = vmatpush1.bf16.msra.mxu0 0
        %1417 = vmatprep.subr.bf16.mxu0 0
        %1418 = vmatpush1.bf16.msra.mxu0 0
        %1419 = vmatprep.subr.bf16.mxu0 0
        %1420 = vmatpush1.bf16.msra.mxu0 0
        %1421 = vmatprep.subr.bf16.mxu0 0
        %1422 = vmatpush1.bf16.msra.mxu0 0
        %1423 = vmatprep.subr.bf16.mxu0 0
        %1424 = vmatpush1.bf16.msra.mxu0 0
        %1425 = vmatprep.mubr.bf16.mxu0 0
        %1426 = vmatmul.mubr.bf16.gmra.mrb[0].mxu0 %v1391
        %v1427 = vpop.f32.mrb[0].mxu0
        %v1428 = vadd.f32 %v1376, %v1427
        %v1429 = vpop.f32.mrb[0].mxu0
        %v1430 = vpop.f32.mrb[0].mxu0
        %v1431 = vpop.f32.mrb[0].mxu0
        %1432 = vdwg.mxu0
        %v1433 = vadd.f32 %v787, %v1428
        %v1434 = vld [vmem:[%s10] sm:$0x1]
        %v1435 = vld [vmem:[%s11] sm:$0x1]
        %v1436 = vsel %vm651, %v1433, 0.0
        %1437 = vadd.xlane.f32.xlu0 %v1436
        %v1438 = vpop.xlane.xlu0 %1437
        %v1439 = vmul.f32 %v1438, %v763
        %v1440 = vsub.f32 %v1433, %v1439
        %v1441 = vmul.f32 %v1440, %v1440
        %v1442 = vsel %vm651, %v1441, 0.0
        %1443 = vadd.xlane.f32.xlu0 %v1442
        %v1444 = vpop.xlane.xlu0 %1443
        %v1445 = vmul.f32 %v1444, %v763
        %v1446 = vadd.f32 %v1445, 1e-05
        %v1447 = vrsqrt.pop %v1446
        %v1448 = vmul.f32 %v1440, %v1447
        %v1450 = vlaneseq
        %v1451 = vshrl.u32 %v1450, 7
        %v1452 = vsub.s32 0, %v1451
        %v1453 = vrot.slane %v1434, %v1452
        %v1455 = vmul.f32 %v1448, %v1453
        %v1457 = vlaneseq
        %v1458 = vshrl.u32 %v1457, 7
        %v1459 = vsub.s32 0, %v1458
        %v1460 = vrot.slane %v1435, %v1459
        %v1462 = vadd.f32 %v1455, %v1460
        %v1463 = vpack.c.bf16 %v1462, %v1462
        %v1464 = vld [vmem:[%s12] sm:$0xf]
        %v1465 = vld [vmem:[%s12 + $0x4] sm:$0xf]
        %v1466 = vld [vmem:[%s12 + $0x8] sm:$0xf]
        %v1467 = vld [vmem:[%s12 + $0xc] sm:$0xf]
        %v1468 = vld [vmem:[%s13] sm:$0x1]
        %v1470 = vlaneseq
        %v1471 = vshrl.u32 %v1470, 7
        %v1472 = vsub.s32 0, %v1471
        %v1473 = vrot.slane %v1468, %v1472
        %v1479 = vunpack.c.l.b16 %v1464
        %v1480 = vunpack.c.l.b16 %v1465
        %v1481 = vunpack.c.l.b16 %v1466
        %v1482 = vunpack.c.l.b16 %v1467
        %v1483 = vpack.c.b16 %v1480, %v1479
        %v1484 = vpack.c.b16 %v1482, %v1481
        %v1488 = vsel %vm651, %v1463, 0
        %1490 = vmatprep.subr.bf16.mxu0 0
        %1491 = vmatpush1.bf16.msra.mxu0 %v1483
        %1492 = vmatprep.subr.bf16.mxu0 0
        %1493 = vmatpush1.bf16.msra.mxu0 %v1484
        %1494 = vmatprep.subr.bf16.mxu0 0
        %1495 = vmatpush1.bf16.msra.mxu0 0
        %1496 = vmatprep.subr.bf16.mxu0 0
        %1497 = vmatpush1.bf16.msra.mxu0 0
        %1498 = vmatprep.subr.bf16.mxu0 0
        %1499 = vmatpush1.bf16.msra.mxu0 0
        %1500 = vmatprep.subr.bf16.mxu0 0
        %1501 = vmatpush1.bf16.msra.mxu0 0
        %1502 = vmatprep.subr.bf16.mxu0 0
        %1503 = vmatpush1.bf16.msra.mxu0 0
        %1504 = vmatprep.subr.bf16.mxu0 0
        %1505 = vmatpush1.bf16.msra.mxu0 0
        %1506 = vmatprep.subr.bf16.mxu0 0
        %1507 = vmatpush1.bf16.msra.mxu0 0
        %1508 = vmatprep.subr.bf16.mxu0 0
        %1509 = vmatpush1.bf16.msra.mxu0 0
        %1510 = vmatprep.subr.bf16.mxu0 0
        %1511 = vmatpush1.bf16.msra.mxu0 0
        %1512 = vmatprep.subr.bf16.mxu0 0
        %1513 = vmatpush1.bf16.msra.mxu0 0
        %1514 = vmatprep.subr.bf16.mxu0 0
        %1515 = vmatpush1.bf16.msra.mxu0 0
        %1516 = vmatprep.subr.bf16.mxu0 0
        %1517 = vmatpush1.bf16.msra.mxu0 0
        %1518 = vmatprep.subr.bf16.mxu0 0
        %1519 = vmatpush1.bf16.msra.mxu0 0
        %1520 = vmatprep.subr.bf16.mxu0 0
        %1521 = vmatpush1.bf16.msra.mxu0 0
        %1522 = vmatprep.mubr.bf16.mxu0 0
        %1523 = vmatmul.mubr.bf16.gmra.mrb[0].mxu0 %v1488
        %v1524 = vpop.f32.mrb[0].mxu0
        %v1525 = vadd.f32 %v1473, %v1524
        %v1526 = vpop.f32.mrb[0].mxu0
        %v1527 = vpop.f32.mrb[0].mxu0
        %v1528 = vpop.f32.mrb[0].mxu0
        %1529 = vdwg.mxu0
        %v1530 = vmul.f32 %v1525, 0.5
        %v1531 = vmul.f32 %v1525, 0.70710677
        %v1532 = verf.f32.pop %v1531
        %v1533 = vadd.f32 %v1532, 1.0
        %v1534 = vmul.f32 %v1530, %v1533
        %v1535 = vpack.c.bf16 %v1534, %v1534
        %v1536 = vld [vmem:[%s14] sm:$0xf]
        %v1537 = vld [vmem:[%s14 + $0x4] sm:$0xf]
        %v1538 = vld [vmem:[%s14 + $0x8] sm:$0xf]
        %v1539 = vld [vmem:[%s14 + $0xc] sm:$0xf]
        %v1540 = vld [vmem:[%s14 + $0x10] sm:$0xf]
        %v1541 = vld [vmem:[%s14 + $0x14] sm:$0xf]
        %v1542 = vld [vmem:[%s14 + $0x18] sm:$0xf]
        %v1543 = vld [vmem:[%s14 + $0x1c] sm:$0xf]
        %v1544 = vld [vmem:[%s14 + $0x20] sm:$0xf]
        %v1545 = vld [vmem:[%s14 + $0x24] sm:$0xf]
        %v1546 = vld [vmem:[%s14 + $0x28] sm:$0xf]
        %v1547 = vld [vmem:[%s14 + $0x2c] sm:$0xf]
        %v1548 = vld [vmem:[%s14 + $0x30] sm:$0xf]
        %v1549 = vld [vmem:[%s14 + $0x34] sm:$0xf]
        %v1550 = vld [vmem:[%s14 + $0x38] sm:$0xf]
        %v1551 = vld [vmem:[%s14 + $0x3c] sm:$0xf]
        %v1552 = vld [vmem:[%s15] sm:$0x1]
        %v1554 = vlaneseq
        %v1555 = vshrl.u32 %v1554, 7
        %v1556 = vsub.s32 0, %v1555
        %v1557 = vrot.slane %v1552, %v1556
        %v1575 = vunpack.c.l.b16 %v1536
        %v1576 = vunpack.c.l.b16 %v1537
        %v1577 = vunpack.c.l.b16 %v1538
        %v1578 = vunpack.c.l.b16 %v1539
        %v1579 = vunpack.c.l.b16 %v1540
        %v1580 = vunpack.c.l.b16 %v1541
        %v1581 = vunpack.c.l.b16 %v1542
        %v1582 = vunpack.c.l.b16 %v1543
        %v1583 = vunpack.c.l.b16 %v1544
        %v1584 = vunpack.c.l.b16 %v1545
        %v1585 = vunpack.c.l.b16 %v1546
        %v1586 = vunpack.c.l.b16 %v1547
        %v1587 = vunpack.c.l.b16 %v1548
        %v1588 = vunpack.c.l.b16 %v1549
        %v1589 = vunpack.c.l.b16 %v1550
        %v1590 = vunpack.c.l.b16 %v1551
        %v1591 = vpack.c.b16 %v1576, %v1575
        %v1592 = vpack.c.b16 %v1578, %v1577
        %v1593 = vpack.c.b16 %v1580, %v1579
        %v1594 = vpack.c.b16 %v1582, %v1581
        %v1595 = vpack.c.b16 %v1584, %v1583
        %v1596 = vpack.c.b16 %v1586, %v1585
        %v1597 = vpack.c.b16 %v1588, %v1587
        %v1598 = vpack.c.b16 %v1590, %v1589
        %1607 = vmatprep.subr.bf16.mxu0 0
        %1608 = vmatpush1.bf16.msra.mxu0 %v1591
        %1609 = vmatprep.subr.bf16.mxu0 0
        %1610 = vmatpush1.bf16.msra.mxu0 %v1592
        %1611 = vmatprep.subr.bf16.mxu0 0
        %1612 = vmatpush1.bf16.msra.mxu0 %v1593
        %1613 = vmatprep.subr.bf16.mxu0 0
        %1614 = vmatpush1.bf16.msra.mxu0 %v1594
        %1615 = vmatprep.subr.bf16.mxu0 0
        %1616 = vmatpush1.bf16.msra.mxu0 %v1595
        %1617 = vmatprep.subr.bf16.mxu0 0
        %1618 = vmatpush1.bf16.msra.mxu0 %v1596
        %1619 = vmatprep.subr.bf16.mxu0 0
        %1620 = vmatpush1.bf16.msra.mxu0 %v1597
        %1621 = vmatprep.subr.bf16.mxu0 0
        %1622 = vmatpush1.bf16.msra.mxu0 %v1598
        %1623 = vmatprep.subr.bf16.mxu0 0
        %1624 = vmatpush1.bf16.msra.mxu0 0
        %1625 = vmatprep.subr.bf16.mxu0 0
        %1626 = vmatpush1.bf16.msra.mxu0 0
        %1627 = vmatprep.subr.bf16.mxu0 0
        %1628 = vmatpush1.bf16.msra.mxu0 0
        %1629 = vmatprep.subr.bf16.mxu0 0
        %1630 = vmatpush1.bf16.msra.mxu0 0
        %1631 = vmatprep.subr.bf16.mxu0 0
        %1632 = vmatpush1.bf16.msra.mxu0 0
        %1633 = vmatprep.subr.bf16.mxu0 0
        %1634 = vmatpush1.bf16.msra.mxu0 0
        %1635 = vmatprep.subr.bf16.mxu0 0
        %1636 = vmatpush1.bf16.msra.mxu0 0
        %1637 = vmatprep.subr.bf16.mxu0 0
        %1638 = vmatpush1.bf16.msra.mxu0 0
        %1639 = vmatprep.mubr.bf16.mxu0 0
        %1640 = vmatmul.mubr.bf16.gmra.mrb[0].mxu0 %v1535
        %v1641 = vpop.f32.mrb[0].mxu0
        %v1642 = vadd.f32 %v1557, %v1641
        %v1643 = vpop.f32.mrb[0].mxu0
        %v1644 = vpop.f32.mrb[0].mxu0
        %v1645 = vpop.f32.mrb[0].mxu0
        %1646 = vdwg.mxu0
        %v1647 = vadd.f32 %v1462, %v1642
        %v1648 = vld [vmem:[%s16] sm:$0x1]
        %v1649 = vld [vmem:[%s17] sm:$0x1]
        %v1650 = vsel %vm651, %v1647, 0.0
        %1651 = vadd.xlane.f32.xlu0 %v1650
        %v1652 = vpop.xlane.xlu0 %1651
        %v1653 = vmul.f32 %v1652, %v763
        %v1654 = vsub.f32 %v1647, %v1653
        %v1655 = vmul.f32 %v1654, %v1654
        %v1656 = vsel %vm651, %v1655, 0.0
        %1657 = vadd.xlane.f32.xlu0 %v1656
        %v1658 = vpop.xlane.xlu0 %1657
        %v1659 = vmul.f32 %v1658, %v763
        %v1660 = vadd.f32 %v1659, 1e-05
        %v1661 = vrsqrt.pop %v1660
        %v1662 = vmul.f32 %v1654, %v1661
        %v1664 = vlaneseq
        %v1665 = vshrl.u32 %v1664, 7
        %v1666 = vsub.s32 0, %v1665
        %v1667 = vrot.slane %v1648, %v1666
        %v1669 = vmul.f32 %v1662, %v1667
        %v1671 = vlaneseq
        %v1672 = vshrl.u32 %v1671, 7
        %v1673 = vsub.s32 0, %v1672
        %v1674 = vrot.slane %v1649, %v1673
        %v1676 = vadd.f32 %v1669, %v1674
        %1677 = vst.msk [vmem:[%s627] sm:$0xff] %vm651, %v1676
        %s1678 = sand.u32 %s434, 1
        %s1679 = scalar_lea.sflag [#allocation8], %s1678
        %s1680 = sand.u32 %s434, 1
        %s1681 = smul.addr %s1680, 8
        %s1682 = scalar_lea.vmem [#allocation11], %s1681
        // Predicated region
        $region101: #{tpu_custom_call.1} parent=91 // pred_check
          %p1683 = pneg %p444
        $region102: #{tpu_custom_call.1} parent=91 // pred_check_branch
          %1685 = sbr.rel (%p1683) target = $region104
        $region103: #{tpu_custom_call.1} parent=91 // pred_region
          %s1687 = ssub.s32 128, 128
          %1688 = vsyncadd %s1679, %s1687
          %s1689 = smul.addr %s38, 128
          %s1690 = scalar_lea.hbm %s18, %s1689
          %s1692 = sshll.u32 %s1682, 4
          %s1693 = int_to_ptr.vmem [resolvable:$true] %s1692
          %1695 = dma.vmem_to_hbm [thread:$0]  %s1693, 128, %s1690, %s1679
        $region104: #{tpu_custom_call.1} parent=91 // pred_fallthru
          _
      $region92: #{tpu_custom_call.1} parent=5 // pred_fallthru
        _
      %p1696 = scmp.le.s32.totalorder 2, %s33
      // Predicated region
      $region105: #{tpu_custom_call.1} parent=5 // pred_check
        %p1697 = pneg %p1696
      $region106: #{tpu_custom_call.1} parent=5 // pred_check_branch
        %1699 = sbr.rel (%p1697) target = $region108
      $region107: #{tpu_custom_call.1} parent=5 // pred_region
        %s1700 = ssub.s32 %s33, 2
        // Predicated region
        $region109: #{tpu_custom_call.1} parent=107 // pred_check
          %p1701 = pneg %p450
        $region110: #{tpu_custom_call.1} parent=107 // pred_check_branch
          %1703 = sbr.rel (%p1701) target = $region112
        $region111: #{tpu_custom_call.1} parent=107 // pred_region
          %s1704 = sand.u32 %s435, 1
          %s1705 = scalar_lea.sflag [#allocation8], %s1704
          %s1706 = sand.u32 %s435, 1
          %s1707 = smul.addr %s1706, 8
          %s1708 = scalar_lea.vmem [#allocation11], %s1707
          %1709 = dma.done %s1705, 128
        $region112: #{tpu_custom_call.1} parent=107 // pred_fallthru
          _
      $region108: #{tpu_custom_call.1} parent=5 // pred_fallthru
        _
    $region6: #{tpu_custom_call.1} parent=1 // loop_footer
      %s37 = sadd.s32 1, %s33
    $region7: #{tpu_custom_call.1} parent=1 // loop_footer_branch
      %32 = sbr.rel target = $region3
    $region8: #{tpu_custom_call.1} parent=1 // loop_exit
      _
    %1710 = vsyncpa [#allocation7], 1
    %s1711 = scalar_lea.sflag [#allocation7], 1
    %1712 = vsyncpa %s1711, 1
    %1713 = vsyncpa [#allocation10], 1
    %s1714 = scalar_lea.sflag [#allocation10], 1
    %1715 = vsyncpa %s1714, 1
    %1716 = vsyncpa [#allocation8], 1
    %s1717 = scalar_lea.sflag [#allocation8], 1
    %1718 = vsyncpa %s1717, 1

</llo_original>
